<compile_context>
chip_gen: v5e
topology: v5e:2x2
jax: 0.10.0
libtpu: 0.0.40
codegen_flags: <defaults>
</compile_context>

<pallas_src>
import functools
import math

import jax
import jax.numpy as jnp
from jax.experimental import pallas as pl
from jax.experimental.pallas import tpu as pltpu


def _round_up(x, m):
    return ((x + m - 1) // m) * m


# ----------------------------------------------------------------------------
# Fused Pallas kernel
# ----------------------------------------------------------------------------
def _fused_patch_vae_kernel(
    xcol_ref, eps_ref,
    pe_w_ref, pe_b_ref,
    e1_w_ref, e1_b_ref,
    e2_w_ref, e2_b_ref,
    ml_w_ref, ml_b_ref,
    di_w_ref, di_b_ref,
    d1_w_ref, d1_b_ref,
    d2_w_ref, d2_b_ref,
    rec_w_ref, rec_b_ref,
    pix_ref, mulv_ref,
    *, patches_per_image, latent_dim):
    M = xcol_ref.shape[0]
    P = patches_per_image

    # Per-image halo masks along the flattened (B*P) patch axis, hoisted ONCE
    # as f32 multiplicands and reused by all six conv layers (the neighbour of
    # a boundary patch is zero padding, not the adjacent image).
    row = jax.lax.broadcasted_iota(jnp.int32, (M, 1), 0)
    not_first = (row % P != 0).astype(jnp.float32)
    not_last = (row % P != P - 1).astype(jnp.float32)

    def conv_k3(h, w_ref, b_ref):
        # 3-tap conv (padding=1) along the patch axis as THREE accumulated MXU
        # matmuls on pre-split taps w_ref[0|1|2]; no (M, 3*Cin) window stack.
        # The +/-1 shifts are XLU sublane rotates + boundary-mask multiplies.
        h_prev = pltpu.roll(h, 1, 0) * not_first       # h[p-1]; 0 at patch 0
        h_next = pltpu.roll(h, M - 1, 0) * not_last    # h[p+1]; 0 at patch P-1
        acc = jnp.dot(h_prev.astype(jnp.bfloat16), w_ref[0],
                      preferred_element_type=jnp.float32)
        acc = acc + jnp.dot(h.astype(jnp.bfloat16), w_ref[1],
                            preferred_element_type=jnp.float32)
        acc = acc + jnp.dot(h_next.astype(jnp.bfloat16), w_ref[2],
                            preferred_element_type=jnp.float32)
        return acc + b_ref[...]

    def bn_lrelu(h):
        # BatchNorm2d (training-mode batch stats, gamma=1, beta=0, eps=1e-5)
        # fused with LeakyReLU(0.2).  One reduction pass: var = E[x^2]-E[x]^2.
        inv_m = 1.0 / M
        mean = jnp.sum(h, axis=0, keepdims=True) * inv_m
        ex2 = jnp.sum(h * h, axis=0, keepdims=True) * inv_m
        var = ex2 - mean * mean
        hn = (h - mean) * jax.lax.rsqrt(var + 1e-5)
        return jnp.maximum(hn, 0.2 * hn)

    # PatchEmbed projection (xcol already bf16 on the host).
    p = jnp.dot(xcol_ref[...], pe_w_ref[...],
                preferred_element_type=jnp.float32) + pe_b_ref[...]   # (M, embed)

    # Encoder.
    h = bn_lrelu(conv_k3(p, e1_w_ref, e1_b_ref))        # (M, 256)
    h = bn_lrelu(conv_k3(h, e2_w_ref, e2_b_ref))        # (M, 128)

    # mu / logvar heads merged into one 128-lane-padded conv:
    # columns [0:L)=mu, [L:2L)=logvar, rest exactly zero  -> dense store.
    mulv = conv_k3(h, ml_w_ref, ml_b_ref)               # (M, mulv_cols)
    mulv_ref[...] = mulv

    # Reparameterize: mu + eps * exp(0.5 * logvar).  logvar is aligned onto
    # mu's lanes with an XLU lane rotate instead of a lane-L slice.
    mu = mulv[:, :latent_dim]
    lv = pltpu.roll(mulv, mulv.shape[1] - latent_dim, 1)[:, :latent_dim]
    z = mu + eps_ref[...] * jnp.exp(0.5 * lv)           # (M, latent)

    # Decoder.
    d = bn_lrelu(conv_k3(z, di_w_ref, di_b_ref))        # (M, 128)
    d = bn_lrelu(conv_k3(d, d1_w_ref, d1_b_ref))        # (M, 256)
    r = conv_k3(d, d2_w_ref, d2_b_ref)                  # (M, embed)

    # PatchEmbed.reconstruct linear head, zero-padded to 128 output lanes.
    pix_ref[...] = jnp.dot(r.astype(jnp.bfloat16), rec_w_ref[...],
                           preferred_element_type=jnp.float32) + rec_b_ref[...]


def fused_patch_vae(xcol_bf16, eps, params, *, patches_per_image, latent_dim):
    M = xcol_bf16.shape[0]
    pix_cols = params["rec_w"].shape[1]
    mulv_cols = params["mulv_b"].shape[1]

    operands = (
        xcol_bf16, eps,
        params["pe_w"], params["pe_b"],
        params["enc1_w"], params["enc1_b"],
        params["enc2_w"], params["enc2_b"],
        params["mulv_w"], params["mulv_b"],
        params["decin_w"], params["decin_b"],
        params["dect1_w"], params["dect1_b"],
        params["dect2_w"], params["dect2_b"],
        params["rec_w"], params["rec_b"],
    )
    vmem = pl.BlockSpec(memory_space=pltpu.MemorySpace.VMEM)
    kernel = functools.partial(
        _fused_patch_vae_kernel,
        patches_per_image=patches_per_image,
        latent_dim=latent_dim,
    )
    # No grid: everything (<2 MiB) is VMEM-resident for the whole call, so the
    # 1-step pipeliner (double-buffered inputs + prologue/epilogue DMA) would
    # be pure overhead.  BatchNorm also needs global batch statistics, so a
    # single program is the correct granularity at this size.
    pix, mulv = pl.pallas_call(
        kernel,
        out_shape=[
            jax.ShapeDtypeStruct((M, pix_cols), jnp.float32),
            jax.ShapeDtypeStruct((M, mulv_cols), jnp.float32),
        ],
        in_specs=[vmem] * len(operands),
        out_specs=[vmem, vmem],
    )(*operands)
    return pix, mulv


# ----------------------------------------------------------------------------
# Parameter construction (deterministic, synthetic weights)
# ----------------------------------------------------------------------------
def _conv_taps(key, cin, cout):
    """nn.Conv2d(cin, cout, 3, padding=1) -> middle-row taps (3, cin, cout) + bias.

    Only the middle kernel row touches an H=1 input; tap t multiplies x[p-1+t].
    """
    kw, kb = jax.random.split(key)
    W = jax.random.normal(kw, (cout, cin, 3, 3), jnp.float32) / math.sqrt(cin * 9)
    b = jax.random.normal(kb, (cout,), jnp.float32) * 0.01
    taps = jnp.transpose(W[:, :, 1, :], (2, 1, 0))      # (3, cin, cout)
    return taps, b


def _convT_taps(key, cin, cout):
    """nn.ConvTranspose2d(cin, cout, 3, stride=1, padding=1) taps (3, cin, cout).

    Transposed conv == conv with the kernel flipped along W and in/out channels
    swapped; tap t (multiplying x[p-1+t]) is Wt[:, :, 1, 2-t].
    """
    kw, kb = jax.random.split(key)
    Wt = jax.random.normal(kw, (cin, cout, 3, 3), jnp.float32) / math.sqrt(cin * 9)
    b = jax.random.normal(kb, (cout,), jnp.float32) * 0.01
    taps = jnp.transpose(Wt[:, :, 1, ::-1], (2, 0, 1))   # (3, cin, cout)
    return taps, b


def init_params(key, img_channels, patch_size, embed_dim, latent_dim):
    ks = jax.random.split(key, 10)
    K = img_channels * patch_size * patch_size
    pix_cols = _round_up(K, 128)                # lane-dense reconstruct output
    mulv_cols = _round_up(2 * latent_dim, 128)  # lane-dense mu|logvar output
    p = {}

    # PatchEmbed conv (kernel=patch, stride=stride) as a patchify matmul.
    W_pe = jax.random.normal(ks[0], (embed_dim, K), jnp.float32) / math.sqrt(K)
    p["pe_w"] = W_pe.T                                    # (K, embed_dim)
    p["pe_b"] = jax.random.normal(ks[1], (embed_dim,), jnp.float32) * 0.01

    # Encoder / latent heads / decoder (3x3 convs on (B, C, 1, P)).
    p["enc1_w"], p["enc1_b"] = _conv_taps(ks[2], embed_dim, 256)
    p["enc2_w"], p["enc2_b"] = _conv_taps(ks[3], 256, 128)

    # mu / logvar heads merged and zero-padded to mulv_cols output lanes.
    mu_t, mu_b = _conv_taps(ks[4], 128, latent_dim)
    lv_t, lv_b = _conv_taps(ks[5], 128, latent_dim)
    ml_t = jnp.zeros((3, 128, mulv_cols), jnp.float32)
    ml_t = ml_t.at[:, :, :latent_dim].set(mu_t)
    ml_t = ml_t.at[:, :, latent_dim:2 * latent_dim].set(lv_t)
    ml_b = jnp.zeros((mulv_cols,), jnp.float32)
    ml_b = ml_b.at[:latent_dim].set(mu_b).at[latent_dim:2 * latent_dim].set(lv_b)
    p["mulv_w"], p["mulv_b"] = ml_t, ml_b

    p["decin_w"], p["decin_b"] = _conv_taps(ks[6], latent_dim, 128)
    p["dect1_w"], p["dect1_b"] = _convT_taps(ks[7], 128, 256)
    p["dect2_w"], p["dect2_b"] = _convT_taps(ks[8], 256, embed_dim)

    # PatchEmbed.reconstruct linear head (embed_dim -> C*p*p), padded to 128.
    W_rec = jax.random.normal(ks[9], (K, embed_dim), jnp.float32) / math.sqrt(embed_dim)
    p["rec_w"] = jnp.zeros((embed_dim, pix_cols), jnp.float32).at[:, :K].set(W_rec.T)
    p["rec_b"] = jnp.zeros((pix_cols,), jnp.float32)

    # Matmul weights as bf16 (MXU operands); biases as f32 (1, N) rows.
    out = {}
    for name, v in p.items():
        if name.endswith("_w"):
            out[name] = v.astype(jnp.bfloat16)
        else:
            out[name] = v.reshape(1, -1).astype(jnp.float32)
    return out


# ----------------------------------------------------------------------------
# Forward pass glue (patchify / fold are plain reshapes: stride == patch_size)
# ----------------------------------------------------------------------------
def _extract_patches(x, patch_size):
    """Non-overlapping patchify: (B, C, H, W) -> (B, P, C*p*p)."""
    B, C, H, W = x.shape
    ps = patch_size
    nh, nw = H // ps, W // ps
    xr = x.reshape(B, C, nh, ps, nw, ps)
    xcol = jnp.transpose(xr, (0, 2, 4, 1, 3, 5)).reshape(B, nh * nw, C * ps * ps)
    return xcol, nh, nw


def _fold_patches(pix, img_channels, patch_size, nh, nw):
    """Inverse of _extract_patches (non-overlapping, so no averaging needed)."""
    B = pix.shape[0]
    ps = patch_size
    pr = pix.reshape(B, nh, nw, img_channels, ps, ps)
    return jnp.transpose(pr, (0, 3, 1, 4, 2, 5)).reshape(
        B, img_channels, nh * ps, nw * ps)


@functools.partial(jax.jit, static_argnames=("patch_size", "stride", "img_size",
                                             "embed_dim", "latent_dim"))
def patch_vae_forward(x, params, eps_key, *, patch_size, stride, img_size,
                      embed_dim, latent_dim):
    # TODO(synk): overlapping patches (stride != patch_size) not implemented.
    assert stride == patch_size, "fused path assumes non-overlapping patches"
    B, C, H, W = x.shape
    K = C * patch_size * patch_size

    xcol, nh, nw = _extract_patches(x, patch_size)      # (B, P, C*p*p)
    P = nh * nw
    M = B * P

    eps = jax.random.normal(eps_key, (M, latent_dim), jnp.float32)

    # The patch matrix is only an MXU operand -> cast to bf16 outside the kernel.
    pix, mulv = fused_patch_vae(
        xcol.reshape(M, K).astype(jnp.bfloat16), eps, params,
        patches_per_image=P, latent_dim=latent_dim)

    recon_image = _fold_patches(pix[:, :K].reshape(B, P, K), C, patch_size, nh, nw)

    # Match PyTorch output layout for mu/logvar: (B, latent_dim, 1, P).
    mulv = mulv[:, :2 * latent_dim].reshape(B, P, 2 * latent_dim)
    mu = jnp.transpose(mulv[:, :, :latent_dim], (0, 2, 1))[:, :, None, :]
    logvar = jnp.transpose(mulv[:, :, latent_dim:], (0, 2, 1))[:, :, None, :]
    return recon_image, mu, logvar


# ----------------------------------------------------------------------------
# Main
# ----------------------------------------------------------------------------
if __name__ == "__main__":
    B = 2
    IMG_CHANNELS = 3
    IMG_SIZE = 16
    PATCH_SIZE = 4
    STRIDE = 4
    EMBED_DIM = 64
    LATENT_DIM = 32

    root = jax.random.PRNGKey(0)
    k_x, k_params, k_eps = jax.random.split(root, 3)

    x = jax.random.normal(k_x, (B, IMG_CHANNELS, IMG_SIZE, IMG_SIZE), jnp.float32)
    params = init_params(k_params, IMG_CHANNELS, PATCH_SIZE, EMBED_DIM, LATENT_DIM)

    recon, mu, logvar = patch_vae_forward(
        x, params, k_eps,
        patch_size=PATCH_SIZE, stride=STRIDE, img_size=IMG_SIZE,
        embed_dim=EMBED_DIM, latent_dim=LATENT_DIM)

    jax.block_until_ready((recon, mu, logvar))

    num_patches = ((IMG_SIZE - PATCH_SIZE) // STRIDE + 1) ** 2
    assert recon.shape == (B, IMG_CHANNELS, IMG_SIZE, IMG_SIZE)
    assert mu.shape == (B, LATENT_DIM, 1, num_patches)
    assert logvar.shape == (B, LATENT_DIM, 1, num_patches)
    assert bool(jnp.all(jnp.isfinite(recon)))
    assert bool(jnp.all(jnp.isfinite(mu)))
    assert bool(jnp.all(jnp.isfinite(logvar)))

    print("KERNEL_OK")
</pallas_src>

<mosaic_0001>
module attributes {stable_mosaic.version = 11 : i64} {
  func.func @_fused_patch_vae_kernel(%arg0: memref<32x48xbf16, #tpu.memory_space<vmem>>, %arg1: memref<32x32xf32, #tpu.memory_space<vmem>>, %arg2: memref<48x64xbf16, #tpu.memory_space<vmem>>, %arg3: memref<1x64xf32, #tpu.memory_space<vmem>>, %arg4: memref<3x64x256xbf16, #tpu.memory_space<vmem>>, %arg5: memref<1x256xf32, #tpu.memory_space<vmem>>, %arg6: memref<3x256x128xbf16, #tpu.memory_space<vmem>>, %arg7: memref<1x128xf32, #tpu.memory_space<vmem>>, %arg8: memref<3x128x128xbf16, #tpu.memory_space<vmem>>, %arg9: memref<1x128xf32, #tpu.memory_space<vmem>>, %arg10: memref<3x32x128xbf16, #tpu.memory_space<vmem>>, %arg11: memref<1x128xf32, #tpu.memory_space<vmem>>, %arg12: memref<3x128x256xbf16, #tpu.memory_space<vmem>>, %arg13: memref<1x256xf32, #tpu.memory_space<vmem>>, %arg14: memref<3x256x64xbf16, #tpu.memory_space<vmem>>, %arg15: memref<1x64xf32, #tpu.memory_space<vmem>>, %arg16: memref<64x128xbf16, #tpu.memory_space<vmem>>, %arg17: memref<1x128xf32, #tpu.memory_space<vmem>>, %arg18: memref<32x128xf32, #tpu.memory_space<vmem>>, %arg19: memref<32x128xf32, #tpu.memory_space<vmem>>) attributes {dimension_semantics = [], scalar_prefetch = 0 : i64, scratch_operands = 0 : i64, tpu.core_type = #tpu.core_type<tc>} {
    %0 = tpu.iota {dimensions = array<i32: 0>} : vector<32x1xi32>
    %c16_i32 = arith.constant 16 : i32
    %c0_i32 = arith.constant 0 : i32
    %1 = arith.cmpi eq, %c16_i32, %c0_i32 : i32
    %c1_i32 = arith.constant 1 : i32
    %2 = arith.select %1, %c1_i32, %c16_i32 : i32
    %3 = vector.broadcast %2 : i32 to vector<32x1xi32>
    %4 = arith.remsi %0, %3 : vector<32x1xi32>
    %c0_i32_0 = arith.constant 0 : i32
    %5 = vector.broadcast %c0_i32_0 : i32 to vector<32x1xi32>
    %6 = arith.cmpi ne, %4, %5 : vector<32x1xi32>
    %c0_i32_1 = arith.constant 0 : i32
    %7 = vector.broadcast %c0_i32_1 : i32 to vector<32x1xi32>
    %8 = arith.cmpi slt, %4, %7 : vector<32x1xi32>
    %c0_i32_2 = arith.constant 0 : i32
    %9 = arith.cmpi slt, %2, %c0_i32_2 : i32
    %10 = vector.broadcast %9 : i1 to vector<32x1xi1>
    %11 = vector.broadcast %10 : vector<32x1xi1> to vector<32x1xi1>
    %12 = arith.xori %8, %11 : vector<32x1xi1>
    %13 = arith.andi %12, %6 : vector<32x1xi1>
    %14 = vector.broadcast %2 : i32 to vector<32x1xi32>
    %15 = arith.addi %4, %14 : vector<32x1xi32>
    %16 = arith.select %13, %15, %4 : vector<32x1xi1>, vector<32x1xi32>
    %c0_i32_3 = arith.constant 0 : i32
    %17 = vector.broadcast %c0_i32_3 : i32 to vector<32x1xi32>
    %18 = arith.cmpi ne, %16, %17 : vector<32x1xi32>
    %19 = arith.extui %18 : vector<32x1xi1> to vector<32x1xi32>
    %20 = arith.sitofp %19 : vector<32x1xi32> to vector<32x1xf32>
    %c16_i32_4 = arith.constant 16 : i32
    %c0_i32_5 = arith.constant 0 : i32
    %21 = arith.cmpi eq, %c16_i32_4, %c0_i32_5 : i32
    %c1_i32_6 = arith.constant 1 : i32
    %22 = arith.select %21, %c1_i32_6, %c16_i32_4 : i32
    %23 = vector.broadcast %22 : i32 to vector<32x1xi32>
    %24 = arith.remsi %0, %23 : vector<32x1xi32>
    %c0_i32_7 = arith.constant 0 : i32
    %25 = vector.broadcast %c0_i32_7 : i32 to vector<32x1xi32>
    %26 = arith.cmpi ne, %24, %25 : vector<32x1xi32>
    %c0_i32_8 = arith.constant 0 : i32
    %27 = vector.broadcast %c0_i32_8 : i32 to vector<32x1xi32>
    %28 = arith.cmpi slt, %24, %27 : vector<32x1xi32>
    %c0_i32_9 = arith.constant 0 : i32
    %29 = arith.cmpi slt, %22, %c0_i32_9 : i32
    %30 = vector.broadcast %29 : i1 to vector<32x1xi1>
    %31 = vector.broadcast %30 : vector<32x1xi1> to vector<32x1xi1>
    %32 = arith.xori %28, %31 : vector<32x1xi1>
    %33 = arith.andi %32, %26 : vector<32x1xi1>
    %34 = vector.broadcast %22 : i32 to vector<32x1xi32>
    %35 = arith.addi %24, %34 : vector<32x1xi32>
    %36 = arith.select %33, %35, %24 : vector<32x1xi1>, vector<32x1xi32>
    %c15_i32 = arith.constant 15 : i32
    %37 = vector.broadcast %c15_i32 : i32 to vector<32x1xi32>
    %38 = arith.cmpi ne, %36, %37 : vector<32x1xi32>
    %39 = arith.extui %38 : vector<32x1xi1> to vector<32x1xi32>
    %40 = arith.sitofp %39 : vector<32x1xi32> to vector<32x1xf32>
    %c0 = arith.constant 0 : index
    %c0_10 = arith.constant 0 : index
    %41 = vector.load %arg0[%c0, %c0_10] : memref<32x48xbf16, #tpu.memory_space<vmem>>, vector<32x48xbf16>
    %c0_11 = arith.constant 0 : index
    %c0_12 = arith.constant 0 : index
    %42 = vector.load %arg2[%c0_11, %c0_12] : memref<48x64xbf16, #tpu.memory_space<vmem>>, vector<48x64xbf16>
    %cst = arith.constant dense<0.000000e+00> : vector<32x64xf32>
    %43 = tpu.matmul %41, %42, %cst {dimension_numbers = #tpu.dot_dimension_numbers<[1], [0], [0], [1], [0, 0, 1, 1], [], []>} : vector<32x48xbf16>, vector<48x64xbf16>, vector<32x64xf32> -> vector<32x64xf32>
    %c0_13 = arith.constant 0 : index
    %c0_14 = arith.constant 0 : index
    %44 = vector.load %arg3[%c0_13, %c0_14] : memref<1x64xf32, #tpu.memory_space<vmem>>, vector<1x64xf32>
    %45 = vector.broadcast %44 : vector<1x64xf32> to vector<32x64xf32>
    %46 = arith.addf %43, %45 : vector<32x64xf32>
    %c1_i32_15 = arith.constant 1 : i32
    %47 = tpu.dynamic_rotate %46 by %c1_i32_15 dim 0 : vector<32x64xf32>, i32 -> vector<32x64xf32>
    %48 = vector.broadcast %20 : vector<32x1xf32> to vector<32x64xf32>
    %49 = arith.mulf %47, %48 : vector<32x64xf32>
    %c31_i32 = arith.constant 31 : i32
    %50 = tpu.dynamic_rotate %46 by %c31_i32 dim 0 : vector<32x64xf32>, i32 -> vector<32x64xf32>
    %51 = vector.broadcast %40 : vector<32x1xf32> to vector<32x64xf32>
    %52 = arith.mulf %50, %51 : vector<32x64xf32>
    %53 = arith.truncf %49 : vector<32x64xf32> to vector<32x64xbf16>
    %c0_16 = arith.constant 0 : index
    %c0_17 = arith.constant 0 : index
    %c0_18 = arith.constant 0 : index
    %54 = vector.load %arg4[%c0_16, %c0_17, %c0_18] : memref<3x64x256xbf16, #tpu.memory_space<vmem>>, vector<1x64x256xbf16>
    %55 = vector.shape_cast %54 : vector<1x64x256xbf16> to vector<64x256xbf16>
    %cst_19 = arith.constant dense<0.000000e+00> : vector<32x256xf32>
    %56 = tpu.matmul %53, %55, %cst_19 {dimension_numbers = #tpu.dot_dimension_numbers<[1], [0], [0], [1], [0, 0, 1, 1], [], []>} : vector<32x64xbf16>, vector<64x256xbf16>, vector<32x256xf32> -> vector<32x256xf32>
    %57 = arith.truncf %46 : vector<32x64xf32> to vector<32x64xbf16>
    %c1 = arith.constant 1 : index
    %c0_20 = arith.constant 0 : index
    %c0_21 = arith.constant 0 : index
    %58 = vector.load %arg4[%c1, %c0_20, %c0_21] : memref<3x64x256xbf16, #tpu.memory_space<vmem>>, vector<1x64x256xbf16>
    %59 = vector.shape_cast %58 : vector<1x64x256xbf16> to vector<64x256xbf16>
    %cst_22 = arith.constant dense<0.000000e+00> : vector<32x256xf32>
    %60 = tpu.matmul %57, %59, %cst_22 {dimension_numbers = #tpu.dot_dimension_numbers<[1], [0], [0], [1], [0, 0, 1, 1], [], []>} : vector<32x64xbf16>, vector<64x256xbf16>, vector<32x256xf32> -> vector<32x256xf32>
    %61 = arith.addf %56, %60 : vector<32x256xf32>
    %62 = arith.truncf %52 : vector<32x64xf32> to vector<32x64xbf16>
    %c2 = arith.constant 2 : index
    %c0_23 = arith.constant 0 : index
    %c0_24 = arith.constant 0 : index
    %63 = vector.load %arg4[%c2, %c0_23, %c0_24] : memref<3x64x256xbf16, #tpu.memory_space<vmem>>, vector<1x64x256xbf16>
    %64 = vector.shape_cast %63 : vector<1x64x256xbf16> to vector<64x256xbf16>
    %cst_25 = arith.constant dense<0.000000e+00> : vector<32x256xf32>
    %65 = tpu.matmul %62, %64, %cst_25 {dimension_numbers = #tpu.dot_dimension_numbers<[1], [0], [0], [1], [0, 0, 1, 1], [], []>} : vector<32x64xbf16>, vector<64x256xbf16>, vector<32x256xf32> -> vector<32x256xf32>
    %66 = arith.addf %61, %65 : vector<32x256xf32>
    %c0_26 = arith.constant 0 : index
    %c0_27 = arith.constant 0 : index
    %67 = vector.load %arg5[%c0_26, %c0_27] : memref<1x256xf32, #tpu.memory_space<vmem>>, vector<1x256xf32>
    %68 = vector.broadcast %67 : vector<1x256xf32> to vector<32x256xf32>
    %69 = arith.addf %66, %68 : vector<32x256xf32>
    %cst_28 = arith.constant dense<0.000000e+00> : vector<256xf32>
    %70 = vector.multi_reduction <add>, %69, %cst_28 [0] : vector<32x256xf32> to vector<256xf32>
    %71 = vector.shape_cast %70 : vector<256xf32> to vector<1x256xf32>
    %cst_29 = arith.constant 3.125000e-02 : f32
    %72 = vector.broadcast %cst_29 : f32 to vector<1x256xf32>
    %73 = arith.mulf %71, %72 : vector<1x256xf32>
    %74 = arith.mulf %69, %69 : vector<32x256xf32>
    %cst_30 = arith.constant dense<0.000000e+00> : vector<256xf32>
    %75 = vector.multi_reduction <add>, %74, %cst_30 [0] : vector<32x256xf32> to vector<256xf32>
    %76 = vector.shape_cast %75 : vector<256xf32> to vector<1x256xf32>
    %cst_31 = arith.constant 3.125000e-02 : f32
    %77 = vector.broadcast %cst_31 : f32 to vector<1x256xf32>
    %78 = arith.mulf %76, %77 : vector<1x256xf32>
    %79 = arith.mulf %73, %73 : vector<1x256xf32>
    %80 = arith.subf %78, %79 : vector<1x256xf32>
    %81 = vector.broadcast %73 : vector<1x256xf32> to vector<32x256xf32>
    %82 = arith.subf %69, %81 : vector<32x256xf32>
    %cst_32 = arith.constant 9.99999974E-6 : f32
    %83 = vector.broadcast %cst_32 : f32 to vector<1x256xf32>
    %84 = arith.addf %80, %83 : vector<1x256xf32>
    %85 = math.rsqrt %84 : vector<1x256xf32>
    %86 = vector.broadcast %85 : vector<1x256xf32> to vector<32x256xf32>
    %87 = arith.mulf %82, %86 : vector<32x256xf32>
    %cst_33 = arith.constant 2.000000e-01 : f32
    %88 = vector.broadcast %cst_33 : f32 to vector<32x256xf32>
    %89 = arith.mulf %88, %87 : vector<32x256xf32>
    %90 = arith.maximumf %87, %89 : vector<32x256xf32>
    %c1_i32_34 = arith.constant 1 : i32
    %91 = tpu.dynamic_rotate %90 by %c1_i32_34 dim 0 : vector<32x256xf32>, i32 -> vector<32x256xf32>
    %92 = vector.broadcast %20 : vector<32x1xf32> to vector<32x256xf32>
    %93 = arith.mulf %91, %92 : vector<32x256xf32>
    %c31_i32_35 = arith.constant 31 : i32
    %94 = tpu.dynamic_rotate %90 by %c31_i32_35 dim 0 : vector<32x256xf32>, i32 -> vector<32x256xf32>
    %95 = vector.broadcast %40 : vector<32x1xf32> to vector<32x256xf32>
    %96 = arith.mulf %94, %95 : vector<32x256xf32>
    %97 = arith.truncf %93 : vector<32x256xf32> to vector<32x256xbf16>
    %c0_36 = arith.constant 0 : index
    %c0_37 = arith.constant 0 : index
    %c0_38 = arith.constant 0 : index
    %98 = vector.load %arg6[%c0_36, %c0_37, %c0_38] : memref<3x256x128xbf16, #tpu.memory_space<vmem>>, vector<1x256x128xbf16>
    %99 = vector.shape_cast %98 : vector<1x256x128xbf16> to vector<256x128xbf16>
    %cst_39 = arith.constant dense<0.000000e+00> : vector<32x128xf32>
    %100 = tpu.matmul %97, %99, %cst_39 {dimension_numbers = #tpu.dot_dimension_numbers<[1], [0], [0], [1], [0, 0, 1, 1], [], []>} : vector<32x256xbf16>, vector<256x128xbf16>, vector<32x128xf32> -> vector<32x128xf32>
    %101 = arith.truncf %90 : vector<32x256xf32> to vector<32x256xbf16>
    %c1_40 = arith.constant 1 : index
    %c0_41 = arith.constant 0 : index
    %c0_42 = arith.constant 0 : index
    %102 = vector.load %arg6[%c1_40, %c0_41, %c0_42] : memref<3x256x128xbf16, #tpu.memory_space<vmem>>, vector<1x256x128xbf16>
    %103 = vector.shape_cast %102 : vector<1x256x128xbf16> to vector<256x128xbf16>
    %cst_43 = arith.constant dense<0.000000e+00> : vector<32x128xf32>
    %104 = tpu.matmul %101, %103, %cst_43 {dimension_numbers = #tpu.dot_dimension_numbers<[1], [0], [0], [1], [0, 0, 1, 1], [], []>} : vector<32x256xbf16>, vector<256x128xbf16>, vector<32x128xf32> -> vector<32x128xf32>
    %105 = arith.addf %100, %104 : vector<32x128xf32>
    %106 = arith.truncf %96 : vector<32x256xf32> to vector<32x256xbf16>
    %c2_44 = arith.constant 2 : index
    %c0_45 = arith.constant 0 : index
    %c0_46 = arith.constant 0 : index
    %107 = vector.load %arg6[%c2_44, %c0_45, %c0_46] : memref<3x256x128xbf16, #tpu.memory_space<vmem>>, vector<1x256x128xbf16>
    %108 = vector.shape_cast %107 : vector<1x256x128xbf16> to vector<256x128xbf16>
    %cst_47 = arith.constant dense<0.000000e+00> : vector<32x128xf32>
    %109 = tpu.matmul %106, %108, %cst_47 {dimension_numbers = #tpu.dot_dimension_numbers<[1], [0], [0], [1], [0, 0, 1, 1], [], []>} : vector<32x256xbf16>, vector<256x128xbf16>, vector<32x128xf32> -> vector<32x128xf32>
    %110 = arith.addf %105, %109 : vector<32x128xf32>
    %c0_48 = arith.constant 0 : index
    %c0_49 = arith.constant 0 : index
    %111 = vector.load %arg7[%c0_48, %c0_49] : memref<1x128xf32, #tpu.memory_space<vmem>>, vector<1x128xf32>
    %112 = vector.broadcast %111 : vector<1x128xf32> to vector<32x128xf32>
    %113 = arith.addf %110, %112 : vector<32x128xf32>
    %cst_50 = arith.constant dense<0.000000e+00> : vector<128xf32>
    %114 = vector.multi_reduction <add>, %113, %cst_50 [0] : vector<32x128xf32> to vector<128xf32>
    %115 = vector.shape_cast %114 : vector<128xf32> to vector<1x128xf32>
    %cst_51 = arith.constant 3.125000e-02 : f32
    %116 = vector.broadcast %cst_51 : f32 to vector<1x128xf32>
    %117 = arith.mulf %115, %116 : vector<1x128xf32>
    %118 = arith.mulf %113, %113 : vector<32x128xf32>
    %cst_52 = arith.constant dense<0.000000e+00> : vector<128xf32>
    %119 = vector.multi_reduction <add>, %118, %cst_52 [0] : vector<32x128xf32> to vector<128xf32>
    %120 = vector.shape_cast %119 : vector<128xf32> to vector<1x128xf32>
    %cst_53 = arith.constant 3.125000e-02 : f32
    %121 = vector.broadcast %cst_53 : f32 to vector<1x128xf32>
    %122 = arith.mulf %120, %121 : vector<1x128xf32>
    %123 = arith.mulf %117, %117 : vector<1x128xf32>
    %124 = arith.subf %122, %123 : vector<1x128xf32>
    %125 = vector.broadcast %117 : vector<1x128xf32> to vector<32x128xf32>
    %126 = arith.subf %113, %125 : vector<32x128xf32>
    %cst_54 = arith.constant 9.99999974E-6 : f32
    %127 = vector.broadcast %cst_54 : f32 to vector<1x128xf32>
    %128 = arith.addf %124, %127 : vector<1x128xf32>
    %129 = math.rsqrt %128 : vector<1x128xf32>
    %130 = vector.broadcast %129 : vector<1x128xf32> to vector<32x128xf32>
    %131 = arith.mulf %126, %130 : vector<32x128xf32>
    %cst_55 = arith.constant 2.000000e-01 : f32
    %132 = vector.broadcast %cst_55 : f32 to vector<32x128xf32>
    %133 = arith.mulf %132, %131 : vector<32x128xf32>
    %134 = arith.maximumf %131, %133 : vector<32x128xf32>
    %c1_i32_56 = arith.constant 1 : i32
    %135 = tpu.dynamic_rotate %134 by %c1_i32_56 dim 0 : vector<32x128xf32>, i32 -> vector<32x128xf32>
    %136 = vector.broadcast %20 : vector<32x1xf32> to vector<32x128xf32>
    %137 = arith.mulf %135, %136 : vector<32x128xf32>
    %c31_i32_57 = arith.constant 31 : i32
    %138 = tpu.dynamic_rotate %134 by %c31_i32_57 dim 0 : vector<32x128xf32>, i32 -> vector<32x128xf32>
    %139 = vector.broadcast %40 : vector<32x1xf32> to vector<32x128xf32>
    %140 = arith.mulf %138, %139 : vector<32x128xf32>
    %141 = arith.truncf %137 : vector<32x128xf32> to vector<32x128xbf16>
    %c0_58 = arith.constant 0 : index
    %c0_59 = arith.constant 0 : index
    %c0_60 = arith.constant 0 : index
    %142 = vector.load %arg8[%c0_58, %c0_59, %c0_60] : memref<3x128x128xbf16, #tpu.memory_space<vmem>>, vector<1x128x128xbf16>
    %143 = vector.shape_cast %142 : vector<1x128x128xbf16> to vector<128x128xbf16>
    %cst_61 = arith.constant dense<0.000000e+00> : vector<32x128xf32>
    %144 = tpu.matmul %141, %143, %cst_61 {dimension_numbers = #tpu.dot_dimension_numbers<[1], [0], [0], [1], [0, 0, 1, 1], [], []>} : vector<32x128xbf16>, vector<128x128xbf16>, vector<32x128xf32> -> vector<32x128xf32>
    %145 = arith.truncf %134 : vector<32x128xf32> to vector<32x128xbf16>
    %c1_62 = arith.constant 1 : index
    %c0_63 = arith.constant 0 : index
    %c0_64 = arith.constant 0 : index
    %146 = vector.load %arg8[%c1_62, %c0_63, %c0_64] : memref<3x128x128xbf16, #tpu.memory_space<vmem>>, vector<1x128x128xbf16>
    %147 = vector.shape_cast %146 : vector<1x128x128xbf16> to vector<128x128xbf16>
    %cst_65 = arith.constant dense<0.000000e+00> : vector<32x128xf32>
    %148 = tpu.matmul %145, %147, %cst_65 {dimension_numbers = #tpu.dot_dimension_numbers<[1], [0], [0], [1], [0, 0, 1, 1], [], []>} : vector<32x128xbf16>, vector<128x128xbf16>, vector<32x128xf32> -> vector<32x128xf32>
    %149 = arith.addf %144, %148 : vector<32x128xf32>
    %150 = arith.truncf %140 : vector<32x128xf32> to vector<32x128xbf16>
    %c2_66 = arith.constant 2 : index
    %c0_67 = arith.constant 0 : index
    %c0_68 = arith.constant 0 : index
    %151 = vector.load %arg8[%c2_66, %c0_67, %c0_68] : memref<3x128x128xbf16, #tpu.memory_space<vmem>>, vector<1x128x128xbf16>
    %152 = vector.shape_cast %151 : vector<1x128x128xbf16> to vector<128x128xbf16>
    %cst_69 = arith.constant dense<0.000000e+00> : vector<32x128xf32>
    %153 = tpu.matmul %150, %152, %cst_69 {dimension_numbers = #tpu.dot_dimension_numbers<[1], [0], [0], [1], [0, 0, 1, 1], [], []>} : vector<32x128xbf16>, vector<128x128xbf16>, vector<32x128xf32> -> vector<32x128xf32>
    %154 = arith.addf %149, %153 : vector<32x128xf32>
    %c0_70 = arith.constant 0 : index
    %c0_71 = arith.constant 0 : index
    %155 = vector.load %arg9[%c0_70, %c0_71] : memref<1x128xf32, #tpu.memory_space<vmem>>, vector<1x128xf32>
    %156 = vector.broadcast %155 : vector<1x128xf32> to vector<32x128xf32>
    %157 = arith.addf %154, %156 : vector<32x128xf32>
    %c0_72 = arith.constant 0 : index
    %c0_73 = arith.constant 0 : index
    %158 = vector.load %arg19[%c0_72, %c0_73] : memref<32x128xf32, #tpu.memory_space<vmem>>, vector<32x128xf32>
    tpu.vector_store %arg19[%c0_72, %c0_73], %157 {strides = array<i32>} : memref<32x128xf32, #tpu.memory_space<vmem>>, vector<32x128xf32>,
    %159 = vector.extract_strided_slice %157 {offsets = [0, 0], sizes = [32, 32], strides = [1, 1]} : vector<32x128xf32> to vector<32x32xf32>
    %c96_i32 = arith.constant 96 : i32
    %160 = tpu.dynamic_rotate %157 by %c96_i32 dim 1 : vector<32x128xf32>, i32 -> vector<32x128xf32>
    %161 = vector.extract_strided_slice %160 {offsets = [0, 0], sizes = [32, 32], strides = [1, 1]} : vector<32x128xf32> to vector<32x32xf32>
    %c0_74 = arith.constant 0 : index
    %c0_75 = arith.constant 0 : index
    %162 = vector.load %arg1[%c0_74, %c0_75] : memref<32x32xf32, #tpu.memory_space<vmem>>, vector<32x32xf32>
    %cst_76 = arith.constant 5.000000e-01 : f32
    %163 = vector.broadcast %cst_76 : f32 to vector<32x32xf32>
    %164 = arith.mulf %163, %161 : vector<32x32xf32>
    %165 = math.exp %164 : vector<32x32xf32>
    %166 = arith.mulf %162, %165 : vector<32x32xf32>
    %167 = arith.addf %159, %166 : vector<32x32xf32>
    %c1_i32_77 = arith.constant 1 : i32
    %168 = tpu.dynamic_rotate %167 by %c1_i32_77 dim 0 : vector<32x32xf32>, i32 -> vector<32x32xf32>
    %169 = vector.broadcast %20 : vector<32x1xf32> to vector<32x32xf32>
    %170 = arith.mulf %168, %169 : vector<32x32xf32>
    %c31_i32_78 = arith.constant 31 : i32
    %171 = tpu.dynamic_rotate %167 by %c31_i32_78 dim 0 : vector<32x32xf32>, i32 -> vector<32x32xf32>
    %172 = vector.broadcast %40 : vector<32x1xf32> to vector<32x32xf32>
    %173 = arith.mulf %171, %172 : vector<32x32xf32>
    %174 = arith.truncf %170 : vector<32x32xf32> to vector<32x32xbf16>
    %c0_79 = arith.constant 0 : index
    %c0_80 = arith.constant 0 : index
    %c0_81 = arith.constant 0 : index
    %175 = vector.load %arg10[%c0_79, %c0_80, %c0_81] : memref<3x32x128xbf16, #tpu.memory_space<vmem>>, vector<1x32x128xbf16>
    %176 = vector.shape_cast %175 : vector<1x32x128xbf16> to vector<32x128xbf16>
    %cst_82 = arith.constant dense<0.000000e+00> : vector<32x128xf32>
    %177 = tpu.matmul %174, %176, %cst_82 {dimension_numbers = #tpu.dot_dimension_numbers<[1], [0], [0], [1], [0, 0, 1, 1], [], []>} : vector<32x32xbf16>, vector<32x128xbf16>, vector<32x128xf32> -> vector<32x128xf32>
    %178 = arith.truncf %167 : vector<32x32xf32> to vector<32x32xbf16>
    %c1_83 = arith.constant 1 : index
    %c0_84 = arith.constant 0 : index
    %c0_85 = arith.constant 0 : index
    %179 = vector.load %arg10[%c1_83, %c0_84, %c0_85] : memref<3x32x128xbf16, #tpu.memory_space<vmem>>, vector<1x32x128xbf16>
    %180 = vector.shape_cast %179 : vector<1x32x128xbf16> to vector<32x128xbf16>
    %cst_86 = arith.constant dense<0.000000e+00> : vector<32x128xf32>
    %181 = tpu.matmul %178, %180, %cst_86 {dimension_numbers = #tpu.dot_dimension_numbers<[1], [0], [0], [1], [0, 0, 1, 1], [], []>} : vector<32x32xbf16>, vector<32x128xbf16>, vector<32x128xf32> -> vector<32x128xf32>
    %182 = arith.addf %177, %181 : vector<32x128xf32>
    %183 = arith.truncf %173 : vector<32x32xf32> to vector<32x32xbf16>
    %c2_87 = arith.constant 2 : index
    %c0_88 = arith.constant 0 : index
    %c0_89 = arith.constant 0 : index
    %184 = vector.load %arg10[%c2_87, %c0_88, %c0_89] : memref<3x32x128xbf16, #tpu.memory_space<vmem>>, vector<1x32x128xbf16>
    %185 = vector.shape_cast %184 : vector<1x32x128xbf16> to vector<32x128xbf16>
    %cst_90 = arith.constant dense<0.000000e+00> : vector<32x128xf32>
    %186 = tpu.matmul %183, %185, %cst_90 {dimension_numbers = #tpu.dot_dimension_numbers<[1], [0], [0], [1], [0, 0, 1, 1], [], []>} : vector<32x32xbf16>, vector<32x128xbf16>, vector<32x128xf32> -> vector<32x128xf32>
    %187 = arith.addf %182, %186 : vector<32x128xf32>
    %c0_91 = arith.constant 0 : index
    %c0_92 = arith.constant 0 : index
    %188 = vector.load %arg11[%c0_91, %c0_92] : memref<1x128xf32, #tpu.memory_space<vmem>>, vector<1x128xf32>
    %189 = vector.broadcast %188 : vector<1x128xf32> to vector<32x128xf32>
    %190 = arith.addf %187, %189 : vector<32x128xf32>
    %cst_93 = arith.constant dense<0.000000e+00> : vector<128xf32>
    %191 = vector.multi_reduction <add>, %190, %cst_93 [0] : vector<32x128xf32> to vector<128xf32>
    %192 = vector.shape_cast %191 : vector<128xf32> to vector<1x128xf32>
    %cst_94 = arith.constant 3.125000e-02 : f32
    %193 = vector.broadcast %cst_94 : f32 to vector<1x128xf32>
    %194 = arith.mulf %192, %193 : vector<1x128xf32>
    %195 = arith.mulf %190, %190 : vector<32x128xf32>
    %cst_95 = arith.constant dense<0.000000e+00> : vector<128xf32>
    %196 = vector.multi_reduction <add>, %195, %cst_95 [0] : vector<32x128xf32> to vector<128xf32>
    %197 = vector.shape_cast %196 : vector<128xf32> to vector<1x128xf32>
    %cst_96 = arith.constant 3.125000e-02 : f32
    %198 = vector.broadcast %cst_96 : f32 to vector<1x128xf32>
    %199 = arith.mulf %197, %198 : vector<1x128xf32>
    %200 = arith.mulf %194, %194 : vector<1x128xf32>
    %201 = arith.subf %199, %200 : vector<1x128xf32>
    %202 = vector.broadcast %194 : vector<1x128xf32> to vector<32x128xf32>
    %203 = arith.subf %190, %202 : vector<32x128xf32>
    %cst_97 = arith.constant 9.99999974E-6 : f32
    %204 = vector.broadcast %cst_97 : f32 to vector<1x128xf32>
    %205 = arith.addf %201, %204 : vector<1x128xf32>
    %206 = math.rsqrt %205 : vector<1x128xf32>
    %207 = vector.broadcast %206 : vector<1x128xf32> to vector<32x128xf32>
    %208 = arith.mulf %203, %207 : vector<32x128xf32>
    %cst_98 = arith.constant 2.000000e-01 : f32
    %209 = vector.broadcast %cst_98 : f32 to vector<32x128xf32>
    %210 = arith.mulf %209, %208 : vector<32x128xf32>
    %211 = arith.maximumf %208, %210 : vector<32x128xf32>
    %c1_i32_99 = arith.constant 1 : i32
    %212 = tpu.dynamic_rotate %211 by %c1_i32_99 dim 0 : vector<32x128xf32>, i32 -> vector<32x128xf32>
    %213 = vector.broadcast %20 : vector<32x1xf32> to vector<32x128xf32>
    %214 = arith.mulf %212, %213 : vector<32x128xf32>
    %c31_i32_100 = arith.constant 31 : i32
    %215 = tpu.dynamic_rotate %211 by %c31_i32_100 dim 0 : vector<32x128xf32>, i32 -> vector<32x128xf32>
    %216 = vector.broadcast %40 : vector<32x1xf32> to vector<32x128xf32>
    %217 = arith.mulf %215, %216 : vector<32x128xf32>
    %218 = arith.truncf %214 : vector<32x128xf32> to vector<32x128xbf16>
    %c0_101 = arith.constant 0 : index
    %c0_102 = arith.constant 0 : index
    %c0_103 = arith.constant 0 : index
    %219 = vector.load %arg12[%c0_101, %c0_102, %c0_103] : memref<3x128x256xbf16, #tpu.memory_space<vmem>>, vector<1x128x256xbf16>
    %220 = vector.shape_cast %219 : vector<1x128x256xbf16> to vector<128x256xbf16>
    %cst_104 = arith.constant dense<0.000000e+00> : vector<32x256xf32>
    %221 = tpu.matmul %218, %220, %cst_104 {dimension_numbers = #tpu.dot_dimension_numbers<[1], [0], [0], [1], [0, 0, 1, 1], [], []>} : vector<32x128xbf16>, vector<128x256xbf16>, vector<32x256xf32> -> vector<32x256xf32>
    %222 = arith.truncf %211 : vector<32x128xf32> to vector<32x128xbf16>
    %c1_105 = arith.constant 1 : index
    %c0_106 = arith.constant 0 : index
    %c0_107 = arith.constant 0 : index
    %223 = vector.load %arg12[%c1_105, %c0_106, %c0_107] : memref<3x128x256xbf16, #tpu.memory_space<vmem>>, vector<1x128x256xbf16>
    %224 = vector.shape_cast %223 : vector<1x128x256xbf16> to vector<128x256xbf16>
    %cst_108 = arith.constant dense<0.000000e+00> : vector<32x256xf32>
    %225 = tpu.matmul %222, %224, %cst_108 {dimension_numbers = #tpu.dot_dimension_numbers<[1], [0], [0], [1], [0, 0, 1, 1], [], []>} : vector<32x128xbf16>, vector<128x256xbf16>, vector<32x256xf32> -> vector<32x256xf32>
    %226 = arith.addf %221, %225 : vector<32x256xf32>
    %227 = arith.truncf %217 : vector<32x128xf32> to vector<32x128xbf16>
    %c2_109 = arith.constant 2 : index
    %c0_110 = arith.constant 0 : index
    %c0_111 = arith.constant 0 : index
    %228 = vector.load %arg12[%c2_109, %c0_110, %c0_111] : memref<3x128x256xbf16, #tpu.memory_space<vmem>>, vector<1x128x256xbf16>
    %229 = vector.shape_cast %228 : vector<1x128x256xbf16> to vector<128x256xbf16>
    %cst_112 = arith.constant dense<0.000000e+00> : vector<32x256xf32>
    %230 = tpu.matmul %227, %229, %cst_112 {dimension_numbers = #tpu.dot_dimension_numbers<[1], [0], [0], [1], [0, 0, 1, 1], [], []>} : vector<32x128xbf16>, vector<128x256xbf16>, vector<32x256xf32> -> vector<32x256xf32>
    %231 = arith.addf %226, %230 : vector<32x256xf32>
    %c0_113 = arith.constant 0 : index
    %c0_114 = arith.constant 0 : index
    %232 = vector.load %arg13[%c0_113, %c0_114] : memref<1x256xf32, #tpu.memory_space<vmem>>, vector<1x256xf32>
    %233 = vector.broadcast %232 : vector<1x256xf32> to vector<32x256xf32>
    %234 = arith.addf %231, %233 : vector<32x256xf32>
    %cst_115 = arith.constant dense<0.000000e+00> : vector<256xf32>
    %235 = vector.multi_reduction <add>, %234, %cst_115 [0] : vector<32x256xf32> to vector<256xf32>
    %236 = vector.shape_cast %235 : vector<256xf32> to vector<1x256xf32>
    %cst_116 = arith.constant 3.125000e-02 : f32
    %237 = vector.broadcast %cst_116 : f32 to vector<1x256xf32>
    %238 = arith.mulf %236, %237 : vector<1x256xf32>
    %239 = arith.mulf %234, %234 : vector<32x256xf32>
    %cst_117 = arith.constant dense<0.000000e+00> : vector<256xf32>
    %240 = vector.multi_reduction <add>, %239, %cst_117 [0] : vector<32x256xf32> to vector<256xf32>
    %241 = vector.shape_cast %240 : vector<256xf32> to vector<1x256xf32>
    %cst_118 = arith.constant 3.125000e-02 : f32
    %242 = vector.broadcast %cst_118 : f32 to vector<1x256xf32>
    %243 = arith.mulf %241, %242 : vector<1x256xf32>
    %244 = arith.mulf %238, %238 : vector<1x256xf32>
    %245 = arith.subf %243, %244 : vector<1x256xf32>
    %246 = vector.broadcast %238 : vector<1x256xf32> to vector<32x256xf32>
    %247 = arith.subf %234, %246 : vector<32x256xf32>
    %cst_119 = arith.constant 9.99999974E-6 : f32
    %248 = vector.broadcast %cst_119 : f32 to vector<1x256xf32>
    %249 = arith.addf %245, %248 : vector<1x256xf32>
    %250 = math.rsqrt %249 : vector<1x256xf32>
    %251 = vector.broadcast %250 : vector<1x256xf32> to vector<32x256xf32>
    %252 = arith.mulf %247, %251 : vector<32x256xf32>
    %cst_120 = arith.constant 2.000000e-01 : f32
    %253 = vector.broadcast %cst_120 : f32 to vector<32x256xf32>
    %254 = arith.mulf %253, %252 : vector<32x256xf32>
    %255 = arith.maximumf %252, %254 : vector<32x256xf32>
    %c1_i32_121 = arith.constant 1 : i32
    %256 = tpu.dynamic_rotate %255 by %c1_i32_121 dim 0 : vector<32x256xf32>, i32 -> vector<32x256xf32>
    %257 = vector.broadcast %20 : vector<32x1xf32> to vector<32x256xf32>
    %258 = arith.mulf %256, %257 : vector<32x256xf32>
    %c31_i32_122 = arith.constant 31 : i32
    %259 = tpu.dynamic_rotate %255 by %c31_i32_122 dim 0 : vector<32x256xf32>, i32 -> vector<32x256xf32>
    %260 = vector.broadcast %40 : vector<32x1xf32> to vector<32x256xf32>
    %261 = arith.mulf %259, %260 : vector<32x256xf32>
    %262 = arith.truncf %258 : vector<32x256xf32> to vector<32x256xbf16>
    %c0_123 = arith.constant 0 : index
    %c0_124 = arith.constant 0 : index
    %c0_125 = arith.constant 0 : index
    %263 = vector.load %arg14[%c0_123, %c0_124, %c0_125] : memref<3x256x64xbf16, #tpu.memory_space<vmem>>, vector<1x256x64xbf16>
    %264 = vector.shape_cast %263 : vector<1x256x64xbf16> to vector<256x64xbf16>
    %cst_126 = arith.constant dense<0.000000e+00> : vector<32x64xf32>
    %265 = tpu.matmul %262, %264, %cst_126 {dimension_numbers = #tpu.dot_dimension_numbers<[1], [0], [0], [1], [0, 0, 1, 1], [], []>} : vector<32x256xbf16>, vector<256x64xbf16>, vector<32x64xf32> -> vector<32x64xf32>
    %266 = arith.truncf %255 : vector<32x256xf32> to vector<32x256xbf16>
    %c1_127 = arith.constant 1 : index
    %c0_128 = arith.constant 0 : index
    %c0_129 = arith.constant 0 : index
    %267 = vector.load %arg14[%c1_127, %c0_128, %c0_129] : memref<3x256x64xbf16, #tpu.memory_space<vmem>>, vector<1x256x64xbf16>
    %268 = vector.shape_cast %267 : vector<1x256x64xbf16> to vector<256x64xbf16>
    %cst_130 = arith.constant dense<0.000000e+00> : vector<32x64xf32>
    %269 = tpu.matmul %266, %268, %cst_130 {dimension_numbers = #tpu.dot_dimension_numbers<[1], [0], [0], [1], [0, 0, 1, 1], [], []>} : vector<32x256xbf16>, vector<256x64xbf16>, vector<32x64xf32> -> vector<32x64xf32>
    %270 = arith.addf %265, %269 : vector<32x64xf32>
    %271 = arith.truncf %261 : vector<32x256xf32> to vector<32x256xbf16>
    %c2_131 = arith.constant 2 : index
    %c0_132 = arith.constant 0 : index
    %c0_133 = arith.constant 0 : index
    %272 = vector.load %arg14[%c2_131, %c0_132, %c0_133] : memref<3x256x64xbf16, #tpu.memory_space<vmem>>, vector<1x256x64xbf16>
    %273 = vector.shape_cast %272 : vector<1x256x64xbf16> to vector<256x64xbf16>
    %cst_134 = arith.constant dense<0.000000e+00> : vector<32x64xf32>
    %274 = tpu.matmul %271, %273, %cst_134 {dimension_numbers = #tpu.dot_dimension_numbers<[1], [0], [0], [1], [0, 0, 1, 1], [], []>} : vector<32x256xbf16>, vector<256x64xbf16>, vector<32x64xf32> -> vector<32x64xf32>
    %275 = arith.addf %270, %274 : vector<32x64xf32>
    %c0_135 = arith.constant 0 : index
    %c0_136 = arith.constant 0 : index
    %276 = vector.load %arg15[%c0_135, %c0_136] : memref<1x64xf32, #tpu.memory_space<vmem>>, vector<1x64xf32>
    %277 = vector.broadcast %276 : vector<1x64xf32> to vector<32x64xf32>
    %278 = arith.addf %275, %277 : vector<32x64xf32>
    %279 = arith.truncf %278 : vector<32x64xf32> to vector<32x64xbf16>
    %c0_137 = arith.constant 0 : index
    %c0_138 = arith.constant 0 : index
    %280 = vector.load %arg16[%c0_137, %c0_138] : memref<64x128xbf16, #tpu.memory_space<vmem>>, vector<64x128xbf16>
    %cst_139 = arith.constant dense<0.000000e+00> : vector<32x128xf32>
    %281 = tpu.matmul %279, %280, %cst_139 {dimension_numbers = #tpu.dot_dimension_numbers<[1], [0], [0], [1], [0, 0, 1, 1], [], []>} : vector<32x64xbf16>, vector<64x128xbf16>, vector<32x128xf32> -> vector<32x128xf32>
    %c0_140 = arith.constant 0 : index
    %c0_141 = arith.constant 0 : index
    %282 = vector.load %arg17[%c0_140, %c0_141] : memref<1x128xf32, #tpu.memory_space<vmem>>, vector<1x128xf32>
    %283 = vector.broadcast %282 : vector<1x128xf32> to vector<32x128xf32>
    %284 = arith.addf %281, %283 : vector<32x128xf32>
    %c0_142 = arith.constant 0 : index
    %c0_143 = arith.constant 0 : index
    %285 = vector.load %arg18[%c0_142, %c0_143] : memref<32x128xf32, #tpu.memory_space<vmem>>, vector<32x128xf32>
    tpu.vector_store %arg18[%c0_142, %c0_143], %284 {strides = array<i32>} : memref<32x128xf32, #tpu.memory_space<vmem>>, vector<32x128xf32>,
    return
  }
}

</mosaic_0001>

<llo_original>
// kernel: patch_vae_forward.1
$region0: #{patch_vae_forward.1}
  #allocation0 [shape = 'u32[]', space=smem, size = 0x4, offset = 0x4, fixed_abs, tag = 'smem constant byte address 0x4 - core index']
  #allocation1 [shape = 'u32[72,128]{1,0:T(1,128)}', space=vmem, size = 0x9000, scoped, tag = 'internal scratch']
  %s0 = inlined_call_operand.vmem [shape: bf16[32,48], index: 0, kind: input, shape index: {}]
  %s1 = inlined_call_operand.vmem [shape: f32[32,32], index: 1, kind: input, shape index: {}]
  %s2 = inlined_call_operand.vmem [shape: bf16[48,64], index: 2, kind: input, shape index: {}]
  %s3 = inlined_call_operand.vmem [shape: f32[1,64], index: 3, kind: input, shape index: {}]
  %s4 = inlined_call_operand.vmem [shape: bf16[3,64,256], index: 4, kind: input, shape index: {}]
  %s5 = inlined_call_operand.vmem [shape: f32[1,256], index: 5, kind: input, shape index: {}]
  %s6 = inlined_call_operand.vmem [shape: bf16[3,256,128], index: 6, kind: input, shape index: {}]
  %s7 = inlined_call_operand.vmem [shape: f32[1,128], index: 7, kind: input, shape index: {}]
  %s8 = inlined_call_operand.vmem [shape: bf16[3,128,128], index: 8, kind: input, shape index: {}]
  %s9 = inlined_call_operand.vmem [shape: f32[1,128], index: 9, kind: input, shape index: {}]
  %s10 = inlined_call_operand.vmem [shape: bf16[3,32,128], index: 10, kind: input, shape index: {}]
  %s11 = inlined_call_operand.vmem [shape: f32[1,128], index: 11, kind: input, shape index: {}]
  %s12 = inlined_call_operand.vmem [shape: bf16[3,128,256], index: 12, kind: input, shape index: {}]
  %s13 = inlined_call_operand.vmem [shape: f32[1,256], index: 13, kind: input, shape index: {}]
  %s14 = inlined_call_operand.vmem [shape: bf16[3,256,64], index: 14, kind: input, shape index: {}]
  %s15 = inlined_call_operand.vmem [shape: f32[1,64], index: 15, kind: input, shape index: {}]
  %s16 = inlined_call_operand.vmem [shape: bf16[64,128], index: 16, kind: input, shape index: {}]
  %s17 = inlined_call_operand.vmem [shape: f32[1,128], index: 17, kind: input, shape index: {}]
  %s18 = inlined_call_operand.vmem [shape: f32[32,128], index: 18, kind: output, shape index: {0}]
  %s19 = inlined_call_operand.vmem [shape: f32[32,128], index: 19, kind: output, shape index: {1}]
  %20 = xla_tuple %s18, %s19
  %s21 = sld [smem:[#allocation0]]
  $region90: #{patch_vae_forward.1} parent=0
    _
  %s23 = ssub.s32 1, %s21
  %s24 = scalar_select 0, %s23, %s21
  // Predicated region
  $region2: #{patch_vae_forward.1} parent=0 // pred_check
    _
  $region3: #{patch_vae_forward.1} parent=0 // pred_check_branch
    %26 = sbr.rel (0) target = $region5
  $region4: #{patch_vae_forward.1} parent=0 // pred_region
    _
  $region5: #{patch_vae_forward.1} parent=0 // pred_fallthru
    _
  // Predicated region
  $region6: #{patch_vae_forward.1} parent=0 // pred_check
    _
  $region7: #{patch_vae_forward.1} parent=0 // pred_check_branch
    %28 = sbr.rel (0) target = $region9
  $region8: #{patch_vae_forward.1} parent=0 // pred_region
    _
  $region9: #{patch_vae_forward.1} parent=0 // pred_fallthru
    _
  // Predicated region
  $region10: #{patch_vae_forward.1} parent=0 // pred_check
    _
  $region11: #{patch_vae_forward.1} parent=0 // pred_check_branch
    %30 = sbr.rel (0) target = $region13
  $region12: #{patch_vae_forward.1} parent=0 // pred_region
    _
  $region13: #{patch_vae_forward.1} parent=0 // pred_fallthru
    _
  // Predicated region
  $region14: #{patch_vae_forward.1} parent=0 // pred_check
    _
  $region15: #{patch_vae_forward.1} parent=0 // pred_check_branch
    %32 = sbr.rel (0) target = $region17
  $region16: #{patch_vae_forward.1} parent=0 // pred_region
    _
  $region17: #{patch_vae_forward.1} parent=0 // pred_fallthru
    _
  // Predicated region
  $region18: #{patch_vae_forward.1} parent=0 // pred_check
    _
  $region19: #{patch_vae_forward.1} parent=0 // pred_check_branch
    %34 = sbr.rel (0) target = $region21
  $region20: #{patch_vae_forward.1} parent=0 // pred_region
    _
  $region21: #{patch_vae_forward.1} parent=0 // pred_fallthru
    _
  // Predicated region
  $region22: #{patch_vae_forward.1} parent=0 // pred_check
    _
  $region23: #{patch_vae_forward.1} parent=0 // pred_check_branch
    %36 = sbr.rel (0) target = $region25
  $region24: #{patch_vae_forward.1} parent=0 // pred_region
    _
  $region25: #{patch_vae_forward.1} parent=0 // pred_fallthru
    _
  // Predicated region
  $region26: #{patch_vae_forward.1} parent=0 // pred_check
    _
  $region27: #{patch_vae_forward.1} parent=0 // pred_check_branch
    %38 = sbr.rel (0) target = $region29
  $region28: #{patch_vae_forward.1} parent=0 // pred_region
    _
  $region29: #{patch_vae_forward.1} parent=0 // pred_fallthru
    _
  // Predicated region
  $region30: #{patch_vae_forward.1} parent=0 // pred_check
    _
  $region31: #{patch_vae_forward.1} parent=0 // pred_check_branch
    %40 = sbr.rel (0) target = $region33
  $region32: #{patch_vae_forward.1} parent=0 // pred_region
    _
  $region33: #{patch_vae_forward.1} parent=0 // pred_fallthru
    _
  // Predicated region
  $region34: #{patch_vae_forward.1} parent=0 // pred_check
    _
  $region35: #{patch_vae_forward.1} parent=0 // pred_check_branch
    %42 = sbr.rel (0) target = $region37
  $region36: #{patch_vae_forward.1} parent=0 // pred_region
    _
  $region37: #{patch_vae_forward.1} parent=0 // pred_fallthru
    _
  // Predicated region
  $region38: #{patch_vae_forward.1} parent=0 // pred_check
    _
  $region39: #{patch_vae_forward.1} parent=0 // pred_check_branch
    %44 = sbr.rel (0) target = $region41
  $region40: #{patch_vae_forward.1} parent=0 // pred_region
    _
  $region41: #{patch_vae_forward.1} parent=0 // pred_fallthru
    _
  // Predicated region
  $region42: #{patch_vae_forward.1} parent=0 // pred_check
    _
  $region43: #{patch_vae_forward.1} parent=0 // pred_check_branch
    %46 = sbr.rel (0) target = $region45
  $region44: #{patch_vae_forward.1} parent=0 // pred_region
    _
  $region45: #{patch_vae_forward.1} parent=0 // pred_fallthru
    _
  // Predicated region
  $region46: #{patch_vae_forward.1} parent=0 // pred_check
    _
  $region47: #{patch_vae_forward.1} parent=0 // pred_check_branch
    %48 = sbr.rel (0) target = $region49
  $region48: #{patch_vae_forward.1} parent=0 // pred_region
    _
  $region49: #{patch_vae_forward.1} parent=0 // pred_fallthru
    _
  // Predicated region
  $region50: #{patch_vae_forward.1} parent=0 // pred_check
    _
  $region51: #{patch_vae_forward.1} parent=0 // pred_check_branch
    %50 = sbr.rel (0) target = $region53
  $region52: #{patch_vae_forward.1} parent=0 // pred_region
    _
  $region53: #{patch_vae_forward.1} parent=0 // pred_fallthru
    _
  // Predicated region
  $region54: #{patch_vae_forward.1} parent=0 // pred_check
    _
  $region55: #{patch_vae_forward.1} parent=0 // pred_check_branch
    %52 = sbr.rel (0) target = $region57
  $region56: #{patch_vae_forward.1} parent=0 // pred_region
    _
  $region57: #{patch_vae_forward.1} parent=0 // pred_fallthru
    _
  // Predicated region
  $region58: #{patch_vae_forward.1} parent=0 // pred_check
    _
  $region59: #{patch_vae_forward.1} parent=0 // pred_check_branch
    %54 = sbr.rel (0) target = $region61
  $region60: #{patch_vae_forward.1} parent=0 // pred_region
    _
  $region61: #{patch_vae_forward.1} parent=0 // pred_fallthru
    _
  // Predicated region
  $region62: #{patch_vae_forward.1} parent=0 // pred_check
    _
  $region63: #{patch_vae_forward.1} parent=0 // pred_check_branch
    %56 = sbr.rel (0) target = $region65
  $region64: #{patch_vae_forward.1} parent=0 // pred_region
    _
  $region65: #{patch_vae_forward.1} parent=0 // pred_fallthru
    _
  // Predicated region
  $region66: #{patch_vae_forward.1} parent=0 // pred_check
    _
  $region67: #{patch_vae_forward.1} parent=0 // pred_check_branch
    %58 = sbr.rel (0) target = $region69
  $region68: #{patch_vae_forward.1} parent=0 // pred_region
    _
  $region69: #{patch_vae_forward.1} parent=0 // pred_fallthru
    _
  // Predicated region
  $region70: #{patch_vae_forward.1} parent=0 // pred_check
    _
  $region71: #{patch_vae_forward.1} parent=0 // pred_check_branch
    %60 = sbr.rel (0) target = $region73
  $region72: #{patch_vae_forward.1} parent=0 // pred_region
    _
  $region73: #{patch_vae_forward.1} parent=0 // pred_fallthru
    _
  %v62 = vlaneseq
  %v63 = vshrl.u32 %v62, 7
  %v64 = vadd.s32 %v63, 8
  %v65 = vadd.s32 %v63, 16
  %v66 = vadd.s32 %v63, 24
  %vm67 = vcmp.lt.s32.totalorder %v63, 0
  %v68 = vsub.s32 0, %v63
  %v69 = vsel %vm67, %v68, %v63
  %v70 = vshrl.u32 %v69, 4
  %v71 = vand.u32 %v69, 15
  %v72 = vsub.s32 0, %v71
  %v73 = vsel %vm67, %v72, %v71
  %vm74 = vcmp.lt.s32.totalorder %v64, 0
  %v75 = vsub.s32 0, %v64
  %v76 = vsel %vm74, %v75, %v64
  %v77 = vshrl.u32 %v76, 4
  %v78 = vand.u32 %v76, 15
  %v79 = vsub.s32 0, %v78
  %v80 = vsel %vm74, %v79, %v78
  %vm81 = vcmp.lt.s32.totalorder %v65, 0
  %v82 = vsub.s32 0, %v65
  %v83 = vsel %vm81, %v82, %v65
  %v84 = vshrl.u32 %v83, 4
  %v85 = vand.u32 %v83, 15
  %v86 = vsub.s32 0, %v85
  %v87 = vsel %vm81, %v86, %v85
  %vm88 = vcmp.lt.s32.totalorder %v66, 0
  %v89 = vsub.s32 0, %v66
  %v90 = vsel %vm88, %v89, %v66
  %v91 = vshrl.u32 %v90, 4
  %v92 = vand.u32 %v90, 15
  %v93 = vsub.s32 0, %v92
  %v94 = vsel %vm88, %v93, %v92
  %vm95 = vcmp.ne.s32.totalorder %v73, 0
  %vm96 = vcmp.ne.s32.totalorder %v80, 0
  %vm97 = vcmp.ne.s32.totalorder %v87, 0
  %vm98 = vcmp.ne.s32.totalorder %v94, 0
  %vm99 = vcmp.lt.s32.totalorder %v73, 0
  %vm100 = vcmp.lt.s32.totalorder %v80, 0
  %vm101 = vcmp.lt.s32.totalorder %v87, 0
  %vm102 = vcmp.lt.s32.totalorder %v94, 0
  %vm103 = vmand %vm99, %vm95
  %vm104 = vmand %vm100, %vm96
  %vm105 = vmand %vm101, %vm97
  %vm106 = vmand %vm102, %vm98
  %v107 = vadd.s32 %v73, 16
  %v108 = vadd.s32 %v80, 16
  %v109 = vadd.s32 %v87, 16
  %v110 = vadd.s32 %v94, 16
  %v111 = vsel %vm103, %v107, %v73
  %v112 = vsel %vm104, %v108, %v80
  %v113 = vsel %vm105, %v109, %v87
  %v114 = vsel %vm106, %v110, %v94
  %vm115 = vcmp.ne.s32.totalorder %v111, 0
  %vm116 = vcmp.ne.s32.totalorder %v112, 0
  %vm117 = vcmp.ne.s32.totalorder %v113, 0
  %vm118 = vcmp.ne.s32.totalorder %v114, 0
  %v119 = vsel %vm115, 1, 0
  %v120 = vsel %vm116, 1, 0
  %v121 = vsel %vm117, 1, 0
  %v122 = vsel %vm118, 1, 0
  %v123 = vcvt.s32.f32 %v119
  %v124 = vcvt.s32.f32 %v120
  %v125 = vcvt.s32.f32 %v121
  %v126 = vcvt.s32.f32 %v122
  %vm127 = vcmp.ne.s32.totalorder %v111, 15
  %vm128 = vcmp.ne.s32.totalorder %v112, 15
  %vm129 = vcmp.ne.s32.totalorder %v113, 15
  %vm130 = vcmp.ne.s32.totalorder %v114, 15
  %v131 = vsel %vm127, 1, 0
  %v132 = vsel %vm128, 1, 0
  %v133 = vsel %vm129, 1, 0
  %v134 = vsel %vm130, 1, 0
  %v135 = vcvt.s32.f32 %v131
  %v136 = vcvt.s32.f32 %v132
  %v137 = vcvt.s32.f32 %v133
  %v138 = vcvt.s32.f32 %v134
  %v139 = vld [vmem:[%s0] sm:$0xf]
  %v140 = vld [vmem:[%s0 + $0x4] sm:$0xf]
  %v141 = vld [vmem:[%s0 + $0x8] sm:$0xf]
  %v142 = vld [vmem:[%s0 + $0xc] sm:$0xf]
  %v143 = vld [vmem:[%s2] sm:$0xf]
  %v144 = vld [vmem:[%s2 + $0x4] sm:$0xf]
  %v145 = vld [vmem:[%s2 + $0x8] sm:$0xf]
  %v146 = vld [vmem:[%s2 + $0xc] sm:$0xf]
  %v147 = vld [vmem:[%s2 + $0x10] sm:$0xf]
  %v148 = vld [vmem:[%s2 + $0x14] sm:$0xf]
  %v149 = vld [vmem:[%s3] sm:$0x1]
  %v151 = vperm.slane %v149, 0
  %v157 = vunpack.c.l.b16 %v139
  %v158 = vunpack.c.l.b16 %v140
  %v159 = vunpack.c.l.b16 %v141
  %v160 = vunpack.c.l.b16 %v142
  %v161 = vpack.c.b16 %v158, %v157
  %v162 = vpack.c.b16 %v160, %v159
  %v169 = vunpack.c.l.b16 %v143
  %v170 = vunpack.c.l.b16 %v144
  %v171 = vunpack.c.l.b16 %v145
  %v172 = vunpack.c.l.b16 %v146
  %v173 = vunpack.c.l.b16 %v147
  %v174 = vunpack.c.l.b16 %v148
  %v175 = vpack.c.b16 %v170, %v169
  %v176 = vpack.c.b16 %v172, %v171
  %v177 = vpack.c.b16 %v174, %v173
  %vm181 = vcmask 392192
  %v183 = vsel %vm181, %v161, 0
  %v186 = vsel %vm181, %v162, 0
  %188 = vmatpush.bf16.msra.mxu0 0
  %189 = vmatpush.bf16.msra.mxu0 0
  %190 = vmatpush.bf16.msra.mxu0 0
  %191 = vmatpush.bf16.msra.mxu0 0
  %192 = vmatpush.bf16.msra.mxu0 0
  %193 = vmatpush.bf16.msra.mxu0 %v177
  %194 = vmatpush.bf16.msra.mxu0 %v176
  %195 = vmatpush.bf16.msra.mxu0 %v175
  %196 = vmatmul.bf16.gmra.mxu0 %v183
  %v197 = vpop.f32.mrf.mxu0
  %v198 = vadd.f32 %v151, %v197
  %v199 = vpop.f32.mrf.mxu0
  %v200 = vadd.f32 %v151, %v199
  %201 = vmatmul.bf16.gmra.mxu0 %v186
  %v202 = vpop.f32.mrf.mxu0
  %v203 = vadd.f32 %v151, %v202
  %v204 = vpop.f32.mrf.mxu0
  %v205 = vadd.f32 %v151, %v204
  %206 = vdwg.mxu0
  %v207 = vrot.slane %v198, 7
  %v208 = vrot.slane %v200, 7
  %v209 = vrot.slane %v203, 7
  %v210 = vrot.slane %v205, 7
  %vm211 = vcmp.lt.s32.totalorder %v63, 1
  %v212 = vsel %vm211, %v209, %v210
  %v213 = vsel %vm211, %v208, %v209
  %v214 = vsel %vm211, %v207, %v208
  %v215 = vsel %vm211, %v210, %v207
  %v216 = vmul.f32 %v215, %v123
  %v217 = vmul.f32 %v214, %v124
  %v218 = vmul.f32 %v213, %v125
  %v219 = vmul.f32 %v212, %v126
  %v220 = vrot.slane %v198, 1
  %v221 = vrot.slane %v200, 1
  %v222 = vrot.slane %v203, 1
  %v223 = vrot.slane %v205, 1
  %vm224 = vcmp.lt.s32.totalorder %v63, 7
  %v225 = vsel %vm224, %v222, %v223
  %v226 = vsel %vm224, %v221, %v222
  %v227 = vsel %vm224, %v220, %v221
  %v228 = vsel %vm224, %v223, %v220
  %v229 = vmul.f32 %v227, %v135
  %v230 = vmul.f32 %v226, %v136
  %v231 = vmul.f32 %v225, %v137
  %v232 = vmul.f32 %v228, %v138
  %v233 = vpack.c.bf16 %v217, %v216
  %v234 = vpack.c.bf16 %v219, %v218
  %v235 = vld [vmem:[%s4] sm:$0xff]
  %v236 = vld [vmem:[%s4 + $0x8] sm:$0xff]
  %v237 = vld [vmem:[%s4 + $0x10] sm:$0xff]
  %v238 = vld [vmem:[%s4 + $0x18] sm:$0xff]
  %v239 = vld [vmem:[%s4 + $0x20] sm:$0xff]
  %v240 = vld [vmem:[%s4 + $0x28] sm:$0xff]
  %v241 = vld [vmem:[%s4 + $0x30] sm:$0xff]
  %v242 = vld [vmem:[%s4 + $0x38] sm:$0xff]
  %v243 = vpack.c.bf16 %v200, %v198
  %v244 = vpack.c.bf16 %v205, %v203
  %s245 = scalar_lea.vmem %s4, 64
  %v246 = vld [vmem:[%s245] sm:$0xff]
  %v247 = vld [vmem:[%s245 + $0x8] sm:$0xff]
  %v248 = vld [vmem:[%s245 + $0x10] sm:$0xff]
  %v249 = vld [vmem:[%s245 + $0x18] sm:$0xff]
  %v250 = vld [vmem:[%s245 + $0x20] sm:$0xff]
  %v251 = vld [vmem:[%s245 + $0x28] sm:$0xff]
  %v252 = vld [vmem:[%s245 + $0x30] sm:$0xff]
  %v253 = vld [vmem:[%s245 + $0x38] sm:$0xff]
  %v262 = vunpack.c.l.b16 %v246
  %v263 = vunpack.c.h.b16 %v246
  %v264 = vunpack.c.l.b16 %v247
  %v265 = vunpack.c.h.b16 %v247
  %v266 = vunpack.c.l.b16 %v248
  %v267 = vunpack.c.h.b16 %v248
  %v268 = vunpack.c.l.b16 %v249
  %v269 = vunpack.c.h.b16 %v249
  %v270 = vunpack.c.l.b16 %v250
  %v271 = vunpack.c.h.b16 %v250
  %v272 = vunpack.c.l.b16 %v251
  %v273 = vunpack.c.h.b16 %v251
  %v274 = vunpack.c.l.b16 %v252
  %v275 = vunpack.c.h.b16 %v252
  %v276 = vunpack.c.l.b16 %v253
  %v277 = vunpack.c.h.b16 %v253
  %v278 = vpack.c.b16 %v264, %v262
  %v279 = vpack.c.b16 %v265, %v263
  %v280 = vpack.c.b16 %v268, %v266
  %v281 = vpack.c.b16 %v269, %v267
  %v282 = vpack.c.b16 %v272, %v270
  %v283 = vpack.c.b16 %v273, %v271
  %v284 = vpack.c.b16 %v276, %v274
  %v285 = vpack.c.b16 %v277, %v275
  %vm294 = vcmask 523264
  %v296 = vsel %vm294, %v243, 0
  %v299 = vsel %vm294, %v244, 0
  %301 = vmatpush.bf16.msra.mxu0 0
  %302 = vmatpush.bf16.msra.mxu0 0
  %303 = vmatpush.bf16.msra.mxu0 0
  %304 = vmatpush.bf16.msra.mxu0 0
  %305 = vmatpush.bf16.msra.mxu0 %v284
  %306 = vmatpush.bf16.msra.mxu0 %v282
  %307 = vmatpush.bf16.msra.mxu0 %v280
  %308 = vmatpush.bf16.msra.mxu0 %v278
  %309 = vmatmul.bf16.gmra.mxu0 %v296
  %v310 = vpop.f32.mrf.mxu0
  %v311 = vadd.f32 0.0, %v310
  %v312 = vpop.f32.mrf.mxu0
  %v313 = vadd.f32 0.0, %v312
  %314 = vmatmul.bf16.gmra.mxu0 %v299
  %v315 = vpop.f32.mrf.mxu0
  %v316 = vadd.f32 0.0, %v315
  %v317 = vpop.f32.mrf.mxu0
  %v318 = vadd.f32 0.0, %v317
  %319 = vdwg.mxu0
  %320 = vmatpush.bf16.msra.mxu0 0
  %321 = vmatpush.bf16.msra.mxu0 0
  %322 = vmatpush.bf16.msra.mxu0 0
  %323 = vmatpush.bf16.msra.mxu0 0
  %324 = vmatpush.bf16.msra.mxu0 %v285
  %325 = vmatpush.bf16.msra.mxu0 %v283
  %326 = vmatpush.bf16.msra.mxu0 %v281
  %327 = vmatpush.bf16.msra.mxu0 %v279
  %328 = vmatmul.bf16.gmra.mxu0 %v296
  %v329 = vpop.f32.mrf.mxu0
  %v330 = vadd.f32 0.0, %v329
  %v331 = vpop.f32.mrf.mxu0
  %v332 = vadd.f32 0.0, %v331
  %333 = vmatmul.bf16.gmra.mxu0 %v299
  %v334 = vpop.f32.mrf.mxu0
  %v335 = vadd.f32 0.0, %v334
  %v336 = vpop.f32.mrf.mxu0
  %v337 = vadd.f32 0.0, %v336
  %338 = vdwg.mxu0
  %v347 = vunpack.c.l.b16 %v235
  %v348 = vunpack.c.h.b16 %v235
  %v349 = vunpack.c.l.b16 %v236
  %v350 = vunpack.c.h.b16 %v236
  %v351 = vunpack.c.l.b16 %v237
  %v352 = vunpack.c.h.b16 %v237
  %v353 = vunpack.c.l.b16 %v238
  %v354 = vunpack.c.h.b16 %v238
  %v355 = vunpack.c.l.b16 %v239
  %v356 = vunpack.c.h.b16 %v239
  %v357 = vunpack.c.l.b16 %v240
  %v358 = vunpack.c.h.b16 %v240
  %v359 = vunpack.c.l.b16 %v241
  %v360 = vunpack.c.h.b16 %v241
  %v361 = vunpack.c.l.b16 %v242
  %v362 = vunpack.c.h.b16 %v242
  %v363 = vpack.c.b16 %v349, %v347
  %v364 = vpack.c.b16 %v350, %v348
  %v365 = vpack.c.b16 %v353, %v351
  %v366 = vpack.c.b16 %v354, %v352
  %v367 = vpack.c.b16 %v357, %v355
  %v368 = vpack.c.b16 %v358, %v356
  %v369 = vpack.c.b16 %v361, %v359
  %v370 = vpack.c.b16 %v362, %v360
  %v380 = vsel %vm294, %v233, 0
  %v383 = vsel %vm294, %v234, 0
  %385 = vmatpush.bf16.msra.mxu0 0
  %386 = vmatpush.bf16.msra.mxu0 0
  %387 = vmatpush.bf16.msra.mxu0 0
  %388 = vmatpush.bf16.msra.mxu0 0
  %389 = vmatpush.bf16.msra.mxu0 %v369
  %390 = vmatpush.bf16.msra.mxu0 %v367
  %391 = vmatpush.bf16.msra.mxu0 %v365
  %392 = vmatpush.bf16.msra.mxu0 %v363
  %393 = vmatmul.bf16.gmra.mxu0 %v380
  %v394 = vpop.f32.mrf.mxu0
  %v395 = vadd.f32 %v311, %v394
  %v396 = vpop.f32.mrf.mxu0
  %v397 = vadd.f32 %v313, %v396
  %398 = vmatmul.bf16.gmra.mxu0 %v383
  %v399 = vpop.f32.mrf.mxu0
  %v400 = vadd.f32 %v316, %v399
  %v401 = vpop.f32.mrf.mxu0
  %v402 = vadd.f32 %v318, %v401
  %403 = vdwg.mxu0
  %404 = vmatpush.bf16.msra.mxu0 0
  %405 = vmatpush.bf16.msra.mxu0 0
  %406 = vmatpush.bf16.msra.mxu0 0
  %407 = vmatpush.bf16.msra.mxu0 0
  %408 = vmatpush.bf16.msra.mxu0 %v370
  %409 = vmatpush.bf16.msra.mxu0 %v368
  %410 = vmatpush.bf16.msra.mxu0 %v366
  %411 = vmatpush.bf16.msra.mxu0 %v364
  %412 = vmatmul.bf16.gmra.mxu0 %v380
  %v413 = vpop.f32.mrf.mxu0
  %v414 = vadd.f32 %v330, %v413
  %v415 = vpop.f32.mrf.mxu0
  %v416 = vadd.f32 %v332, %v415
  %417 = vmatmul.bf16.gmra.mxu0 %v383
  %v418 = vpop.f32.mrf.mxu0
  %v419 = vadd.f32 %v335, %v418
  %v420 = vpop.f32.mrf.mxu0
  %v421 = vadd.f32 %v337, %v420
  %422 = vdwg.mxu0
  %v423 = vpack.c.bf16 %v230, %v229
  %v424 = vpack.c.bf16 %v232, %v231
  %s425 = scalar_lea.vmem %s4, 128
  %v426 = vld [vmem:[%s425] sm:$0xff]
  %v427 = vld [vmem:[%s425 + $0x8] sm:$0xff]
  %v428 = vld [vmem:[%s425 + $0x10] sm:$0xff]
  %v429 = vld [vmem:[%s425 + $0x18] sm:$0xff]
  %v430 = vld [vmem:[%s425 + $0x20] sm:$0xff]
  %v431 = vld [vmem:[%s425 + $0x28] sm:$0xff]
  %v432 = vld [vmem:[%s425 + $0x30] sm:$0xff]
  %v433 = vld [vmem:[%s425 + $0x38] sm:$0xff]
  %v442 = vunpack.c.l.b16 %v426
  %v443 = vunpack.c.h.b16 %v426
  %v444 = vunpack.c.l.b16 %v427
  %v445 = vunpack.c.h.b16 %v427
  %v446 = vunpack.c.l.b16 %v428
  %v447 = vunpack.c.h.b16 %v428
  %v448 = vunpack.c.l.b16 %v429
  %v449 = vunpack.c.h.b16 %v429
  %v450 = vunpack.c.l.b16 %v430
  %v451 = vunpack.c.h.b16 %v430
  %v452 = vunpack.c.l.b16 %v431
  %v453 = vunpack.c.h.b16 %v431
  %v454 = vunpack.c.l.b16 %v432
  %v455 = vunpack.c.h.b16 %v432
  %v456 = vunpack.c.l.b16 %v433
  %v457 = vunpack.c.h.b16 %v433
  %v458 = vpack.c.b16 %v444, %v442
  %v459 = vpack.c.b16 %v445, %v443
  %v460 = vpack.c.b16 %v448, %v446
  %v461 = vpack.c.b16 %v449, %v447
  %v462 = vpack.c.b16 %v452, %v450
  %v463 = vpack.c.b16 %v453, %v451
  %v464 = vpack.c.b16 %v456, %v454
  %v465 = vpack.c.b16 %v457, %v455
  %v475 = vsel %vm294, %v423, 0
  %v478 = vsel %vm294, %v424, 0
  %480 = vmatpush.bf16.msra.mxu0 0
  %481 = vmatpush.bf16.msra.mxu0 0
  %482 = vmatpush.bf16.msra.mxu0 0
  %483 = vmatpush.bf16.msra.mxu0 0
  %484 = vmatpush.bf16.msra.mxu0 %v464
  %485 = vmatpush.bf16.msra.mxu0 %v462
  %486 = vmatpush.bf16.msra.mxu0 %v460
  %487 = vmatpush.bf16.msra.mxu0 %v458
  %488 = vmatmul.bf16.gmra.mxu0 %v475
  %v489 = vpop.f32.mrf.mxu0
  %v490 = vadd.f32 0.0, %v489
  %v491 = vpop.f32.mrf.mxu0
  %v492 = vadd.f32 0.0, %v491
  %493 = vmatmul.bf16.gmra.mxu0 %v478
  %v494 = vpop.f32.mrf.mxu0
  %v495 = vadd.f32 0.0, %v494
  %v496 = vpop.f32.mrf.mxu0
  %v497 = vadd.f32 0.0, %v496
  %498 = vdwg.mxu0
  %499 = vmatpush.bf16.msra.mxu0 0
  %500 = vmatpush.bf16.msra.mxu0 0
  %501 = vmatpush.bf16.msra.mxu0 0
  %502 = vmatpush.bf16.msra.mxu0 0
  %503 = vmatpush.bf16.msra.mxu0 %v465
  %504 = vmatpush.bf16.msra.mxu0 %v463
  %505 = vmatpush.bf16.msra.mxu0 %v461
  %506 = vmatpush.bf16.msra.mxu0 %v459
  %507 = vmatmul.bf16.gmra.mxu0 %v475
  %v508 = vpop.f32.mrf.mxu0
  %v509 = vadd.f32 0.0, %v508
  %v510 = vpop.f32.mrf.mxu0
  %v511 = vadd.f32 0.0, %v510
  %512 = vmatmul.bf16.gmra.mxu0 %v478
  %v513 = vpop.f32.mrf.mxu0
  %v514 = vadd.f32 0.0, %v513
  %v515 = vpop.f32.mrf.mxu0
  %v516 = vadd.f32 0.0, %v515
  %517 = vdwg.mxu0
  %v518 = vadd.f32 %v395, %v490
  %v519 = vadd.f32 %v414, %v509
  %v520 = vadd.f32 %v397, %v492
  %v521 = vadd.f32 %v416, %v511
  %v522 = vadd.f32 %v400, %v495
  %v523 = vadd.f32 %v419, %v514
  %v524 = vadd.f32 %v402, %v497
  %v525 = vadd.f32 %v421, %v516
  %v526 = vld [vmem:[%s5] sm:$0x3]
  %v528 = vperm.slane %v526, 0
  %v529 = vperm.slane %v526, 1
  %v532 = vadd.f32 %v518, %v528
  %v533 = vadd.f32 %v519, %v529
  %v534 = vadd.f32 %v520, %v528
  %v535 = vadd.f32 %v521, %v529
  %v536 = vadd.f32 %v522, %v528
  %v537 = vadd.f32 %v523, %v529
  %v538 = vadd.f32 %v524, %v528
  %v539 = vadd.f32 %v525, %v529
  %v540 = vadd.f32 %v532, %v534
  %v541 = vadd.f32 %v540, %v536
  %v542 = vadd.f32 %v541, %v538
  %v543 = vrot.slane %v542, 4
  %v544 = vadd.f32 %v542, %v543
  %v545 = vrot.slane %v544, 2
  %v546 = vadd.f32 %v544, %v545
  %v547 = vrot.slane %v546, 1
  %v548 = vadd.f32 %v546, %v547
  %v549 = vadd.f32 %v533, %v535
  %v550 = vadd.f32 %v549, %v537
  %v551 = vadd.f32 %v550, %v539
  %v552 = vrot.slane %v551, 4
  %v553 = vadd.f32 %v551, %v552
  %v554 = vrot.slane %v553, 2
  %v555 = vadd.f32 %v553, %v554
  %v556 = vrot.slane %v555, 1
  %v557 = vadd.f32 %v555, %v556
  %v558 = vmul.f32 %v548, 0.03125
  %v559 = vmul.f32 %v557, 0.03125
  %v560 = vmul.f32 %v532, %v532
  %v561 = vmul.f32 %v533, %v533
  %v562 = vmul.f32 %v534, %v534
  %v563 = vmul.f32 %v535, %v535
  %v564 = vmul.f32 %v536, %v536
  %v565 = vmul.f32 %v537, %v537
  %v566 = vmul.f32 %v538, %v538
  %v567 = vmul.f32 %v539, %v539
  %v568 = vadd.f32 %v560, %v562
  %v569 = vadd.f32 %v568, %v564
  %v570 = vadd.f32 %v569, %v566
  %v571 = vrot.slane %v570, 4
  %v572 = vadd.f32 %v570, %v571
  %v573 = vrot.slane %v572, 2
  %v574 = vadd.f32 %v572, %v573
  %v575 = vrot.slane %v574, 1
  %v576 = vadd.f32 %v574, %v575
  %v577 = vadd.f32 %v561, %v563
  %v578 = vadd.f32 %v577, %v565
  %v579 = vadd.f32 %v578, %v567
  %v580 = vrot.slane %v579, 4
  %v581 = vadd.f32 %v579, %v580
  %v582 = vrot.slane %v581, 2
  %v583 = vadd.f32 %v581, %v582
  %v584 = vrot.slane %v583, 1
  %v585 = vadd.f32 %v583, %v584
  %v586 = vmul.f32 %v576, 0.03125
  %v587 = vmul.f32 %v585, 0.03125
  %v588 = vmul.f32 %v558, %v558
  %v589 = vmul.f32 %v559, %v559
  %v590 = vsub.f32 %v586, %v588
  %v591 = vsub.f32 %v587, %v589
  %v592 = vsub.f32 %v532, %v558
  %v593 = vsub.f32 %v533, %v559
  %v594 = vsub.f32 %v534, %v558
  %v595 = vsub.f32 %v535, %v559
  %v596 = vsub.f32 %v536, %v558
  %v597 = vsub.f32 %v537, %v559
  %v598 = vsub.f32 %v538, %v558
  %v599 = vsub.f32 %v539, %v559
  %v600 = vadd.f32 %v590, 1e-05
  %v601 = vadd.f32 %v591, 1e-05
  %v602 = vrsqrt.pop %v600
  %v603 = vmul.f32 %v602, %v600
  %v604 = vmul.f32 %v603, %v602
  %v605 = vmul.f32 0.5, %v604
  %v606 = vsub.f32 1.5, %v605
  %v607 = vmul.f32 %v602, %v606
  %vm608 = vweird.f32 %v600
  %vm609 = vweird.f32 %v602
  %vm610 = vmor %vm608, %vm609
  %v611 = vsel %vm610, %v602, %v607
  %v612 = vrsqrt.pop %v601
  %v613 = vmul.f32 %v612, %v601
  %v614 = vmul.f32 %v613, %v612
  %v615 = vmul.f32 0.5, %v614
  %v616 = vsub.f32 1.5, %v615
  %v617 = vmul.f32 %v612, %v616
  %vm618 = vweird.f32 %v601
  %vm619 = vweird.f32 %v612
  %vm620 = vmor %vm618, %vm619
  %v621 = vsel %vm620, %v612, %v617
  %v622 = vmul.f32 %v592, %v611
  %v623 = vmul.f32 %v593, %v621
  %v624 = vmul.f32 %v594, %v611
  %v625 = vmul.f32 %v595, %v621
  %v626 = vmul.f32 %v596, %v611
  %v627 = vmul.f32 %v597, %v621
  %v628 = vmul.f32 %v598, %v611
  %v629 = vmul.f32 %v599, %v621
  %v630 = vmul.f32 %v622, 0.2
  %v631 = vmul.f32 %v623, 0.2
  %v632 = vmul.f32 %v624, 0.2
  %v633 = vmul.f32 %v625, 0.2
  %v634 = vmul.f32 %v626, 0.2
  %v635 = vmul.f32 %v627, 0.2
  %v636 = vmul.f32 %v628, 0.2
  %v637 = vmul.f32 %v629, 0.2
  %v638 = vmax.f32 %v622, %v630
  %v639 = vmax.f32 %v623, %v631
  %v640 = vmax.f32 %v624, %v632
  %v641 = vmax.f32 %v625, %v633
  %v642 = vmax.f32 %v626, %v634
  %v643 = vmax.f32 %v627, %v635
  %v644 = vmax.f32 %v628, %v636
  %v645 = vmax.f32 %v629, %v637
  %v646 = vrot.slane %v638, 7
  %v647 = vrot.slane %v639, 7
  %v648 = vrot.slane %v640, 7
  %v649 = vrot.slane %v641, 7
  %v650 = vrot.slane %v642, 7
  %v651 = vrot.slane %v643, 7
  %v652 = vrot.slane %v644, 7
  %v653 = vrot.slane %v645, 7
  %v654 = vsel %vm211, %v650, %v652
  %v655 = vsel %vm211, %v651, %v653
  %v656 = vsel %vm211, %v648, %v650
  %v657 = vsel %vm211, %v649, %v651
  %v658 = vsel %vm211, %v646, %v648
  %v659 = vsel %vm211, %v647, %v649
  %v660 = vsel %vm211, %v652, %v646
  %v661 = vsel %vm211, %v653, %v647
  %v662 = vmul.f32 %v660, %v123
  %v663 = vmul.f32 %v661, %v123
  %v664 = vmul.f32 %v658, %v124
  %v665 = vmul.f32 %v659, %v124
  %v666 = vmul.f32 %v656, %v125
  %v667 = vmul.f32 %v657, %v125
  %v668 = vmul.f32 %v654, %v126
  %v669 = vmul.f32 %v655, %v126
  %v670 = vrot.slane %v638, 1
  %v671 = vrot.slane %v639, 1
  %v672 = vrot.slane %v640, 1
  %v673 = vrot.slane %v641, 1
  %v674 = vrot.slane %v642, 1
  %v675 = vrot.slane %v643, 1
  %v676 = vrot.slane %v644, 1
  %v677 = vrot.slane %v645, 1
  %v678 = vsel %vm224, %v674, %v676
  %v679 = vsel %vm224, %v675, %v677
  %v680 = vsel %vm224, %v672, %v674
  %v681 = vsel %vm224, %v673, %v675
  %v682 = vsel %vm224, %v670, %v672
  %v683 = vsel %vm224, %v671, %v673
  %v684 = vsel %vm224, %v676, %v670
  %v685 = vsel %vm224, %v677, %v671
  %v686 = vmul.f32 %v682, %v135
  %v687 = vmul.f32 %v683, %v135
  %v688 = vmul.f32 %v680, %v136
  %v689 = vmul.f32 %v681, %v136
  %v690 = vmul.f32 %v678, %v137
  %v691 = vmul.f32 %v679, %v137
  %v692 = vmul.f32 %v684, %v138
  %v693 = vmul.f32 %v685, %v138
  %v694 = vpack.c.bf16 %v664, %v662
  %v695 = vpack.c.bf16 %v665, %v663
  %v696 = vpack.c.bf16 %v668, %v666
  %v697 = vpack.c.bf16 %v669, %v667
  %v698 = vld [vmem:[%s6] sm:$0xf]
  %v699 = vld [vmem:[%s6 + $0x4] sm:$0xf]
  %v700 = vld [vmem:[%s6 + $0x8] sm:$0xf]
  %v701 = vld [vmem:[%s6 + $0xc] sm:$0xf]
  %v702 = vld [vmem:[%s6 + $0x10] sm:$0xf]
  %v703 = vld [vmem:[%s6 + $0x14] sm:$0xf]
  %v704 = vld [vmem:[%s6 + $0x18] sm:$0xf]
  %v705 = vld [vmem:[%s6 + $0x1c] sm:$0xf]
  %v706 = vld [vmem:[%s6 + $0x20] sm:$0xf]
  %v707 = vld [vmem:[%s6 + $0x24] sm:$0xf]
  %v708 = vld [vmem:[%s6 + $0x28] sm:$0xf]
  %v709 = vld [vmem:[%s6 + $0x2c] sm:$0xf]
  %v710 = vld [vmem:[%s6 + $0x30] sm:$0xf]
  %v711 = vld [vmem:[%s6 + $0x34] sm:$0xf]
  %v712 = vld [vmem:[%s6 + $0x38] sm:$0xf]
  %v713 = vld [vmem:[%s6 + $0x3c] sm:$0xf]
  %v714 = vld [vmem:[%s6 + $0x40] sm:$0xf]
  %v715 = vld [vmem:[%s6 + $0x44] sm:$0xf]
  %v716 = vld [vmem:[%s6 + $0x48] sm:$0xf]
  %v717 = vld [vmem:[%s6 + $0x4c] sm:$0xf]
  %v718 = vld [vmem:[%s6 + $0x50] sm:$0xf]
  %v719 = vld [vmem:[%s6 + $0x54] sm:$0xf]
  %v720 = vld [vmem:[%s6 + $0x58] sm:$0xf]
  %v721 = vld [vmem:[%s6 + $0x5c] sm:$0xf]
  %v722 = vld [vmem:[%s6 + $0x60] sm:$0xf]
  %v723 = vld [vmem:[%s6 + $0x64] sm:$0xf]
  %v724 = vld [vmem:[%s6 + $0x68] sm:$0xf]
  %v725 = vld [vmem:[%s6 + $0x6c] sm:$0xf]
  %v726 = vld [vmem:[%s6 + $0x70] sm:$0xf]
  %v727 = vld [vmem:[%s6 + $0x74] sm:$0xf]
  %v728 = vld [vmem:[%s6 + $0x78] sm:$0xf]
  %v729 = vld [vmem:[%s6 + $0x7c] sm:$0xf]
  %v730 = vpack.c.bf16 %v640, %v638
  %v731 = vpack.c.bf16 %v641, %v639
  %v732 = vpack.c.bf16 %v644, %v642
  %v733 = vpack.c.bf16 %v645, %v643
  %s734 = scalar_lea.vmem %s6, 128
  %v735 = vld [vmem:[%s734] sm:$0xf]
  %v736 = vld [vmem:[%s734 + $0x4] sm:$0xf]
  %v737 = vld [vmem:[%s734 + $0x8] sm:$0xf]
  %v738 = vld [vmem:[%s734 + $0xc] sm:$0xf]
  %v739 = vld [vmem:[%s734 + $0x10] sm:$0xf]
  %v740 = vld [vmem:[%s734 + $0x14] sm:$0xf]
  %v741 = vld [vmem:[%s734 + $0x18] sm:$0xf]
  %v742 = vld [vmem:[%s734 + $0x1c] sm:$0xf]
  %v743 = vld [vmem:[%s734 + $0x20] sm:$0xf]
  %v744 = vld [vmem:[%s734 + $0x24] sm:$0xf]
  %v745 = vld [vmem:[%s734 + $0x28] sm:$0xf]
  %v746 = vld [vmem:[%s734 + $0x2c] sm:$0xf]
  %v747 = vld [vmem:[%s734 + $0x30] sm:$0xf]
  %v748 = vld [vmem:[%s734 + $0x34] sm:$0xf]
  %v749 = vld [vmem:[%s734 + $0x38] sm:$0xf]
  %v750 = vld [vmem:[%s734 + $0x3c] sm:$0xf]
  %v751 = vld [vmem:[%s734 + $0x40] sm:$0xf]
  %v752 = vld [vmem:[%s734 + $0x44] sm:$0xf]
  %v753 = vld [vmem:[%s734 + $0x48] sm:$0xf]
  %v754 = vld [vmem:[%s734 + $0x4c] sm:$0xf]
  %v755 = vld [vmem:[%s734 + $0x50] sm:$0xf]
  %v756 = vld [vmem:[%s734 + $0x54] sm:$0xf]
  %v757 = vld [vmem:[%s734 + $0x58] sm:$0xf]
  %v758 = vld [vmem:[%s734 + $0x5c] sm:$0xf]
  %v759 = vld [vmem:[%s734 + $0x60] sm:$0xf]
  %v760 = vld [vmem:[%s734 + $0x64] sm:$0xf]
  %v761 = vld [vmem:[%s734 + $0x68] sm:$0xf]
  %v762 = vld [vmem:[%s734 + $0x6c] sm:$0xf]
  %v763 = vld [vmem:[%s734 + $0x70] sm:$0xf]
  %v764 = vld [vmem:[%s734 + $0x74] sm:$0xf]
  %v765 = vld [vmem:[%s734 + $0x78] sm:$0xf]
  %v766 = vld [vmem:[%s734 + $0x7c] sm:$0xf]
  %v799 = vunpack.c.l.b16 %v735
  %v800 = vunpack.c.l.b16 %v736
  %v801 = vunpack.c.l.b16 %v737
  %v802 = vunpack.c.l.b16 %v738
  %v803 = vunpack.c.l.b16 %v739
  %v804 = vunpack.c.l.b16 %v740
  %v805 = vunpack.c.l.b16 %v741
  %v806 = vunpack.c.l.b16 %v742
  %v807 = vunpack.c.l.b16 %v743
  %v808 = vunpack.c.l.b16 %v744
  %v809 = vunpack.c.l.b16 %v745
  %v810 = vunpack.c.l.b16 %v746
  %v811 = vunpack.c.l.b16 %v747
  %v812 = vunpack.c.l.b16 %v748
  %v813 = vunpack.c.l.b16 %v749
  %v814 = vunpack.c.l.b16 %v750
  %v815 = vunpack.c.l.b16 %v751
  %v816 = vunpack.c.l.b16 %v752
  %v817 = vunpack.c.l.b16 %v753
  %v818 = vunpack.c.l.b16 %v754
  %v819 = vunpack.c.l.b16 %v755
  %v820 = vunpack.c.l.b16 %v756
  %v821 = vunpack.c.l.b16 %v757
  %v822 = vunpack.c.l.b16 %v758
  %v823 = vunpack.c.l.b16 %v759
  %v824 = vunpack.c.l.b16 %v760
  %v825 = vunpack.c.l.b16 %v761
  %v826 = vunpack.c.l.b16 %v762
  %v827 = vunpack.c.l.b16 %v763
  %v828 = vunpack.c.l.b16 %v764
  %v829 = vunpack.c.l.b16 %v765
  %v830 = vunpack.c.l.b16 %v766
  %v831 = vpack.c.b16 %v800, %v799
  %v832 = vpack.c.b16 %v802, %v801
  %v833 = vpack.c.b16 %v804, %v803
  %v834 = vpack.c.b16 %v806, %v805
  %v835 = vpack.c.b16 %v808, %v807
  %v836 = vpack.c.b16 %v810, %v809
  %v837 = vpack.c.b16 %v812, %v811
  %v838 = vpack.c.b16 %v814, %v813
  %v839 = vpack.c.b16 %v816, %v815
  %v840 = vpack.c.b16 %v818, %v817
  %v841 = vpack.c.b16 %v820, %v819
  %v842 = vpack.c.b16 %v822, %v821
  %v843 = vpack.c.b16 %v824, %v823
  %v844 = vpack.c.b16 %v826, %v825
  %v845 = vpack.c.b16 %v828, %v827
  %v846 = vpack.c.b16 %v830, %v829
  %863 = vmatpush.bf16.msra.mxu0 %v838
  %864 = vmatpush.bf16.msra.mxu0 %v837
  %865 = vmatpush.bf16.msra.mxu0 %v836
  %866 = vmatpush.bf16.msra.mxu0 %v835
  %867 = vmatpush.bf16.msra.mxu0 %v834
  %868 = vmatpush.bf16.msra.mxu0 %v833
  %869 = vmatpush.bf16.msra.mxu0 %v832
  %870 = vmatpush.bf16.msra.mxu0 %v831
  %871 = vmatmul.bf16.gmra.mxu0 %v730
  %v872 = vpop.f32.mrf.mxu0
  %v873 = vadd.f32 0.0, %v872
  %v874 = vpop.f32.mrf.mxu0
  %v875 = vadd.f32 0.0, %v874
  %876 = vmatmul.bf16.gmra.mxu0 %v732
  %v877 = vpop.f32.mrf.mxu0
  %v878 = vadd.f32 0.0, %v877
  %v879 = vpop.f32.mrf.mxu0
  %v880 = vadd.f32 0.0, %v879
  %881 = vdwg.mxu0
  %882 = vmatpush.bf16.msra.mxu0 %v846
  %883 = vmatpush.bf16.msra.mxu0 %v845
  %884 = vmatpush.bf16.msra.mxu0 %v844
  %885 = vmatpush.bf16.msra.mxu0 %v843
  %886 = vmatpush.bf16.msra.mxu0 %v842
  %887 = vmatpush.bf16.msra.mxu0 %v841
  %888 = vmatpush.bf16.msra.mxu0 %v840
  %889 = vmatpush.bf16.msra.mxu0 %v839
  %890 = vmatmul.bf16.gmra.mxu0 %v731
  %v891 = vpop.f32.mrf.mxu0
  %v892 = vadd.f32 %v873, %v891
  %v893 = vpop.f32.mrf.mxu0
  %v894 = vadd.f32 %v875, %v893
  %895 = vmatmul.bf16.gmra.mxu0 %v733
  %v896 = vpop.f32.mrf.mxu0
  %v897 = vadd.f32 %v878, %v896
  %v898 = vpop.f32.mrf.mxu0
  %v899 = vadd.f32 %v880, %v898
  %900 = vdwg.mxu0
  %v933 = vunpack.c.l.b16 %v698
  %v934 = vunpack.c.l.b16 %v699
  %v935 = vunpack.c.l.b16 %v700
  %v936 = vunpack.c.l.b16 %v701
  %v937 = vunpack.c.l.b16 %v702
  %v938 = vunpack.c.l.b16 %v703
  %v939 = vunpack.c.l.b16 %v704
  %v940 = vunpack.c.l.b16 %v705
  %v941 = vunpack.c.l.b16 %v706
  %v942 = vunpack.c.l.b16 %v707
  %v943 = vunpack.c.l.b16 %v708
  %v944 = vunpack.c.l.b16 %v709
  %v945 = vunpack.c.l.b16 %v710
  %v946 = vunpack.c.l.b16 %v711
  %v947 = vunpack.c.l.b16 %v712
  %v948 = vunpack.c.l.b16 %v713
  %v949 = vunpack.c.l.b16 %v714
  %v950 = vunpack.c.l.b16 %v715
  %v951 = vunpack.c.l.b16 %v716
  %v952 = vunpack.c.l.b16 %v717
  %v953 = vunpack.c.l.b16 %v718
  %v954 = vunpack.c.l.b16 %v719
  %v955 = vunpack.c.l.b16 %v720
  %v956 = vunpack.c.l.b16 %v721
  %v957 = vunpack.c.l.b16 %v722
  %v958 = vunpack.c.l.b16 %v723
  %v959 = vunpack.c.l.b16 %v724
  %v960 = vunpack.c.l.b16 %v725
  %v961 = vunpack.c.l.b16 %v726
  %v962 = vunpack.c.l.b16 %v727
  %v963 = vunpack.c.l.b16 %v728
  %v964 = vunpack.c.l.b16 %v729
  %v965 = vpack.c.b16 %v934, %v933
  %v966 = vpack.c.b16 %v936, %v935
  %v967 = vpack.c.b16 %v938, %v937
  %v968 = vpack.c.b16 %v940, %v939
  %v969 = vpack.c.b16 %v942, %v941
  %v970 = vpack.c.b16 %v944, %v943
  %v971 = vpack.c.b16 %v946, %v945
  %v972 = vpack.c.b16 %v948, %v947
  %v973 = vpack.c.b16 %v950, %v949
  %v974 = vpack.c.b16 %v952, %v951
  %v975 = vpack.c.b16 %v954, %v953
  %v976 = vpack.c.b16 %v956, %v955
  %v977 = vpack.c.b16 %v958, %v957
  %v978 = vpack.c.b16 %v960, %v959
  %v979 = vpack.c.b16 %v962, %v961
  %v980 = vpack.c.b16 %v964, %v963
  %997 = vmatpush.bf16.msra.mxu0 %v972
  %998 = vmatpush.bf16.msra.mxu0 %v971
  %999 = vmatpush.bf16.msra.mxu0 %v970
  %1000 = vmatpush.bf16.msra.mxu0 %v969
  %1001 = vmatpush.bf16.msra.mxu0 %v968
  %1002 = vmatpush.bf16.msra.mxu0 %v967
  %1003 = vmatpush.bf16.msra.mxu0 %v966
  %1004 = vmatpush.bf16.msra.mxu0 %v965
  %1005 = vmatmul.bf16.gmra.mxu0 %v694
  %v1006 = vpop.f32.mrf.mxu0
  %v1007 = vadd.f32 %v892, %v1006
  %v1008 = vpop.f32.mrf.mxu0
  %v1009 = vadd.f32 %v894, %v1008
  %1010 = vmatmul.bf16.gmra.mxu0 %v696
  %v1011 = vpop.f32.mrf.mxu0
  %v1012 = vadd.f32 %v897, %v1011
  %v1013 = vpop.f32.mrf.mxu0
  %v1014 = vadd.f32 %v899, %v1013
  %1015 = vdwg.mxu0
  %1016 = vmatpush.bf16.msra.mxu0 %v980
  %1017 = vmatpush.bf16.msra.mxu0 %v979
  %1018 = vmatpush.bf16.msra.mxu0 %v978
  %1019 = vmatpush.bf16.msra.mxu0 %v977
  %1020 = vmatpush.bf16.msra.mxu0 %v976
  %1021 = vmatpush.bf16.msra.mxu0 %v975
  %1022 = vmatpush.bf16.msra.mxu0 %v974
  %1023 = vmatpush.bf16.msra.mxu0 %v973
  %1024 = vmatmul.bf16.gmra.mxu0 %v695
  %v1025 = vpop.f32.mrf.mxu0
  %v1026 = vadd.f32 %v1007, %v1025
  %v1027 = vpop.f32.mrf.mxu0
  %v1028 = vadd.f32 %v1009, %v1027
  %1029 = vmatmul.bf16.gmra.mxu0 %v697
  %v1030 = vpop.f32.mrf.mxu0
  %v1031 = vadd.f32 %v1012, %v1030
  %v1032 = vpop.f32.mrf.mxu0
  %v1033 = vadd.f32 %v1014, %v1032
  %1034 = vdwg.mxu0
  %v1035 = vpack.c.bf16 %v688, %v686
  %v1036 = vpack.c.bf16 %v689, %v687
  %v1037 = vpack.c.bf16 %v692, %v690
  %v1038 = vpack.c.bf16 %v693, %v691
  %s1039 = scalar_lea.vmem %s6, 256
  %v1040 = vld [vmem:[%s1039] sm:$0xf]
  %v1041 = vld [vmem:[%s1039 + $0x4] sm:$0xf]
  %v1042 = vld [vmem:[%s1039 + $0x8] sm:$0xf]
  %v1043 = vld [vmem:[%s1039 + $0xc] sm:$0xf]
  %v1044 = vld [vmem:[%s1039 + $0x10] sm:$0xf]
  %v1045 = vld [vmem:[%s1039 + $0x14] sm:$0xf]
  %v1046 = vld [vmem:[%s1039 + $0x18] sm:$0xf]
  %v1047 = vld [vmem:[%s1039 + $0x1c] sm:$0xf]
  %v1048 = vld [vmem:[%s1039 + $0x20] sm:$0xf]
  %v1049 = vld [vmem:[%s1039 + $0x24] sm:$0xf]
  %v1050 = vld [vmem:[%s1039 + $0x28] sm:$0xf]
  %v1051 = vld [vmem:[%s1039 + $0x2c] sm:$0xf]
  %v1052 = vld [vmem:[%s1039 + $0x30] sm:$0xf]
  %v1053 = vld [vmem:[%s1039 + $0x34] sm:$0xf]
  %v1054 = vld [vmem:[%s1039 + $0x38] sm:$0xf]
  %v1055 = vld [vmem:[%s1039 + $0x3c] sm:$0xf]
  %v1056 = vld [vmem:[%s1039 + $0x40] sm:$0xf]
  %v1057 = vld [vmem:[%s1039 + $0x44] sm:$0xf]
  %v1058 = vld [vmem:[%s1039 + $0x48] sm:$0xf]
  %v1059 = vld [vmem:[%s1039 + $0x4c] sm:$0xf]
  %v1060 = vld [vmem:[%s1039 + $0x50] sm:$0xf]
  %v1061 = vld [vmem:[%s1039 + $0x54] sm:$0xf]
  %v1062 = vld [vmem:[%s1039 + $0x58] sm:$0xf]
  %v1063 = vld [vmem:[%s1039 + $0x5c] sm:$0xf]
  %v1064 = vld [vmem:[%s1039 + $0x60] sm:$0xf]
  %v1065 = vld [vmem:[%s1039 + $0x64] sm:$0xf]
  %v1066 = vld [vmem:[%s1039 + $0x68] sm:$0xf]
  %v1067 = vld [vmem:[%s1039 + $0x6c] sm:$0xf]
  %v1068 = vld [vmem:[%s1039 + $0x70] sm:$0xf]
  %v1069 = vld [vmem:[%s1039 + $0x74] sm:$0xf]
  %v1070 = vld [vmem:[%s1039 + $0x78] sm:$0xf]
  %v1071 = vld [vmem:[%s1039 + $0x7c] sm:$0xf]
  %v1104 = vunpack.c.l.b16 %v1040
  %v1105 = vunpack.c.l.b16 %v1041
  %v1106 = vunpack.c.l.b16 %v1042
  %v1107 = vunpack.c.l.b16 %v1043
  %v1108 = vunpack.c.l.b16 %v1044
  %v1109 = vunpack.c.l.b16 %v1045
  %v1110 = vunpack.c.l.b16 %v1046
  %v1111 = vunpack.c.l.b16 %v1047
  %v1112 = vunpack.c.l.b16 %v1048
  %v1113 = vunpack.c.l.b16 %v1049
  %v1114 = vunpack.c.l.b16 %v1050
  %v1115 = vunpack.c.l.b16 %v1051
  %v1116 = vunpack.c.l.b16 %v1052
  %v1117 = vunpack.c.l.b16 %v1053
  %v1118 = vunpack.c.l.b16 %v1054
  %v1119 = vunpack.c.l.b16 %v1055
  %v1120 = vunpack.c.l.b16 %v1056
  %v1121 = vunpack.c.l.b16 %v1057
  %v1122 = vunpack.c.l.b16 %v1058
  %v1123 = vunpack.c.l.b16 %v1059
  %v1124 = vunpack.c.l.b16 %v1060
  %v1125 = vunpack.c.l.b16 %v1061
  %v1126 = vunpack.c.l.b16 %v1062
  %v1127 = vunpack.c.l.b16 %v1063
  %v1128 = vunpack.c.l.b16 %v1064
  %v1129 = vunpack.c.l.b16 %v1065
  %v1130 = vunpack.c.l.b16 %v1066
  %v1131 = vunpack.c.l.b16 %v1067
  %v1132 = vunpack.c.l.b16 %v1068
  %v1133 = vunpack.c.l.b16 %v1069
  %v1134 = vunpack.c.l.b16 %v1070
  %v1135 = vunpack.c.l.b16 %v1071
  %v1136 = vpack.c.b16 %v1105, %v1104
  %v1137 = vpack.c.b16 %v1107, %v1106
  %v1138 = vpack.c.b16 %v1109, %v1108
  %v1139 = vpack.c.b16 %v1111, %v1110
  %v1140 = vpack.c.b16 %v1113, %v1112
  %v1141 = vpack.c.b16 %v1115, %v1114
  %v1142 = vpack.c.b16 %v1117, %v1116
  %v1143 = vpack.c.b16 %v1119, %v1118
  %v1144 = vpack.c.b16 %v1121, %v1120
  %v1145 = vpack.c.b16 %v1123, %v1122
  %v1146 = vpack.c.b16 %v1125, %v1124
  %v1147 = vpack.c.b16 %v1127, %v1126
  %v1148 = vpack.c.b16 %v1129, %v1128
  %v1149 = vpack.c.b16 %v1131, %v1130
  %v1150 = vpack.c.b16 %v1133, %v1132
  %v1151 = vpack.c.b16 %v1135, %v1134
  %1168 = vmatpush.bf16.msra.mxu0 %v1143
  %1169 = vmatpush.bf16.msra.mxu0 %v1142
  %1170 = vmatpush.bf16.msra.mxu0 %v1141
  %1171 = vmatpush.bf16.msra.mxu0 %v1140
  %1172 = vmatpush.bf16.msra.mxu0 %v1139
  %1173 = vmatpush.bf16.msra.mxu0 %v1138
  %1174 = vmatpush.bf16.msra.mxu0 %v1137
  %1175 = vmatpush.bf16.msra.mxu0 %v1136
  %1176 = vmatmul.bf16.gmra.mxu0 %v1035
  %v1177 = vpop.f32.mrf.mxu0
  %v1178 = vadd.f32 0.0, %v1177
  %v1179 = vpop.f32.mrf.mxu0
  %v1180 = vadd.f32 0.0, %v1179
  %1181 = vmatmul.bf16.gmra.mxu0 %v1037
  %v1182 = vpop.f32.mrf.mxu0
  %v1183 = vadd.f32 0.0, %v1182
  %v1184 = vpop.f32.mrf.mxu0
  %v1185 = vadd.f32 0.0, %v1184
  %1186 = vdwg.mxu0
  %1187 = vmatpush.bf16.msra.mxu0 %v1151
  %1188 = vmatpush.bf16.msra.mxu0 %v1150
  %1189 = vmatpush.bf16.msra.mxu0 %v1149
  %1190 = vmatpush.bf16.msra.mxu0 %v1148
  %1191 = vmatpush.bf16.msra.mxu0 %v1147
  %1192 = vmatpush.bf16.msra.mxu0 %v1146
  %1193 = vmatpush.bf16.msra.mxu0 %v1145
  %1194 = vmatpush.bf16.msra.mxu0 %v1144
  %1195 = vmatmul.bf16.gmra.mxu0 %v1036
  %v1196 = vpop.f32.mrf.mxu0
  %v1197 = vadd.f32 %v1178, %v1196
  %v1198 = vpop.f32.mrf.mxu0
  %v1199 = vadd.f32 %v1180, %v1198
  %1200 = vmatmul.bf16.gmra.mxu0 %v1038
  %v1201 = vpop.f32.mrf.mxu0
  %v1202 = vadd.f32 %v1183, %v1201
  %v1203 = vpop.f32.mrf.mxu0
  %v1204 = vadd.f32 %v1185, %v1203
  %1205 = vdwg.mxu0
  %v1206 = vadd.f32 %v1026, %v1197
  %v1207 = vadd.f32 %v1028, %v1199
  %v1208 = vadd.f32 %v1031, %v1202
  %v1209 = vadd.f32 %v1033, %v1204
  %v1210 = vld [vmem:[%s7] sm:$0x1]
  %v1212 = vperm.slane %v1210, 0
  %v1214 = vadd.f32 %v1206, %v1212
  %v1215 = vadd.f32 %v1207, %v1212
  %v1216 = vadd.f32 %v1208, %v1212
  %v1217 = vadd.f32 %v1209, %v1212
  %v1218 = vadd.f32 %v1214, %v1215
  %v1219 = vadd.f32 %v1218, %v1216
  %v1220 = vadd.f32 %v1219, %v1217
  %v1221 = vrot.slane %v1220, 4
  %v1222 = vadd.f32 %v1220, %v1221
  %v1223 = vrot.slane %v1222, 2
  %v1224 = vadd.f32 %v1222, %v1223
  %v1225 = vrot.slane %v1224, 1
  %v1226 = vadd.f32 %v1224, %v1225
  %v1227 = vmul.f32 %v1226, 0.03125
  %v1228 = vmul.f32 %v1214, %v1214
  %v1229 = vmul.f32 %v1215, %v1215
  %v1230 = vmul.f32 %v1216, %v1216
  %v1231 = vmul.f32 %v1217, %v1217
  %v1232 = vadd.f32 %v1228, %v1229
  %v1233 = vadd.f32 %v1232, %v1230
  %v1234 = vadd.f32 %v1233, %v1231
  %v1235 = vrot.slane %v1234, 4
  %v1236 = vadd.f32 %v1234, %v1235
  %v1237 = vrot.slane %v1236, 2
  %v1238 = vadd.f32 %v1236, %v1237
  %v1239 = vrot.slane %v1238, 1
  %v1240 = vadd.f32 %v1238, %v1239
  %v1241 = vmul.f32 %v1240, 0.03125
  %v1242 = vmul.f32 %v1227, %v1227
  %v1243 = vsub.f32 %v1241, %v1242
  %v1244 = vsub.f32 %v1214, %v1227
  %v1245 = vsub.f32 %v1215, %v1227
  %v1246 = vsub.f32 %v1216, %v1227
  %v1247 = vsub.f32 %v1217, %v1227
  %v1248 = vadd.f32 %v1243, 1e-05
  %v1249 = vrsqrt.pop %v1248
  %v1250 = vmul.f32 %v1249, %v1248
  %v1251 = vmul.f32 %v1250, %v1249
  %v1252 = vmul.f32 0.5, %v1251
  %v1253 = vsub.f32 1.5, %v1252
  %v1254 = vmul.f32 %v1249, %v1253
  %vm1255 = vweird.f32 %v1248
  %vm1256 = vweird.f32 %v1249
  %vm1257 = vmor %vm1255, %vm1256
  %v1258 = vsel %vm1257, %v1249, %v1254
  %v1259 = vmul.f32 %v1244, %v1258
  %v1260 = vmul.f32 %v1245, %v1258
  %v1261 = vmul.f32 %v1246, %v1258
  %v1262 = vmul.f32 %v1247, %v1258
  %v1263 = vmul.f32 %v1259, 0.2
  %v1264 = vmul.f32 %v1260, 0.2
  %v1265 = vmul.f32 %v1261, 0.2
  %v1266 = vmul.f32 %v1262, 0.2
  %v1267 = vmax.f32 %v1259, %v1263
  %v1268 = vmax.f32 %v1260, %v1264
  %v1269 = vmax.f32 %v1261, %v1265
  %v1270 = vmax.f32 %v1262, %v1266
  %v1271 = vrot.slane %v1267, 7
  %v1272 = vrot.slane %v1268, 7
  %v1273 = vrot.slane %v1269, 7
  %v1274 = vrot.slane %v1270, 7
  %v1275 = vsel %vm211, %v1273, %v1274
  %v1276 = vsel %vm211, %v1272, %v1273
  %v1277 = vsel %vm211, %v1271, %v1272
  %v1278 = vsel %vm211, %v1274, %v1271
  %v1279 = vmul.f32 %v1278, %v123
  %v1280 = vmul.f32 %v1277, %v124
  %v1281 = vmul.f32 %v1276, %v125
  %v1282 = vmul.f32 %v1275, %v126
  %v1283 = vrot.slane %v1267, 1
  %v1284 = vrot.slane %v1268, 1
  %v1285 = vrot.slane %v1269, 1
  %v1286 = vrot.slane %v1270, 1
  %v1287 = vsel %vm224, %v1285, %v1286
  %v1288 = vsel %vm224, %v1284, %v1285
  %v1289 = vsel %vm224, %v1283, %v1284
  %v1290 = vsel %vm224, %v1286, %v1283
  %v1291 = vmul.f32 %v1289, %v135
  %v1292 = vmul.f32 %v1288, %v136
  %v1293 = vmul.f32 %v1287, %v137
  %v1294 = vmul.f32 %v1290, %v138
  %v1295 = vpack.c.bf16 %v1280, %v1279
  %v1296 = vpack.c.bf16 %v1282, %v1281
  %v1297 = vld [vmem:[%s8] sm:$0xf]
  %v1298 = vld [vmem:[%s8 + $0x4] sm:$0xf]
  %v1299 = vld [vmem:[%s8 + $0x8] sm:$0xf]
  %v1300 = vld [vmem:[%s8 + $0xc] sm:$0xf]
  %v1301 = vld [vmem:[%s8 + $0x10] sm:$0xf]
  %v1302 = vld [vmem:[%s8 + $0x14] sm:$0xf]
  %v1303 = vld [vmem:[%s8 + $0x18] sm:$0xf]
  %v1304 = vld [vmem:[%s8 + $0x1c] sm:$0xf]
  %v1305 = vld [vmem:[%s8 + $0x20] sm:$0xf]
  %v1306 = vld [vmem:[%s8 + $0x24] sm:$0xf]
  %v1307 = vld [vmem:[%s8 + $0x28] sm:$0xf]
  %v1308 = vld [vmem:[%s8 + $0x2c] sm:$0xf]
  %v1309 = vld [vmem:[%s8 + $0x30] sm:$0xf]
  %v1310 = vld [vmem:[%s8 + $0x34] sm:$0xf]
  %v1311 = vld [vmem:[%s8 + $0x38] sm:$0xf]
  %v1312 = vld [vmem:[%s8 + $0x3c] sm:$0xf]
  %v1313 = vpack.c.bf16 %v1268, %v1267
  %v1314 = vpack.c.bf16 %v1270, %v1269
  %s1315 = scalar_lea.vmem %s8, 64
  %v1316 = vld [vmem:[%s1315] sm:$0xf]
  %v1317 = vld [vmem:[%s1315 + $0x4] sm:$0xf]
  %v1318 = vld [vmem:[%s1315 + $0x8] sm:$0xf]
  %v1319 = vld [vmem:[%s1315 + $0xc] sm:$0xf]
  %v1320 = vld [vmem:[%s1315 + $0x10] sm:$0xf]
  %v1321 = vld [vmem:[%s1315 + $0x14] sm:$0xf]
  %v1322 = vld [vmem:[%s1315 + $0x18] sm:$0xf]
  %v1323 = vld [vmem:[%s1315 + $0x1c] sm:$0xf]
  %v1324 = vld [vmem:[%s1315 + $0x20] sm:$0xf]
  %v1325 = vld [vmem:[%s1315 + $0x24] sm:$0xf]
  %v1326 = vld [vmem:[%s1315 + $0x28] sm:$0xf]
  %v1327 = vld [vmem:[%s1315 + $0x2c] sm:$0xf]
  %v1328 = vld [vmem:[%s1315 + $0x30] sm:$0xf]
  %v1329 = vld [vmem:[%s1315 + $0x34] sm:$0xf]
  %v1330 = vld [vmem:[%s1315 + $0x38] sm:$0xf]
  %v1331 = vld [vmem:[%s1315 + $0x3c] sm:$0xf]
  %v1348 = vunpack.c.l.b16 %v1316
  %v1349 = vunpack.c.l.b16 %v1317
  %v1350 = vunpack.c.l.b16 %v1318
  %v1351 = vunpack.c.l.b16 %v1319
  %v1352 = vunpack.c.l.b16 %v1320
  %v1353 = vunpack.c.l.b16 %v1321
  %v1354 = vunpack.c.l.b16 %v1322
  %v1355 = vunpack.c.l.b16 %v1323
  %v1356 = vunpack.c.l.b16 %v1324
  %v1357 = vunpack.c.l.b16 %v1325
  %v1358 = vunpack.c.l.b16 %v1326
  %v1359 = vunpack.c.l.b16 %v1327
  %v1360 = vunpack.c.l.b16 %v1328
  %v1361 = vunpack.c.l.b16 %v1329
  %v1362 = vunpack.c.l.b16 %v1330
  %v1363 = vunpack.c.l.b16 %v1331
  %v1364 = vpack.c.b16 %v1349, %v1348
  %v1365 = vpack.c.b16 %v1351, %v1350
  %v1366 = vpack.c.b16 %v1353, %v1352
  %v1367 = vpack.c.b16 %v1355, %v1354
  %v1368 = vpack.c.b16 %v1357, %v1356
  %v1369 = vpack.c.b16 %v1359, %v1358
  %v1370 = vpack.c.b16 %v1361, %v1360
  %v1371 = vpack.c.b16 %v1363, %v1362
  %1380 = vmatpush.bf16.msra.mxu0 %v1371
  %1381 = vmatpush.bf16.msra.mxu0 %v1370
  %1382 = vmatpush.bf16.msra.mxu0 %v1369
  %1383 = vmatpush.bf16.msra.mxu0 %v1368
  %1384 = vmatpush.bf16.msra.mxu0 %v1367
  %1385 = vmatpush.bf16.msra.mxu0 %v1366
  %1386 = vmatpush.bf16.msra.mxu0 %v1365
  %1387 = vmatpush.bf16.msra.mxu0 %v1364
  %1388 = vmatmul.bf16.gmra.mxu0 %v1313
  %v1389 = vpop.f32.mrf.mxu0
  %v1390 = vadd.f32 0.0, %v1389
  %v1391 = vpop.f32.mrf.mxu0
  %v1392 = vadd.f32 0.0, %v1391
  %1393 = vmatmul.bf16.gmra.mxu0 %v1314
  %v1394 = vpop.f32.mrf.mxu0
  %v1395 = vadd.f32 0.0, %v1394
  %v1396 = vpop.f32.mrf.mxu0
  %v1397 = vadd.f32 0.0, %v1396
  %1398 = vdwg.mxu0
  %v1415 = vunpack.c.l.b16 %v1297
  %v1416 = vunpack.c.l.b16 %v1298
  %v1417 = vunpack.c.l.b16 %v1299
  %v1418 = vunpack.c.l.b16 %v1300
  %v1419 = vunpack.c.l.b16 %v1301
  %v1420 = vunpack.c.l.b16 %v1302
  %v1421 = vunpack.c.l.b16 %v1303
  %v1422 = vunpack.c.l.b16 %v1304
  %v1423 = vunpack.c.l.b16 %v1305
  %v1424 = vunpack.c.l.b16 %v1306
  %v1425 = vunpack.c.l.b16 %v1307
  %v1426 = vunpack.c.l.b16 %v1308
  %v1427 = vunpack.c.l.b16 %v1309
  %v1428 = vunpack.c.l.b16 %v1310
  %v1429 = vunpack.c.l.b16 %v1311
  %v1430 = vunpack.c.l.b16 %v1312
  %v1431 = vpack.c.b16 %v1416, %v1415
  %v1432 = vpack.c.b16 %v1418, %v1417
  %v1433 = vpack.c.b16 %v1420, %v1419
  %v1434 = vpack.c.b16 %v1422, %v1421
  %v1435 = vpack.c.b16 %v1424, %v1423
  %v1436 = vpack.c.b16 %v1426, %v1425
  %v1437 = vpack.c.b16 %v1428, %v1427
  %v1438 = vpack.c.b16 %v1430, %v1429
  %1447 = vmatpush.bf16.msra.mxu0 %v1438
  %1448 = vmatpush.bf16.msra.mxu0 %v1437
  %1449 = vmatpush.bf16.msra.mxu0 %v1436
  %1450 = vmatpush.bf16.msra.mxu0 %v1435
  %1451 = vmatpush.bf16.msra.mxu0 %v1434
  %1452 = vmatpush.bf16.msra.mxu0 %v1433
  %1453 = vmatpush.bf16.msra.mxu0 %v1432
  %1454 = vmatpush.bf16.msra.mxu0 %v1431
  %1455 = vmatmul.bf16.gmra.mxu0 %v1295
  %v1456 = vpop.f32.mrf.mxu0
  %v1457 = vadd.f32 %v1390, %v1456
  %v1458 = vpop.f32.mrf.mxu0
  %v1459 = vadd.f32 %v1392, %v1458
  %1460 = vmatmul.bf16.gmra.mxu0 %v1296
  %v1461 = vpop.f32.mrf.mxu0
  %v1462 = vadd.f32 %v1395, %v1461
  %v1463 = vpop.f32.mrf.mxu0
  %v1464 = vadd.f32 %v1397, %v1463
  %1465 = vdwg.mxu0
  %v1466 = vpack.c.bf16 %v1292, %v1291
  %v1467 = vpack.c.bf16 %v1294, %v1293
  %s1468 = scalar_lea.vmem %s8, 128
  %v1469 = vld [vmem:[%s1468] sm:$0xf]
  %v1470 = vld [vmem:[%s1468 + $0x4] sm:$0xf]
  %v1471 = vld [vmem:[%s1468 + $0x8] sm:$0xf]
  %v1472 = vld [vmem:[%s1468 + $0xc] sm:$0xf]
  %v1473 = vld [vmem:[%s1468 + $0x10] sm:$0xf]
  %v1474 = vld [vmem:[%s1468 + $0x14] sm:$0xf]
  %v1475 = vld [vmem:[%s1468 + $0x18] sm:$0xf]
  %v1476 = vld [vmem:[%s1468 + $0x1c] sm:$0xf]
  %v1477 = vld [vmem:[%s1468 + $0x20] sm:$0xf]
  %v1478 = vld [vmem:[%s1468 + $0x24] sm:$0xf]
  %v1479 = vld [vmem:[%s1468 + $0x28] sm:$0xf]
  %v1480 = vld [vmem:[%s1468 + $0x2c] sm:$0xf]
  %v1481 = vld [vmem:[%s1468 + $0x30] sm:$0xf]
  %v1482 = vld [vmem:[%s1468 + $0x34] sm:$0xf]
  %v1483 = vld [vmem:[%s1468 + $0x38] sm:$0xf]
  %v1484 = vld [vmem:[%s1468 + $0x3c] sm:$0xf]
  %v1501 = vunpack.c.l.b16 %v1469
  %v1502 = vunpack.c.l.b16 %v1470
  %v1503 = vunpack.c.l.b16 %v1471
  %v1504 = vunpack.c.l.b16 %v1472
  %v1505 = vunpack.c.l.b16 %v1473
  %v1506 = vunpack.c.l.b16 %v1474
  %v1507 = vunpack.c.l.b16 %v1475
  %v1508 = vunpack.c.l.b16 %v1476
  %v1509 = vunpack.c.l.b16 %v1477
  %v1510 = vunpack.c.l.b16 %v1478
  %v1511 = vunpack.c.l.b16 %v1479
  %v1512 = vunpack.c.l.b16 %v1480
  %v1513 = vunpack.c.l.b16 %v1481
  %v1514 = vunpack.c.l.b16 %v1482
  %v1515 = vunpack.c.l.b16 %v1483
  %v1516 = vunpack.c.l.b16 %v1484
  %v1517 = vpack.c.b16 %v1502, %v1501
  %v1518 = vpack.c.b16 %v1504, %v1503
  %v1519 = vpack.c.b16 %v1506, %v1505
  %v1520 = vpack.c.b16 %v1508, %v1507
  %v1521 = vpack.c.b16 %v1510, %v1509
  %v1522 = vpack.c.b16 %v1512, %v1511
  %v1523 = vpack.c.b16 %v1514, %v1513
  %v1524 = vpack.c.b16 %v1516, %v1515
  %1533 = vmatpush.bf16.msra.mxu0 %v1524
  %1534 = vmatpush.bf16.msra.mxu0 %v1523
  %1535 = vmatpush.bf16.msra.mxu0 %v1522
  %1536 = vmatpush.bf16.msra.mxu0 %v1521
  %1537 = vmatpush.bf16.msra.mxu0 %v1520
  %1538 = vmatpush.bf16.msra.mxu0 %v1519
  %1539 = vmatpush.bf16.msra.mxu0 %v1518
  %1540 = vmatpush.bf16.msra.mxu0 %v1517
  %1541 = vmatmul.bf16.gmra.mxu0 %v1466
  %v1542 = vpop.f32.mrf.mxu0
  %v1543 = vadd.f32 0.0, %v1542
  %v1544 = vpop.f32.mrf.mxu0
  %v1545 = vadd.f32 0.0, %v1544
  %1546 = vmatmul.bf16.gmra.mxu0 %v1467
  %v1547 = vpop.f32.mrf.mxu0
  %v1548 = vadd.f32 0.0, %v1547
  %v1549 = vpop.f32.mrf.mxu0
  %v1550 = vadd.f32 0.0, %v1549
  %1551 = vdwg.mxu0
  %v1552 = vadd.f32 %v1457, %v1543
  %v1553 = vadd.f32 %v1459, %v1545
  %v1554 = vadd.f32 %v1462, %v1548
  %v1555 = vadd.f32 %v1464, %v1550
  %v1556 = vld [vmem:[%s9] sm:$0x1]
  %v1558 = vperm.slane %v1556, 0
  %v1560 = vadd.f32 %v1552, %v1558
  %v1561 = vadd.f32 %v1553, %v1558
  %v1562 = vadd.f32 %v1554, %v1558
  %v1563 = vadd.f32 %v1555, %v1558
  %1564 = vst [vmem:[%s19] sm:$0xff] %v1560
  %1565 = vst [vmem:[%s19 + $0x8] sm:$0xff] %v1561
  %1566 = vst [vmem:[%s19 + $0x10] sm:$0xff] %v1562
  %1567 = vst [vmem:[%s19 + $0x18] sm:$0xff] %v1563
  %1568 = vrot.lane.b32.xlu0 %v1560, 96
  %v1569 = vpop.permute.xlu0 %1568
  %1570 = vrot.lane.b32.xlu0 %v1561, 96
  %v1571 = vpop.permute.xlu0 %1570
  %1572 = vrot.lane.b32.xlu0 %v1562, 96
  %v1573 = vpop.permute.xlu0 %1572
  %1574 = vrot.lane.b32.xlu0 %v1563, 96
  %v1575 = vpop.permute.xlu0 %1574
  %v1576 = vld [vmem:[%s1] sm:$0xff]
  %v1577 = vld [vmem:[%s1 + $0x8] sm:$0xff]
  %v1578 = vld [vmem:[%s1 + $0x10] sm:$0xff]
  %v1579 = vld [vmem:[%s1 + $0x18] sm:$0xff]
  %v1580 = vmul.f32 %v1569, 0.5
  %v1581 = vmul.f32 %v1571, 0.5
  %v1582 = vmul.f32 %v1573, 0.5
  %v1583 = vmul.f32 %v1575, 0.5
  %v1584 = vmul.f32 %v1580, 1.442695
  %v1585 = vpow.pop %v1584
  %v1586 = vmul.f32 %v1581, 1.442695
  %v1587 = vpow.pop %v1586
  %v1588 = vmul.f32 %v1582, 1.442695
  %v1589 = vpow.pop %v1588
  %v1590 = vmul.f32 %v1583, 1.442695
  %v1591 = vpow.pop %v1590
  %v1592 = vmul.f32 %v1576, %v1585
  %v1593 = vmul.f32 %v1577, %v1587
  %v1594 = vmul.f32 %v1578, %v1589
  %v1595 = vmul.f32 %v1579, %v1591
  %v1596 = vadd.f32 %v1560, %v1592
  %v1597 = vadd.f32 %v1561, %v1593
  %v1598 = vadd.f32 %v1562, %v1594
  %v1599 = vadd.f32 %v1563, %v1595
  %v1600 = vrot.slane %v1596, 7
  %v1601 = vrot.slane %v1597, 7
  %v1602 = vrot.slane %v1598, 7
  %v1603 = vrot.slane %v1599, 7
  %v1604 = vsel %vm211, %v1602, %v1603
  %v1605 = vsel %vm211, %v1601, %v1602
  %v1606 = vsel %vm211, %v1600, %v1601
  %v1607 = vsel %vm211, %v1603, %v1600
  %v1608 = vmul.f32 %v1607, %v123
  %v1609 = vmul.f32 %v1606, %v124
  %v1610 = vmul.f32 %v1605, %v125
  %v1611 = vmul.f32 %v1604, %v126
  %v1612 = vrot.slane %v1596, 1
  %v1613 = vrot.slane %v1597, 1
  %v1614 = vrot.slane %v1598, 1
  %v1615 = vrot.slane %v1599, 1
  %v1616 = vsel %vm224, %v1614, %v1615
  %v1617 = vsel %vm224, %v1613, %v1614
  %v1618 = vsel %vm224, %v1612, %v1613
  %v1619 = vsel %vm224, %v1615, %v1612
  %v1620 = vmul.f32 %v1618, %v135
  %v1621 = vmul.f32 %v1617, %v136
  %v1622 = vmul.f32 %v1616, %v137
  %v1623 = vmul.f32 %v1619, %v138
  %v1624 = vpack.c.bf16 %v1609, %v1608
  %v1625 = vpack.c.bf16 %v1611, %v1610
  %v1626 = vld [vmem:[%s10] sm:$0xf]
  %v1627 = vld [vmem:[%s10 + $0x4] sm:$0xf]
  %v1628 = vld [vmem:[%s10 + $0x8] sm:$0xf]
  %v1629 = vld [vmem:[%s10 + $0xc] sm:$0xf]
  %v1630 = vpack.c.bf16 %v1597, %v1596
  %v1631 = vpack.c.bf16 %v1599, %v1598
  %s1632 = scalar_lea.vmem %s10, 16
  %v1633 = vld [vmem:[%s1632] sm:$0xf]
  %v1634 = vld [vmem:[%s1632 + $0x4] sm:$0xf]
  %v1635 = vld [vmem:[%s1632 + $0x8] sm:$0xf]
  %v1636 = vld [vmem:[%s1632 + $0xc] sm:$0xf]
  %v1641 = vunpack.c.l.b16 %v1633
  %v1642 = vunpack.c.l.b16 %v1634
  %v1643 = vunpack.c.l.b16 %v1635
  %v1644 = vunpack.c.l.b16 %v1636
  %v1645 = vpack.c.b16 %v1642, %v1641
  %v1646 = vpack.c.b16 %v1644, %v1643
  %vm1649 = vcmask 261120
  %v1651 = vsel %vm1649, %v1630, 0
  %v1654 = vsel %vm1649, %v1631, 0
  %1656 = vmatpush.bf16.msra.mxu0 0
  %1657 = vmatpush.bf16.msra.mxu0 0
  %1658 = vmatpush.bf16.msra.mxu0 0
  %1659 = vmatpush.bf16.msra.mxu0 0
  %1660 = vmatpush.bf16.msra.mxu0 0
  %1661 = vmatpush.bf16.msra.mxu0 0
  %1662 = vmatpush.bf16.msra.mxu0 %v1646
  %1663 = vmatpush.bf16.msra.mxu0 %v1645
  %1664 = vmatmul.bf16.gmra.mxu0 %v1651
  %v1665 = vpop.f32.mrf.mxu0
  %v1666 = vadd.f32 0.0, %v1665
  %v1667 = vpop.f32.mrf.mxu0
  %v1668 = vadd.f32 0.0, %v1667
  %1669 = vmatmul.bf16.gmra.mxu0 %v1654
  %v1670 = vpop.f32.mrf.mxu0
  %v1671 = vadd.f32 0.0, %v1670
  %v1672 = vpop.f32.mrf.mxu0
  %v1673 = vadd.f32 0.0, %v1672
  %1674 = vdwg.mxu0
  %v1679 = vunpack.c.l.b16 %v1626
  %v1680 = vunpack.c.l.b16 %v1627
  %v1681 = vunpack.c.l.b16 %v1628
  %v1682 = vunpack.c.l.b16 %v1629
  %v1683 = vpack.c.b16 %v1680, %v1679
  %v1684 = vpack.c.b16 %v1682, %v1681
  %v1688 = vsel %vm1649, %v1624, 0
  %v1691 = vsel %vm1649, %v1625, 0
  %1693 = vmatpush.bf16.msra.mxu0 0
  %1694 = vmatpush.bf16.msra.mxu0 0
  %1695 = vmatpush.bf16.msra.mxu0 0
  %1696 = vmatpush.bf16.msra.mxu0 0
  %1697 = vmatpush.bf16.msra.mxu0 0
  %1698 = vmatpush.bf16.msra.mxu0 0
  %1699 = vmatpush.bf16.msra.mxu0 %v1684
  %1700 = vmatpush.bf16.msra.mxu0 %v1683
  %1701 = vmatmul.bf16.gmra.mxu0 %v1688
  %v1702 = vpop.f32.mrf.mxu0
  %v1703 = vadd.f32 %v1666, %v1702
  %v1704 = vpop.f32.mrf.mxu0
  %v1705 = vadd.f32 %v1668, %v1704
  %1706 = vmatmul.bf16.gmra.mxu0 %v1691
  %v1707 = vpop.f32.mrf.mxu0
  %v1708 = vadd.f32 %v1671, %v1707
  %v1709 = vpop.f32.mrf.mxu0
  %v1710 = vadd.f32 %v1673, %v1709
  %1711 = vdwg.mxu0
  %v1712 = vpack.c.bf16 %v1621, %v1620
  %v1713 = vpack.c.bf16 %v1623, %v1622
  %s1714 = scalar_lea.vmem %s10, 32
  %v1715 = vld [vmem:[%s1714] sm:$0xf]
  %v1716 = vld [vmem:[%s1714 + $0x4] sm:$0xf]
  %v1717 = vld [vmem:[%s1714 + $0x8] sm:$0xf]
  %v1718 = vld [vmem:[%s1714 + $0xc] sm:$0xf]
  %v1723 = vunpack.c.l.b16 %v1715
  %v1724 = vunpack.c.l.b16 %v1716
  %v1725 = vunpack.c.l.b16 %v1717
  %v1726 = vunpack.c.l.b16 %v1718
  %v1727 = vpack.c.b16 %v1724, %v1723
  %v1728 = vpack.c.b16 %v1726, %v1725
  %v1732 = vsel %vm1649, %v1712, 0
  %v1735 = vsel %vm1649, %v1713, 0
  %1737 = vmatpush.bf16.msra.mxu0 0
  %1738 = vmatpush.bf16.msra.mxu0 0
  %1739 = vmatpush.bf16.msra.mxu0 0
  %1740 = vmatpush.bf16.msra.mxu0 0
  %1741 = vmatpush.bf16.msra.mxu0 0
  %1742 = vmatpush.bf16.msra.mxu0 0
  %1743 = vmatpush.bf16.msra.mxu0 %v1728
  %1744 = vmatpush.bf16.msra.mxu0 %v1727
  %1745 = vmatmul.bf16.gmra.mxu0 %v1732
  %v1746 = vpop.f32.mrf.mxu0
  %v1747 = vadd.f32 0.0, %v1746
  %v1748 = vpop.f32.mrf.mxu0
  %v1749 = vadd.f32 0.0, %v1748
  %1750 = vmatmul.bf16.gmra.mxu0 %v1735
  %v1751 = vpop.f32.mrf.mxu0
  %v1752 = vadd.f32 0.0, %v1751
  %v1753 = vpop.f32.mrf.mxu0
  %v1754 = vadd.f32 0.0, %v1753
  %1755 = vdwg.mxu0
  %v1756 = vadd.f32 %v1703, %v1747
  %v1757 = vadd.f32 %v1705, %v1749
  %v1758 = vadd.f32 %v1708, %v1752
  %v1759 = vadd.f32 %v1710, %v1754
  %v1760 = vld [vmem:[%s11] sm:$0x1]
  %v1762 = vperm.slane %v1760, 0
  %v1764 = vadd.f32 %v1756, %v1762
  %v1765 = vadd.f32 %v1757, %v1762
  %v1766 = vadd.f32 %v1758, %v1762
  %v1767 = vadd.f32 %v1759, %v1762
  %v1768 = vadd.f32 %v1764, %v1765
  %v1769 = vadd.f32 %v1768, %v1766
  %v1770 = vadd.f32 %v1769, %v1767
  %v1771 = vrot.slane %v1770, 4
  %v1772 = vadd.f32 %v1770, %v1771
  %v1773 = vrot.slane %v1772, 2
  %v1774 = vadd.f32 %v1772, %v1773
  %v1775 = vrot.slane %v1774, 1
  %v1776 = vadd.f32 %v1774, %v1775
  %v1777 = vmul.f32 %v1776, 0.03125
  %v1778 = vmul.f32 %v1764, %v1764
  %v1779 = vmul.f32 %v1765, %v1765
  %v1780 = vmul.f32 %v1766, %v1766
  %v1781 = vmul.f32 %v1767, %v1767
  %v1782 = vadd.f32 %v1778, %v1779
  %v1783 = vadd.f32 %v1782, %v1780
  %v1784 = vadd.f32 %v1783, %v1781
  %v1785 = vrot.slane %v1784, 4
  %v1786 = vadd.f32 %v1784, %v1785
  %v1787 = vrot.slane %v1786, 2
  %v1788 = vadd.f32 %v1786, %v1787
  %v1789 = vrot.slane %v1788, 1
  %v1790 = vadd.f32 %v1788, %v1789
  %v1791 = vmul.f32 %v1790, 0.03125
  %v1792 = vmul.f32 %v1777, %v1777
  %v1793 = vsub.f32 %v1791, %v1792
  %v1794 = vsub.f32 %v1764, %v1777
  %v1795 = vsub.f32 %v1765, %v1777
  %v1796 = vsub.f32 %v1766, %v1777
  %v1797 = vsub.f32 %v1767, %v1777
  %v1798 = vadd.f32 %v1793, 1e-05
  %v1799 = vrsqrt.pop %v1798
  %v1800 = vmul.f32 %v1799, %v1798
  %v1801 = vmul.f32 %v1800, %v1799
  %v1802 = vmul.f32 0.5, %v1801
  %v1803 = vsub.f32 1.5, %v1802
  %v1804 = vmul.f32 %v1799, %v1803
  %vm1805 = vweird.f32 %v1798
  %vm1806 = vweird.f32 %v1799
  %vm1807 = vmor %vm1805, %vm1806
  %v1808 = vsel %vm1807, %v1799, %v1804
  %v1809 = vmul.f32 %v1794, %v1808
  %v1810 = vmul.f32 %v1795, %v1808
  %v1811 = vmul.f32 %v1796, %v1808
  %v1812 = vmul.f32 %v1797, %v1808
  %v1813 = vmul.f32 %v1809, 0.2
  %v1814 = vmul.f32 %v1810, 0.2
  %v1815 = vmul.f32 %v1811, 0.2
  %v1816 = vmul.f32 %v1812, 0.2
  %v1817 = vmax.f32 %v1809, %v1813
  %v1818 = vmax.f32 %v1810, %v1814
  %v1819 = vmax.f32 %v1811, %v1815
  %v1820 = vmax.f32 %v1812, %v1816
  %v1821 = vrot.slane %v1817, 7
  %v1822 = vrot.slane %v1818, 7
  %v1823 = vrot.slane %v1819, 7
  %v1824 = vrot.slane %v1820, 7
  %v1825 = vsel %vm211, %v1823, %v1824
  %v1826 = vsel %vm211, %v1822, %v1823
  %v1827 = vsel %vm211, %v1821, %v1822
  %v1828 = vsel %vm211, %v1824, %v1821
  %v1829 = vmul.f32 %v1828, %v123
  %v1830 = vmul.f32 %v1827, %v124
  %v1831 = vmul.f32 %v1826, %v125
  %v1832 = vmul.f32 %v1825, %v126
  %v1833 = vrot.slane %v1817, 1
  %v1834 = vrot.slane %v1818, 1
  %v1835 = vrot.slane %v1819, 1
  %v1836 = vrot.slane %v1820, 1
  %v1837 = vsel %vm224, %v1835, %v1836
  %v1838 = vsel %vm224, %v1834, %v1835
  %v1839 = vsel %vm224, %v1833, %v1834
  %v1840 = vsel %vm224, %v1836, %v1833
  %v1841 = vmul.f32 %v1839, %v135
  %v1842 = vmul.f32 %v1838, %v136
  %v1843 = vmul.f32 %v1837, %v137
  %v1844 = vmul.f32 %v1840, %v138
  %v1845 = vpack.c.bf16 %v1830, %v1829
  %v1846 = vpack.c.bf16 %v1832, %v1831
  %v1847 = vld [vmem:[%s12] sm:$0xff]
  %v1848 = vld [vmem:[%s12 + $0x8] sm:$0xff]
  %v1849 = vld [vmem:[%s12 + $0x10] sm:$0xff]
  %v1850 = vld [vmem:[%s12 + $0x18] sm:$0xff]
  %v1851 = vld [vmem:[%s12 + $0x20] sm:$0xff]
  %v1852 = vld [vmem:[%s12 + $0x28] sm:$0xff]
  %v1853 = vld [vmem:[%s12 + $0x30] sm:$0xff]
  %v1854 = vld [vmem:[%s12 + $0x38] sm:$0xff]
  %v1855 = vld [vmem:[%s12 + $0x40] sm:$0xff]
  %v1856 = vld [vmem:[%s12 + $0x48] sm:$0xff]
  %v1857 = vld [vmem:[%s12 + $0x50] sm:$0xff]
  %v1858 = vld [vmem:[%s12 + $0x58] sm:$0xff]
  %v1859 = vld [vmem:[%s12 + $0x60] sm:$0xff]
  %v1860 = vld [vmem:[%s12 + $0x68] sm:$0xff]
  %v1861 = vld [vmem:[%s12 + $0x70] sm:$0xff]
  %v1862 = vld [vmem:[%s12 + $0x78] sm:$0xff]
  %v1863 = vpack.c.bf16 %v1818, %v1817
  %v1864 = vpack.c.bf16 %v1820, %v1819
  %s1865 = scalar_lea.vmem %s12, 128
  %v1866 = vld [vmem:[%s1865] sm:$0xff]
  %v1867 = vld [vmem:[%s1865 + $0x8] sm:$0xff]
  %v1868 = vld [vmem:[%s1865 + $0x10] sm:$0xff]
  %v1869 = vld [vmem:[%s1865 + $0x18] sm:$0xff]
  %v1870 = vld [vmem:[%s1865 + $0x20] sm:$0xff]
  %v1871 = vld [vmem:[%s1865 + $0x28] sm:$0xff]
  %v1872 = vld [vmem:[%s1865 + $0x30] sm:$0xff]
  %v1873 = vld [vmem:[%s1865 + $0x38] sm:$0xff]
  %v1874 = vld [vmem:[%s1865 + $0x40] sm:$0xff]
  %v1875 = vld [vmem:[%s1865 + $0x48] sm:$0xff]
  %v1876 = vld [vmem:[%s1865 + $0x50] sm:$0xff]
  %v1877 = vld [vmem:[%s1865 + $0x58] sm:$0xff]
  %v1878 = vld [vmem:[%s1865 + $0x60] sm:$0xff]
  %v1879 = vld [vmem:[%s1865 + $0x68] sm:$0xff]
  %v1880 = vld [vmem:[%s1865 + $0x70] sm:$0xff]
  %v1881 = vld [vmem:[%s1865 + $0x78] sm:$0xff]
  %v1898 = vunpack.c.l.b16 %v1866
  %v1899 = vunpack.c.h.b16 %v1866
  %v1900 = vunpack.c.l.b16 %v1867
  %v1901 = vunpack.c.h.b16 %v1867
  %v1902 = vunpack.c.l.b16 %v1868
  %v1903 = vunpack.c.h.b16 %v1868
  %v1904 = vunpack.c.l.b16 %v1869
  %v1905 = vunpack.c.h.b16 %v1869
  %v1906 = vunpack.c.l.b16 %v1870
  %v1907 = vunpack.c.h.b16 %v1870
  %v1908 = vunpack.c.l.b16 %v1871
  %v1909 = vunpack.c.h.b16 %v1871
  %v1910 = vunpack.c.l.b16 %v1872
  %v1911 = vunpack.c.h.b16 %v1872
  %v1912 = vunpack.c.l.b16 %v1873
  %v1913 = vunpack.c.h.b16 %v1873
  %v1914 = vunpack.c.l.b16 %v1874
  %v1915 = vunpack.c.h.b16 %v1874
  %v1916 = vunpack.c.l.b16 %v1875
  %v1917 = vunpack.c.h.b16 %v1875
  %v1918 = vunpack.c.l.b16 %v1876
  %v1919 = vunpack.c.h.b16 %v1876
  %v1920 = vunpack.c.l.b16 %v1877
  %v1921 = vunpack.c.h.b16 %v1877
  %v1922 = vunpack.c.l.b16 %v1878
  %v1923 = vunpack.c.h.b16 %v1878
  %v1924 = vunpack.c.l.b16 %v1879
  %v1925 = vunpack.c.h.b16 %v1879
  %v1926 = vunpack.c.l.b16 %v1880
  %v1927 = vunpack.c.h.b16 %v1880
  %v1928 = vunpack.c.l.b16 %v1881
  %v1929 = vunpack.c.h.b16 %v1881
  %v1930 = vpack.c.b16 %v1900, %v1898
  %v1931 = vpack.c.b16 %v1901, %v1899
  %v1932 = vpack.c.b16 %v1904, %v1902
  %v1933 = vpack.c.b16 %v1905, %v1903
  %v1934 = vpack.c.b16 %v1908, %v1906
  %v1935 = vpack.c.b16 %v1909, %v1907
  %v1936 = vpack.c.b16 %v1912, %v1910
  %v1937 = vpack.c.b16 %v1913, %v1911
  %v1938 = vpack.c.b16 %v1916, %v1914
  %v1939 = vpack.c.b16 %v1917, %v1915
  %v1940 = vpack.c.b16 %v1920, %v1918
  %v1941 = vpack.c.b16 %v1921, %v1919
  %v1942 = vpack.c.b16 %v1924, %v1922
  %v1943 = vpack.c.b16 %v1925, %v1923
  %v1944 = vpack.c.b16 %v1928, %v1926
  %v1945 = vpack.c.b16 %v1929, %v1927
  %1962 = vmatpush.bf16.msra.mxu0 %v1944
  %1963 = vmatpush.bf16.msra.mxu0 %v1942
  %1964 = vmatpush.bf16.msra.mxu0 %v1940
  %1965 = vmatpush.bf16.msra.mxu0 %v1938
  %1966 = vmatpush.bf16.msra.mxu0 %v1936
  %1967 = vmatpush.bf16.msra.mxu0 %v1934
  %1968 = vmatpush.bf16.msra.mxu0 %v1932
  %1969 = vmatpush.bf16.msra.mxu0 %v1930
  %1970 = vmatmul.bf16.gmra.mxu0 %v1863
  %v1971 = vpop.f32.mrf.mxu0
  %v1972 = vadd.f32 0.0, %v1971
  %v1973 = vpop.f32.mrf.mxu0
  %v1974 = vadd.f32 0.0, %v1973
  %1975 = vmatmul.bf16.gmra.mxu0 %v1864
  %v1976 = vpop.f32.mrf.mxu0
  %v1977 = vadd.f32 0.0, %v1976
  %v1978 = vpop.f32.mrf.mxu0
  %v1979 = vadd.f32 0.0, %v1978
  %1980 = vdwg.mxu0
  %1981 = vmatpush.bf16.msra.mxu0 %v1945
  %1982 = vmatpush.bf16.msra.mxu0 %v1943
  %1983 = vmatpush.bf16.msra.mxu0 %v1941
  %1984 = vmatpush.bf16.msra.mxu0 %v1939
  %1985 = vmatpush.bf16.msra.mxu0 %v1937
  %1986 = vmatpush.bf16.msra.mxu0 %v1935
  %1987 = vmatpush.bf16.msra.mxu0 %v1933
  %1988 = vmatpush.bf16.msra.mxu0 %v1931
  %1989 = vmatmul.bf16.gmra.mxu0 %v1863
  %v1990 = vpop.f32.mrf.mxu0
  %v1991 = vadd.f32 0.0, %v1990
  %v1992 = vpop.f32.mrf.mxu0
  %v1993 = vadd.f32 0.0, %v1992
  %1994 = vmatmul.bf16.gmra.mxu0 %v1864
  %v1995 = vpop.f32.mrf.mxu0
  %v1996 = vadd.f32 0.0, %v1995
  %v1997 = vpop.f32.mrf.mxu0
  %v1998 = vadd.f32 0.0, %v1997
  %1999 = vdwg.mxu0
  %v2016 = vunpack.c.l.b16 %v1847
  %v2017 = vunpack.c.h.b16 %v1847
  %v2018 = vunpack.c.l.b16 %v1848
  %v2019 = vunpack.c.h.b16 %v1848
  %v2020 = vunpack.c.l.b16 %v1849
  %v2021 = vunpack.c.h.b16 %v1849
  %v2022 = vunpack.c.l.b16 %v1850
  %v2023 = vunpack.c.h.b16 %v1850
  %v2024 = vunpack.c.l.b16 %v1851
  %v2025 = vunpack.c.h.b16 %v1851
  %v2026 = vunpack.c.l.b16 %v1852
  %v2027 = vunpack.c.h.b16 %v1852
  %v2028 = vunpack.c.l.b16 %v1853
  %v2029 = vunpack.c.h.b16 %v1853
  %v2030 = vunpack.c.l.b16 %v1854
  %v2031 = vunpack.c.h.b16 %v1854
  %v2032 = vunpack.c.l.b16 %v1855
  %v2033 = vunpack.c.h.b16 %v1855
  %v2034 = vunpack.c.l.b16 %v1856
  %v2035 = vunpack.c.h.b16 %v1856
  %v2036 = vunpack.c.l.b16 %v1857
  %v2037 = vunpack.c.h.b16 %v1857
  %v2038 = vunpack.c.l.b16 %v1858
  %v2039 = vunpack.c.h.b16 %v1858
  %v2040 = vunpack.c.l.b16 %v1859
  %v2041 = vunpack.c.h.b16 %v1859
  %v2042 = vunpack.c.l.b16 %v1860
  %v2043 = vunpack.c.h.b16 %v1860
  %v2044 = vunpack.c.l.b16 %v1861
  %v2045 = vunpack.c.h.b16 %v1861
  %v2046 = vunpack.c.l.b16 %v1862
  %v2047 = vunpack.c.h.b16 %v1862
  %v2048 = vpack.c.b16 %v2018, %v2016
  %v2049 = vpack.c.b16 %v2019, %v2017
  %v2050 = vpack.c.b16 %v2022, %v2020
  %v2051 = vpack.c.b16 %v2023, %v2021
  %v2052 = vpack.c.b16 %v2026, %v2024
  %v2053 = vpack.c.b16 %v2027, %v2025
  %v2054 = vpack.c.b16 %v2030, %v2028
  %v2055 = vpack.c.b16 %v2031, %v2029
  %v2056 = vpack.c.b16 %v2034, %v2032
  %v2057 = vpack.c.b16 %v2035, %v2033
  %v2058 = vpack.c.b16 %v2038, %v2036
  %v2059 = vpack.c.b16 %v2039, %v2037
  %v2060 = vpack.c.b16 %v2042, %v2040
  %v2061 = vpack.c.b16 %v2043, %v2041
  %v2062 = vpack.c.b16 %v2046, %v2044
  %v2063 = vpack.c.b16 %v2047, %v2045
  %2080 = vmatpush.bf16.msra.mxu0 %v2062
  %2081 = vmatpush.bf16.msra.mxu0 %v2060
  %2082 = vmatpush.bf16.msra.mxu0 %v2058
  %2083 = vmatpush.bf16.msra.mxu0 %v2056
  %2084 = vmatpush.bf16.msra.mxu0 %v2054
  %2085 = vmatpush.bf16.msra.mxu0 %v2052
  %2086 = vmatpush.bf16.msra.mxu0 %v2050
  %2087 = vmatpush.bf16.msra.mxu0 %v2048
  %2088 = vmatmul.bf16.gmra.mxu0 %v1845
  %v2089 = vpop.f32.mrf.mxu0
  %v2090 = vadd.f32 %v1972, %v2089
  %v2091 = vpop.f32.mrf.mxu0
  %v2092 = vadd.f32 %v1974, %v2091
  %2093 = vmatmul.bf16.gmra.mxu0 %v1846
  %v2094 = vpop.f32.mrf.mxu0
  %v2095 = vadd.f32 %v1977, %v2094
  %v2096 = vpop.f32.mrf.mxu0
  %v2097 = vadd.f32 %v1979, %v2096
  %2098 = vdwg.mxu0
  %2099 = vmatpush.bf16.msra.mxu0 %v2063
  %2100 = vmatpush.bf16.msra.mxu0 %v2061
  %2101 = vmatpush.bf16.msra.mxu0 %v2059
  %2102 = vmatpush.bf16.msra.mxu0 %v2057
  %2103 = vmatpush.bf16.msra.mxu0 %v2055
  %2104 = vmatpush.bf16.msra.mxu0 %v2053
  %2105 = vmatpush.bf16.msra.mxu0 %v2051
  %2106 = vmatpush.bf16.msra.mxu0 %v2049
  %2107 = vmatmul.bf16.gmra.mxu0 %v1845
  %v2108 = vpop.f32.mrf.mxu0
  %v2109 = vadd.f32 %v1991, %v2108
  %v2110 = vpop.f32.mrf.mxu0
  %v2111 = vadd.f32 %v1993, %v2110
  %2112 = vmatmul.bf16.gmra.mxu0 %v1846
  %v2113 = vpop.f32.mrf.mxu0
  %v2114 = vadd.f32 %v1996, %v2113
  %v2115 = vpop.f32.mrf.mxu0
  %v2116 = vadd.f32 %v1998, %v2115
  %2117 = vdwg.mxu0
  %v2118 = vpack.c.bf16 %v1842, %v1841
  %v2119 = vpack.c.bf16 %v1844, %v1843
  %s2120 = scalar_lea.vmem %s12, 256
  %v2121 = vld [vmem:[%s2120] sm:$0xff]
  %v2122 = vld [vmem:[%s2120 + $0x8] sm:$0xff]
  %v2123 = vld [vmem:[%s2120 + $0x10] sm:$0xff]
  %v2124 = vld [vmem:[%s2120 + $0x18] sm:$0xff]
  %v2125 = vld [vmem:[%s2120 + $0x20] sm:$0xff]
  %v2126 = vld [vmem:[%s2120 + $0x28] sm:$0xff]
  %v2127 = vld [vmem:[%s2120 + $0x30] sm:$0xff]
  %v2128 = vld [vmem:[%s2120 + $0x38] sm:$0xff]
  %v2129 = vld [vmem:[%s2120 + $0x40] sm:$0xff]
  %v2130 = vld [vmem:[%s2120 + $0x48] sm:$0xff]
  %v2131 = vld [vmem:[%s2120 + $0x50] sm:$0xff]
  %v2132 = vld [vmem:[%s2120 + $0x58] sm:$0xff]
  %v2133 = vld [vmem:[%s2120 + $0x60] sm:$0xff]
  %v2134 = vld [vmem:[%s2120 + $0x68] sm:$0xff]
  %v2135 = vld [vmem:[%s2120 + $0x70] sm:$0xff]
  %v2136 = vld [vmem:[%s2120 + $0x78] sm:$0xff]
  %v2153 = vunpack.c.l.b16 %v2121
  %v2154 = vunpack.c.h.b16 %v2121
  %v2155 = vunpack.c.l.b16 %v2122
  %v2156 = vunpack.c.h.b16 %v2122
  %v2157 = vunpack.c.l.b16 %v2123
  %v2158 = vunpack.c.h.b16 %v2123
  %v2159 = vunpack.c.l.b16 %v2124
  %v2160 = vunpack.c.h.b16 %v2124
  %v2161 = vunpack.c.l.b16 %v2125
  %v2162 = vunpack.c.h.b16 %v2125
  %v2163 = vunpack.c.l.b16 %v2126
  %v2164 = vunpack.c.h.b16 %v2126
  %v2165 = vunpack.c.l.b16 %v2127
  %v2166 = vunpack.c.h.b16 %v2127
  %v2167 = vunpack.c.l.b16 %v2128
  %v2168 = vunpack.c.h.b16 %v2128
  %v2169 = vunpack.c.l.b16 %v2129
  %v2170 = vunpack.c.h.b16 %v2129
  %v2171 = vunpack.c.l.b16 %v2130
  %v2172 = vunpack.c.h.b16 %v2130
  %v2173 = vunpack.c.l.b16 %v2131
  %v2174 = vunpack.c.h.b16 %v2131
  %v2175 = vunpack.c.l.b16 %v2132
  %v2176 = vunpack.c.h.b16 %v2132
  %v2177 = vunpack.c.l.b16 %v2133
  %v2178 = vunpack.c.h.b16 %v2133
  %v2179 = vunpack.c.l.b16 %v2134
  %v2180 = vunpack.c.h.b16 %v2134
  %v2181 = vunpack.c.l.b16 %v2135
  %v2182 = vunpack.c.h.b16 %v2135
  %v2183 = vunpack.c.l.b16 %v2136
  %v2184 = vunpack.c.h.b16 %v2136
  %v2185 = vpack.c.b16 %v2155, %v2153
  %v2186 = vpack.c.b16 %v2156, %v2154
  %v2187 = vpack.c.b16 %v2159, %v2157
  %v2188 = vpack.c.b16 %v2160, %v2158
  %v2189 = vpack.c.b16 %v2163, %v2161
  %v2190 = vpack.c.b16 %v2164, %v2162
  %v2191 = vpack.c.b16 %v2167, %v2165
  %v2192 = vpack.c.b16 %v2168, %v2166
  %v2193 = vpack.c.b16 %v2171, %v2169
  %v2194 = vpack.c.b16 %v2172, %v2170
  %v2195 = vpack.c.b16 %v2175, %v2173
  %v2196 = vpack.c.b16 %v2176, %v2174
  %v2197 = vpack.c.b16 %v2179, %v2177
  %v2198 = vpack.c.b16 %v2180, %v2178
  %v2199 = vpack.c.b16 %v2183, %v2181
  %v2200 = vpack.c.b16 %v2184, %v2182
  %2217 = vmatpush.bf16.msra.mxu0 %v2199
  %2218 = vmatpush.bf16.msra.mxu0 %v2197
  %2219 = vmatpush.bf16.msra.mxu0 %v2195
  %2220 = vmatpush.bf16.msra.mxu0 %v2193
  %2221 = vmatpush.bf16.msra.mxu0 %v2191
  %2222 = vmatpush.bf16.msra.mxu0 %v2189
  %2223 = vmatpush.bf16.msra.mxu0 %v2187
  %2224 = vmatpush.bf16.msra.mxu0 %v2185
  %2225 = vmatmul.bf16.gmra.mxu0 %v2118
  %v2226 = vpop.f32.mrf.mxu0
  %v2227 = vadd.f32 0.0, %v2226
  %v2228 = vpop.f32.mrf.mxu0
  %v2229 = vadd.f32 0.0, %v2228
  %2230 = vmatmul.bf16.gmra.mxu0 %v2119
  %v2231 = vpop.f32.mrf.mxu0
  %v2232 = vadd.f32 0.0, %v2231
  %v2233 = vpop.f32.mrf.mxu0
  %v2234 = vadd.f32 0.0, %v2233
  %2235 = vdwg.mxu0
  %2236 = vmatpush.bf16.msra.mxu0 %v2200
  %2237 = vmatpush.bf16.msra.mxu0 %v2198
  %2238 = vmatpush.bf16.msra.mxu0 %v2196
  %2239 = vmatpush.bf16.msra.mxu0 %v2194
  %2240 = vmatpush.bf16.msra.mxu0 %v2192
  %2241 = vmatpush.bf16.msra.mxu0 %v2190
  %2242 = vmatpush.bf16.msra.mxu0 %v2188
  %2243 = vmatpush.bf16.msra.mxu0 %v2186
  %2244 = vmatmul.bf16.gmra.mxu0 %v2118
  %v2245 = vpop.f32.mrf.mxu0
  %v2246 = vadd.f32 0.0, %v2245
  %v2247 = vpop.f32.mrf.mxu0
  %v2248 = vadd.f32 0.0, %v2247
  %2249 = vmatmul.bf16.gmra.mxu0 %v2119
  %v2250 = vpop.f32.mrf.mxu0
  %v2251 = vadd.f32 0.0, %v2250
  %v2252 = vpop.f32.mrf.mxu0
  %v2253 = vadd.f32 0.0, %v2252
  %2254 = vdwg.mxu0
  %v2255 = vadd.f32 %v2090, %v2227
  %v2256 = vadd.f32 %v2109, %v2246
  %v2257 = vadd.f32 %v2092, %v2229
  %v2258 = vadd.f32 %v2111, %v2248
  %v2259 = vadd.f32 %v2095, %v2232
  %v2260 = vadd.f32 %v2114, %v2251
  %v2261 = vadd.f32 %v2097, %v2234
  %v2262 = vadd.f32 %v2116, %v2253
  %v2263 = vld [vmem:[%s13] sm:$0x3]
  %v2265 = vperm.slane %v2263, 0
  %v2266 = vperm.slane %v2263, 1
  %v2269 = vadd.f32 %v2255, %v2265
  %v2270 = vadd.f32 %v2256, %v2266
  %v2271 = vadd.f32 %v2257, %v2265
  %v2272 = vadd.f32 %v2258, %v2266
  %v2273 = vadd.f32 %v2259, %v2265
  %v2274 = vadd.f32 %v2260, %v2266
  %v2275 = vadd.f32 %v2261, %v2265
  %v2276 = vadd.f32 %v2262, %v2266
  %v2277 = vadd.f32 %v2269, %v2271
  %v2278 = vadd.f32 %v2277, %v2273
  %v2279 = vadd.f32 %v2278, %v2275
  %v2280 = vrot.slane %v2279, 4
  %v2281 = vadd.f32 %v2279, %v2280
  %v2282 = vrot.slane %v2281, 2
  %v2283 = vadd.f32 %v2281, %v2282
  %v2284 = vrot.slane %v2283, 1
  %v2285 = vadd.f32 %v2283, %v2284
  %v2286 = vadd.f32 %v2270, %v2272
  %v2287 = vadd.f32 %v2286, %v2274
  %v2288 = vadd.f32 %v2287, %v2276
  %v2289 = vrot.slane %v2288, 4
  %v2290 = vadd.f32 %v2288, %v2289
  %v2291 = vrot.slane %v2290, 2
  %v2292 = vadd.f32 %v2290, %v2291
  %v2293 = vrot.slane %v2292, 1
  %v2294 = vadd.f32 %v2292, %v2293
  %v2295 = vmul.f32 %v2285, 0.03125
  %v2296 = vmul.f32 %v2294, 0.03125
  %v2297 = vmul.f32 %v2269, %v2269
  %v2298 = vmul.f32 %v2270, %v2270
  %v2299 = vmul.f32 %v2271, %v2271
  %v2300 = vmul.f32 %v2272, %v2272
  %v2301 = vmul.f32 %v2273, %v2273
  %v2302 = vmul.f32 %v2274, %v2274
  %v2303 = vmul.f32 %v2275, %v2275
  %v2304 = vmul.f32 %v2276, %v2276
  %v2305 = vadd.f32 %v2297, %v2299
  %v2306 = vadd.f32 %v2305, %v2301
  %v2307 = vadd.f32 %v2306, %v2303
  %v2308 = vrot.slane %v2307, 4
  %v2309 = vadd.f32 %v2307, %v2308
  %v2310 = vrot.slane %v2309, 2
  %v2311 = vadd.f32 %v2309, %v2310
  %v2312 = vrot.slane %v2311, 1
  %v2313 = vadd.f32 %v2311, %v2312
  %v2314 = vadd.f32 %v2298, %v2300
  %v2315 = vadd.f32 %v2314, %v2302
  %v2316 = vadd.f32 %v2315, %v2304
  %v2317 = vrot.slane %v2316, 4
  %v2318 = vadd.f32 %v2316, %v2317
  %v2319 = vrot.slane %v2318, 2
  %v2320 = vadd.f32 %v2318, %v2319
  %v2321 = vrot.slane %v2320, 1
  %v2322 = vadd.f32 %v2320, %v2321
  %v2323 = vmul.f32 %v2313, 0.03125
  %v2324 = vmul.f32 %v2322, 0.03125
  %v2325 = vmul.f32 %v2295, %v2295
  %v2326 = vmul.f32 %v2296, %v2296
  %v2327 = vsub.f32 %v2323, %v2325
  %v2328 = vsub.f32 %v2324, %v2326
  %v2329 = vsub.f32 %v2269, %v2295
  %v2330 = vsub.f32 %v2270, %v2296
  %v2331 = vsub.f32 %v2271, %v2295
  %v2332 = vsub.f32 %v2272, %v2296
  %v2333 = vsub.f32 %v2273, %v2295
  %v2334 = vsub.f32 %v2274, %v2296
  %v2335 = vsub.f32 %v2275, %v2295
  %v2336 = vsub.f32 %v2276, %v2296
  %v2337 = vadd.f32 %v2327, 1e-05
  %v2338 = vadd.f32 %v2328, 1e-05
  %v2339 = vrsqrt.pop %v2337
  %v2340 = vmul.f32 %v2339, %v2337
  %v2341 = vmul.f32 %v2340, %v2339
  %v2342 = vmul.f32 0.5, %v2341
  %v2343 = vsub.f32 1.5, %v2342
  %v2344 = vmul.f32 %v2339, %v2343
  %vm2345 = vweird.f32 %v2337
  %vm2346 = vweird.f32 %v2339
  %vm2347 = vmor %vm2345, %vm2346
  %v2348 = vsel %vm2347, %v2339, %v2344
  %v2349 = vrsqrt.pop %v2338
  %v2350 = vmul.f32 %v2349, %v2338
  %v2351 = vmul.f32 %v2350, %v2349
  %v2352 = vmul.f32 0.5, %v2351
  %v2353 = vsub.f32 1.5, %v2352
  %v2354 = vmul.f32 %v2349, %v2353
  %vm2355 = vweird.f32 %v2338
  %vm2356 = vweird.f32 %v2349
  %vm2357 = vmor %vm2355, %vm2356
  %v2358 = vsel %vm2357, %v2349, %v2354
  %v2359 = vmul.f32 %v2329, %v2348
  %v2360 = vmul.f32 %v2330, %v2358
  %v2361 = vmul.f32 %v2331, %v2348
  %v2362 = vmul.f32 %v2332, %v2358
  %v2363 = vmul.f32 %v2333, %v2348
  %v2364 = vmul.f32 %v2334, %v2358
  %v2365 = vmul.f32 %v2335, %v2348
  %v2366 = vmul.f32 %v2336, %v2358
  %v2367 = vmul.f32 %v2359, 0.2
  %v2368 = vmul.f32 %v2360, 0.2
  %v2369 = vmul.f32 %v2361, 0.2
  %v2370 = vmul.f32 %v2362, 0.2
  %v2371 = vmul.f32 %v2363, 0.2
  %v2372 = vmul.f32 %v2364, 0.2
  %v2373 = vmul.f32 %v2365, 0.2
  %v2374 = vmul.f32 %v2366, 0.2
  %v2375 = vmax.f32 %v2359, %v2367
  %v2376 = vmax.f32 %v2360, %v2368
  %v2377 = vmax.f32 %v2361, %v2369
  %v2378 = vmax.f32 %v2362, %v2370
  %v2379 = vmax.f32 %v2363, %v2371
  %v2380 = vmax.f32 %v2364, %v2372
  %v2381 = vmax.f32 %v2365, %v2373
  %v2382 = vmax.f32 %v2366, %v2374
  %v2383 = vrot.slane %v2375, 7
  %v2384 = vrot.slane %v2376, 7
  %v2385 = vrot.slane %v2377, 7
  %v2386 = vrot.slane %v2378, 7
  %v2387 = vrot.slane %v2379, 7
  %v2388 = vrot.slane %v2380, 7
  %v2389 = vrot.slane %v2381, 7
  %v2390 = vrot.slane %v2382, 7
  %v2391 = vsel %vm211, %v2387, %v2389
  %v2392 = vsel %vm211, %v2388, %v2390
  %v2393 = vsel %vm211, %v2385, %v2387
  %v2394 = vsel %vm211, %v2386, %v2388
  %v2395 = vsel %vm211, %v2383, %v2385
  %v2396 = vsel %vm211, %v2384, %v2386
  %v2397 = vsel %vm211, %v2389, %v2383
  %v2398 = vsel %vm211, %v2390, %v2384
  %v2399 = vmul.f32 %v2397, %v123
  %v2400 = vmul.f32 %v2398, %v123
  %v2401 = vmul.f32 %v2395, %v124
  %v2402 = vmul.f32 %v2396, %v124
  %v2403 = vmul.f32 %v2393, %v125
  %v2404 = vmul.f32 %v2394, %v125
  %v2405 = vmul.f32 %v2391, %v126
  %v2406 = vmul.f32 %v2392, %v126
  %v2407 = vrot.slane %v2375, 1
  %v2408 = vrot.slane %v2376, 1
  %v2409 = vrot.slane %v2377, 1
  %v2410 = vrot.slane %v2378, 1
  %v2411 = vrot.slane %v2379, 1
  %v2412 = vrot.slane %v2380, 1
  %v2413 = vrot.slane %v2381, 1
  %v2414 = vrot.slane %v2382, 1
  %v2415 = vsel %vm224, %v2411, %v2413
  %v2416 = vsel %vm224, %v2412, %v2414
  %v2417 = vsel %vm224, %v2409, %v2411
  %v2418 = vsel %vm224, %v2410, %v2412
  %v2419 = vsel %vm224, %v2407, %v2409
  %v2420 = vsel %vm224, %v2408, %v2410
  %v2421 = vsel %vm224, %v2413, %v2407
  %v2422 = vsel %vm224, %v2414, %v2408
  %v2423 = vmul.f32 %v2419, %v135
  %v2424 = vmul.f32 %v2420, %v135
  %v2425 = vmul.f32 %v2417, %v136
  %v2426 = vmul.f32 %v2418, %v136
  %v2427 = vmul.f32 %v2415, %v137
  %v2428 = vmul.f32 %v2416, %v137
  %v2429 = vmul.f32 %v2421, %v138
  %v2430 = vmul.f32 %v2422, %v138
  %v2431 = vpack.c.bf16 %v2401, %v2399
  %v2432 = vpack.c.bf16 %v2402, %v2400
  %v2433 = vpack.c.bf16 %v2405, %v2403
  %v2434 = vpack.c.bf16 %v2406, %v2404
  %v2435 = vld [vmem:[%s14] sm:$0xf]
  %v2436 = vld [vmem:[%s14 + $0x4] sm:$0xf]
  %v2437 = vld [vmem:[%s14 + $0x8] sm:$0xf]
  %v2438 = vld [vmem:[%s14 + $0xc] sm:$0xf]
  %v2439 = vld [vmem:[%s14 + $0x10] sm:$0xf]
  %v2440 = vld [vmem:[%s14 + $0x14] sm:$0xf]
  %v2441 = vld [vmem:[%s14 + $0x18] sm:$0xf]
  %v2442 = vld [vmem:[%s14 + $0x1c] sm:$0xf]
  %v2443 = vld [vmem:[%s14 + $0x20] sm:$0xf]
  %v2444 = vld [vmem:[%s14 + $0x24] sm:$0xf]
  %v2445 = vld [vmem:[%s14 + $0x28] sm:$0xf]
  %v2446 = vld [vmem:[%s14 + $0x2c] sm:$0xf]
  %v2447 = vld [vmem:[%s14 + $0x30] sm:$0xf]
  %v2448 = vld [vmem:[%s14 + $0x34] sm:$0xf]
  %v2449 = vld [vmem:[%s14 + $0x38] sm:$0xf]
  %v2450 = vld [vmem:[%s14 + $0x3c] sm:$0xf]
  %v2451 = vld [vmem:[%s14 + $0x40] sm:$0xf]
  %v2452 = vld [vmem:[%s14 + $0x44] sm:$0xf]
  %v2453 = vld [vmem:[%s14 + $0x48] sm:$0xf]
  %v2454 = vld [vmem:[%s14 + $0x4c] sm:$0xf]
  %v2455 = vld [vmem:[%s14 + $0x50] sm:$0xf]
  %v2456 = vld [vmem:[%s14 + $0x54] sm:$0xf]
  %v2457 = vld [vmem:[%s14 + $0x58] sm:$0xf]
  %v2458 = vld [vmem:[%s14 + $0x5c] sm:$0xf]
  %v2459 = vld [vmem:[%s14 + $0x60] sm:$0xf]
  %v2460 = vld [vmem:[%s14 + $0x64] sm:$0xf]
  %v2461 = vld [vmem:[%s14 + $0x68] sm:$0xf]
  %v2462 = vld [vmem:[%s14 + $0x6c] sm:$0xf]
  %v2463 = vld [vmem:[%s14 + $0x70] sm:$0xf]
  %v2464 = vld [vmem:[%s14 + $0x74] sm:$0xf]
  %v2465 = vld [vmem:[%s14 + $0x78] sm:$0xf]
  %v2466 = vld [vmem:[%s14 + $0x7c] sm:$0xf]
  %v2467 = vpack.c.bf16 %v2377, %v2375
  %v2468 = vpack.c.bf16 %v2378, %v2376
  %v2469 = vpack.c.bf16 %v2381, %v2379
  %v2470 = vpack.c.bf16 %v2382, %v2380
  %s2471 = scalar_lea.vmem %s14, 128
  %v2472 = vld [vmem:[%s2471] sm:$0xf]
  %v2473 = vld [vmem:[%s2471 + $0x4] sm:$0xf]
  %v2474 = vld [vmem:[%s2471 + $0x8] sm:$0xf]
  %v2475 = vld [vmem:[%s2471 + $0xc] sm:$0xf]
  %v2476 = vld [vmem:[%s2471 + $0x10] sm:$0xf]
  %v2477 = vld [vmem:[%s2471 + $0x14] sm:$0xf]
  %v2478 = vld [vmem:[%s2471 + $0x18] sm:$0xf]
  %v2479 = vld [vmem:[%s2471 + $0x1c] sm:$0xf]
  %v2480 = vld [vmem:[%s2471 + $0x20] sm:$0xf]
  %v2481 = vld [vmem:[%s2471 + $0x24] sm:$0xf]
  %v2482 = vld [vmem:[%s2471 + $0x28] sm:$0xf]
  %v2483 = vld [vmem:[%s2471 + $0x2c] sm:$0xf]
  %v2484 = vld [vmem:[%s2471 + $0x30] sm:$0xf]
  %v2485 = vld [vmem:[%s2471 + $0x34] sm:$0xf]
  %v2486 = vld [vmem:[%s2471 + $0x38] sm:$0xf]
  %v2487 = vld [vmem:[%s2471 + $0x3c] sm:$0xf]
  %v2488 = vld [vmem:[%s2471 + $0x40] sm:$0xf]
  %v2489 = vld [vmem:[%s2471 + $0x44] sm:$0xf]
  %v2490 = vld [vmem:[%s2471 + $0x48] sm:$0xf]
  %v2491 = vld [vmem:[%s2471 + $0x4c] sm:$0xf]
  %v2492 = vld [vmem:[%s2471 + $0x50] sm:$0xf]
  %v2493 = vld [vmem:[%s2471 + $0x54] sm:$0xf]
  %v2494 = vld [vmem:[%s2471 + $0x58] sm:$0xf]
  %v2495 = vld [vmem:[%s2471 + $0x5c] sm:$0xf]
  %v2496 = vld [vmem:[%s2471 + $0x60] sm:$0xf]
  %v2497 = vld [vmem:[%s2471 + $0x64] sm:$0xf]
  %v2498 = vld [vmem:[%s2471 + $0x68] sm:$0xf]
  %v2499 = vld [vmem:[%s2471 + $0x6c] sm:$0xf]
  %v2500 = vld [vmem:[%s2471 + $0x70] sm:$0xf]
  %v2501 = vld [vmem:[%s2471 + $0x74] sm:$0xf]
  %v2502 = vld [vmem:[%s2471 + $0x78] sm:$0xf]
  %v2503 = vld [vmem:[%s2471 + $0x7c] sm:$0xf]
  %v2536 = vunpack.c.l.b16 %v2472
  %v2537 = vunpack.c.l.b16 %v2473
  %v2538 = vunpack.c.l.b16 %v2474
  %v2539 = vunpack.c.l.b16 %v2475
  %v2540 = vunpack.c.l.b16 %v2476
  %v2541 = vunpack.c.l.b16 %v2477
  %v2542 = vunpack.c.l.b16 %v2478
  %v2543 = vunpack.c.l.b16 %v2479
  %v2544 = vunpack.c.l.b16 %v2480
  %v2545 = vunpack.c.l.b16 %v2481
  %v2546 = vunpack.c.l.b16 %v2482
  %v2547 = vunpack.c.l.b16 %v2483
  %v2548 = vunpack.c.l.b16 %v2484
  %v2549 = vunpack.c.l.b16 %v2485
  %v2550 = vunpack.c.l.b16 %v2486
  %v2551 = vunpack.c.l.b16 %v2487
  %v2552 = vunpack.c.l.b16 %v2488
  %v2553 = vunpack.c.l.b16 %v2489
  %v2554 = vunpack.c.l.b16 %v2490
  %v2555 = vunpack.c.l.b16 %v2491
  %v2556 = vunpack.c.l.b16 %v2492
  %v2557 = vunpack.c.l.b16 %v2493
  %v2558 = vunpack.c.l.b16 %v2494
  %v2559 = vunpack.c.l.b16 %v2495
  %v2560 = vunpack.c.l.b16 %v2496
  %v2561 = vunpack.c.l.b16 %v2497
  %v2562 = vunpack.c.l.b16 %v2498
  %v2563 = vunpack.c.l.b16 %v2499
  %v2564 = vunpack.c.l.b16 %v2500
  %v2565 = vunpack.c.l.b16 %v2501
  %v2566 = vunpack.c.l.b16 %v2502
  %v2567 = vunpack.c.l.b16 %v2503
  %v2568 = vpack.c.b16 %v2537, %v2536
  %v2569 = vpack.c.b16 %v2539, %v2538
  %v2570 = vpack.c.b16 %v2541, %v2540
  %v2571 = vpack.c.b16 %v2543, %v2542
  %v2572 = vpack.c.b16 %v2545, %v2544
  %v2573 = vpack.c.b16 %v2547, %v2546
  %v2574 = vpack.c.b16 %v2549, %v2548
  %v2575 = vpack.c.b16 %v2551, %v2550
  %v2576 = vpack.c.b16 %v2553, %v2552
  %v2577 = vpack.c.b16 %v2555, %v2554
  %v2578 = vpack.c.b16 %v2557, %v2556
  %v2579 = vpack.c.b16 %v2559, %v2558
  %v2580 = vpack.c.b16 %v2561, %v2560
  %v2581 = vpack.c.b16 %v2563, %v2562
  %v2582 = vpack.c.b16 %v2565, %v2564
  %v2583 = vpack.c.b16 %v2567, %v2566
  %2600 = vmatpush.bf16.msra.mxu0 %v2575
  %2601 = vmatpush.bf16.msra.mxu0 %v2574
  %2602 = vmatpush.bf16.msra.mxu0 %v2573
  %2603 = vmatpush.bf16.msra.mxu0 %v2572
  %2604 = vmatpush.bf16.msra.mxu0 %v2571
  %2605 = vmatpush.bf16.msra.mxu0 %v2570
  %2606 = vmatpush.bf16.msra.mxu0 %v2569
  %2607 = vmatpush.bf16.msra.mxu0 %v2568
  %2608 = vmatmul.bf16.gmra.mxu0 %v2467
  %v2609 = vpop.f32.mrf.mxu0
  %v2610 = vadd.f32 0.0, %v2609
  %v2611 = vpop.f32.mrf.mxu0
  %v2612 = vadd.f32 0.0, %v2611
  %2613 = vmatmul.bf16.gmra.mxu0 %v2469
  %v2614 = vpop.f32.mrf.mxu0
  %v2615 = vadd.f32 0.0, %v2614
  %v2616 = vpop.f32.mrf.mxu0
  %v2617 = vadd.f32 0.0, %v2616
  %2618 = vdwg.mxu0
  %2619 = vmatpush.bf16.msra.mxu0 %v2583
  %2620 = vmatpush.bf16.msra.mxu0 %v2582
  %2621 = vmatpush.bf16.msra.mxu0 %v2581
  %2622 = vmatpush.bf16.msra.mxu0 %v2580
  %2623 = vmatpush.bf16.msra.mxu0 %v2579
  %2624 = vmatpush.bf16.msra.mxu0 %v2578
  %2625 = vmatpush.bf16.msra.mxu0 %v2577
  %2626 = vmatpush.bf16.msra.mxu0 %v2576
  %2627 = vmatmul.bf16.gmra.mxu0 %v2468
  %v2628 = vpop.f32.mrf.mxu0
  %v2629 = vadd.f32 %v2610, %v2628
  %v2630 = vpop.f32.mrf.mxu0
  %v2631 = vadd.f32 %v2612, %v2630
  %2632 = vmatmul.bf16.gmra.mxu0 %v2470
  %v2633 = vpop.f32.mrf.mxu0
  %v2634 = vadd.f32 %v2615, %v2633
  %v2635 = vpop.f32.mrf.mxu0
  %v2636 = vadd.f32 %v2617, %v2635
  %2637 = vdwg.mxu0
  %v2670 = vunpack.c.l.b16 %v2435
  %v2671 = vunpack.c.l.b16 %v2436
  %v2672 = vunpack.c.l.b16 %v2437
  %v2673 = vunpack.c.l.b16 %v2438
  %v2674 = vunpack.c.l.b16 %v2439
  %v2675 = vunpack.c.l.b16 %v2440
  %v2676 = vunpack.c.l.b16 %v2441
  %v2677 = vunpack.c.l.b16 %v2442
  %v2678 = vunpack.c.l.b16 %v2443
  %v2679 = vunpack.c.l.b16 %v2444
  %v2680 = vunpack.c.l.b16 %v2445
  %v2681 = vunpack.c.l.b16 %v2446
  %v2682 = vunpack.c.l.b16 %v2447
  %v2683 = vunpack.c.l.b16 %v2448
  %v2684 = vunpack.c.l.b16 %v2449
  %v2685 = vunpack.c.l.b16 %v2450
  %v2686 = vunpack.c.l.b16 %v2451
  %v2687 = vunpack.c.l.b16 %v2452
  %v2688 = vunpack.c.l.b16 %v2453
  %v2689 = vunpack.c.l.b16 %v2454
  %v2690 = vunpack.c.l.b16 %v2455
  %v2691 = vunpack.c.l.b16 %v2456
  %v2692 = vunpack.c.l.b16 %v2457
  %v2693 = vunpack.c.l.b16 %v2458
  %v2694 = vunpack.c.l.b16 %v2459
  %v2695 = vunpack.c.l.b16 %v2460
  %v2696 = vunpack.c.l.b16 %v2461
  %v2697 = vunpack.c.l.b16 %v2462
  %v2698 = vunpack.c.l.b16 %v2463
  %v2699 = vunpack.c.l.b16 %v2464
  %v2700 = vunpack.c.l.b16 %v2465
  %v2701 = vunpack.c.l.b16 %v2466
  %v2702 = vpack.c.b16 %v2671, %v2670
  %v2703 = vpack.c.b16 %v2673, %v2672
  %v2704 = vpack.c.b16 %v2675, %v2674
  %v2705 = vpack.c.b16 %v2677, %v2676
  %v2706 = vpack.c.b16 %v2679, %v2678
  %v2707 = vpack.c.b16 %v2681, %v2680
  %v2708 = vpack.c.b16 %v2683, %v2682
  %v2709 = vpack.c.b16 %v2685, %v2684
  %v2710 = vpack.c.b16 %v2687, %v2686
  %v2711 = vpack.c.b16 %v2689, %v2688
  %v2712 = vpack.c.b16 %v2691, %v2690
  %v2713 = vpack.c.b16 %v2693, %v2692
  %v2714 = vpack.c.b16 %v2695, %v2694
  %v2715 = vpack.c.b16 %v2697, %v2696
  %v2716 = vpack.c.b16 %v2699, %v2698
  %v2717 = vpack.c.b16 %v2701, %v2700
  %2734 = vmatpush.bf16.msra.mxu0 %v2709
  %2735 = vmatpush.bf16.msra.mxu0 %v2708
  %2736 = vmatpush.bf16.msra.mxu0 %v2707
  %2737 = vmatpush.bf16.msra.mxu0 %v2706
  %2738 = vmatpush.bf16.msra.mxu0 %v2705
  %2739 = vmatpush.bf16.msra.mxu0 %v2704
  %2740 = vmatpush.bf16.msra.mxu0 %v2703
  %2741 = vmatpush.bf16.msra.mxu0 %v2702
  %2742 = vmatmul.bf16.gmra.mxu0 %v2431
  %v2743 = vpop.f32.mrf.mxu0
  %v2744 = vadd.f32 %v2629, %v2743
  %v2745 = vpop.f32.mrf.mxu0
  %v2746 = vadd.f32 %v2631, %v2745
  %2747 = vmatmul.bf16.gmra.mxu0 %v2433
  %v2748 = vpop.f32.mrf.mxu0
  %v2749 = vadd.f32 %v2634, %v2748
  %v2750 = vpop.f32.mrf.mxu0
  %v2751 = vadd.f32 %v2636, %v2750
  %2752 = vdwg.mxu0
  %2753 = vmatpush.bf16.msra.mxu0 %v2717
  %2754 = vmatpush.bf16.msra.mxu0 %v2716
  %2755 = vmatpush.bf16.msra.mxu0 %v2715
  %2756 = vmatpush.bf16.msra.mxu0 %v2714
  %2757 = vmatpush.bf16.msra.mxu0 %v2713
  %2758 = vmatpush.bf16.msra.mxu0 %v2712
  %2759 = vmatpush.bf16.msra.mxu0 %v2711
  %2760 = vmatpush.bf16.msra.mxu0 %v2710
  %2761 = vmatmul.bf16.gmra.mxu0 %v2432
  %v2762 = vpop.f32.mrf.mxu0
  %v2763 = vadd.f32 %v2744, %v2762
  %v2764 = vpop.f32.mrf.mxu0
  %v2765 = vadd.f32 %v2746, %v2764
  %2766 = vmatmul.bf16.gmra.mxu0 %v2434
  %v2767 = vpop.f32.mrf.mxu0
  %v2768 = vadd.f32 %v2749, %v2767
  %v2769 = vpop.f32.mrf.mxu0
  %v2770 = vadd.f32 %v2751, %v2769
  %2771 = vdwg.mxu0
  %v2772 = vpack.c.bf16 %v2425, %v2423
  %v2773 = vpack.c.bf16 %v2426, %v2424
  %v2774 = vpack.c.bf16 %v2429, %v2427
  %v2775 = vpack.c.bf16 %v2430, %v2428
  %s2776 = scalar_lea.vmem %s14, 256
  %v2777 = vld [vmem:[%s2776] sm:$0xf]
  %v2778 = vld [vmem:[%s2776 + $0x4] sm:$0xf]
  %v2779 = vld [vmem:[%s2776 + $0x8] sm:$0xf]
  %v2780 = vld [vmem:[%s2776 + $0xc] sm:$0xf]
  %v2781 = vld [vmem:[%s2776 + $0x10] sm:$0xf]
  %v2782 = vld [vmem:[%s2776 + $0x14] sm:$0xf]
  %v2783 = vld [vmem:[%s2776 + $0x18] sm:$0xf]
  %v2784 = vld [vmem:[%s2776 + $0x1c] sm:$0xf]
  %v2785 = vld [vmem:[%s2776 + $0x20] sm:$0xf]
  %v2786 = vld [vmem:[%s2776 + $0x24] sm:$0xf]
  %v2787 = vld [vmem:[%s2776 + $0x28] sm:$0xf]
  %v2788 = vld [vmem:[%s2776 + $0x2c] sm:$0xf]
  %v2789 = vld [vmem:[%s2776 + $0x30] sm:$0xf]
  %v2790 = vld [vmem:[%s2776 + $0x34] sm:$0xf]
  %v2791 = vld [vmem:[%s2776 + $0x38] sm:$0xf]
  %v2792 = vld [vmem:[%s2776 + $0x3c] sm:$0xf]
  %v2793 = vld [vmem:[%s2776 + $0x40] sm:$0xf]
  %v2794 = vld [vmem:[%s2776 + $0x44] sm:$0xf]
  %v2795 = vld [vmem:[%s2776 + $0x48] sm:$0xf]
  %v2796 = vld [vmem:[%s2776 + $0x4c] sm:$0xf]
  %v2797 = vld [vmem:[%s2776 + $0x50] sm:$0xf]
  %v2798 = vld [vmem:[%s2776 + $0x54] sm:$0xf]
  %v2799 = vld [vmem:[%s2776 + $0x58] sm:$0xf]
  %v2800 = vld [vmem:[%s2776 + $0x5c] sm:$0xf]
  %v2801 = vld [vmem:[%s2776 + $0x60] sm:$0xf]
  %v2802 = vld [vmem:[%s2776 + $0x64] sm:$0xf]
  %v2803 = vld [vmem:[%s2776 + $0x68] sm:$0xf]
  %v2804 = vld [vmem:[%s2776 + $0x6c] sm:$0xf]
  %v2805 = vld [vmem:[%s2776 + $0x70] sm:$0xf]
  %v2806 = vld [vmem:[%s2776 + $0x74] sm:$0xf]
  %v2807 = vld [vmem:[%s2776 + $0x78] sm:$0xf]
  %v2808 = vld [vmem:[%s2776 + $0x7c] sm:$0xf]
  %v2841 = vunpack.c.l.b16 %v2777
  %v2842 = vunpack.c.l.b16 %v2778
  %v2843 = vunpack.c.l.b16 %v2779
  %v2844 = vunpack.c.l.b16 %v2780
  %v2845 = vunpack.c.l.b16 %v2781
  %v2846 = vunpack.c.l.b16 %v2782
  %v2847 = vunpack.c.l.b16 %v2783
  %v2848 = vunpack.c.l.b16 %v2784
  %v2849 = vunpack.c.l.b16 %v2785
  %v2850 = vunpack.c.l.b16 %v2786
  %v2851 = vunpack.c.l.b16 %v2787
  %v2852 = vunpack.c.l.b16 %v2788
  %v2853 = vunpack.c.l.b16 %v2789
  %v2854 = vunpack.c.l.b16 %v2790
  %v2855 = vunpack.c.l.b16 %v2791
  %v2856 = vunpack.c.l.b16 %v2792
  %v2857 = vunpack.c.l.b16 %v2793
  %v2858 = vunpack.c.l.b16 %v2794
  %v2859 = vunpack.c.l.b16 %v2795
  %v2860 = vunpack.c.l.b16 %v2796
  %v2861 = vunpack.c.l.b16 %v2797
  %v2862 = vunpack.c.l.b16 %v2798
  %v2863 = vunpack.c.l.b16 %v2799
  %v2864 = vunpack.c.l.b16 %v2800
  %v2865 = vunpack.c.l.b16 %v2801
  %v2866 = vunpack.c.l.b16 %v2802
  %v2867 = vunpack.c.l.b16 %v2803
  %v2868 = vunpack.c.l.b16 %v2804
  %v2869 = vunpack.c.l.b16 %v2805
  %v2870 = vunpack.c.l.b16 %v2806
  %v2871 = vunpack.c.l.b16 %v2807
  %v2872 = vunpack.c.l.b16 %v2808
  %v2873 = vpack.c.b16 %v2842, %v2841
  %v2874 = vpack.c.b16 %v2844, %v2843
  %v2875 = vpack.c.b16 %v2846, %v2845
  %v2876 = vpack.c.b16 %v2848, %v2847
  %v2877 = vpack.c.b16 %v2850, %v2849
  %v2878 = vpack.c.b16 %v2852, %v2851
  %v2879 = vpack.c.b16 %v2854, %v2853
  %v2880 = vpack.c.b16 %v2856, %v2855
  %v2881 = vpack.c.b16 %v2858, %v2857
  %v2882 = vpack.c.b16 %v2860, %v2859
  %v2883 = vpack.c.b16 %v2862, %v2861
  %v2884 = vpack.c.b16 %v2864, %v2863
  %v2885 = vpack.c.b16 %v2866, %v2865
  %v2886 = vpack.c.b16 %v2868, %v2867
  %v2887 = vpack.c.b16 %v2870, %v2869
  %v2888 = vpack.c.b16 %v2872, %v2871
  %2905 = vmatpush.bf16.msra.mxu0 %v2880
  %2906 = vmatpush.bf16.msra.mxu0 %v2879
  %2907 = vmatpush.bf16.msra.mxu0 %v2878
  %2908 = vmatpush.bf16.msra.mxu0 %v2877
  %2909 = vmatpush.bf16.msra.mxu0 %v2876
  %2910 = vmatpush.bf16.msra.mxu0 %v2875
  %2911 = vmatpush.bf16.msra.mxu0 %v2874
  %2912 = vmatpush.bf16.msra.mxu0 %v2873
  %2913 = vmatmul.bf16.gmra.mxu0 %v2772
  %v2914 = vpop.f32.mrf.mxu0
  %v2915 = vadd.f32 0.0, %v2914
  %v2916 = vpop.f32.mrf.mxu0
  %v2917 = vadd.f32 0.0, %v2916
  %2918 = vmatmul.bf16.gmra.mxu0 %v2774
  %v2919 = vpop.f32.mrf.mxu0
  %v2920 = vadd.f32 0.0, %v2919
  %v2921 = vpop.f32.mrf.mxu0
  %v2922 = vadd.f32 0.0, %v2921
  %2923 = vdwg.mxu0
  %2924 = vmatpush.bf16.msra.mxu0 %v2888
  %2925 = vmatpush.bf16.msra.mxu0 %v2887
  %2926 = vmatpush.bf16.msra.mxu0 %v2886
  %2927 = vmatpush.bf16.msra.mxu0 %v2885
  %2928 = vmatpush.bf16.msra.mxu0 %v2884
  %2929 = vmatpush.bf16.msra.mxu0 %v2883
  %2930 = vmatpush.bf16.msra.mxu0 %v2882
  %2931 = vmatpush.bf16.msra.mxu0 %v2881
  %2932 = vmatmul.bf16.gmra.mxu0 %v2773
  %v2933 = vpop.f32.mrf.mxu0
  %v2934 = vadd.f32 %v2915, %v2933
  %v2935 = vpop.f32.mrf.mxu0
  %v2936 = vadd.f32 %v2917, %v2935
  %2937 = vmatmul.bf16.gmra.mxu0 %v2775
  %v2938 = vpop.f32.mrf.mxu0
  %v2939 = vadd.f32 %v2920, %v2938
  %v2940 = vpop.f32.mrf.mxu0
  %v2941 = vadd.f32 %v2922, %v2940
  %2942 = vdwg.mxu0
  %v2943 = vadd.f32 %v2763, %v2934
  %v2944 = vadd.f32 %v2765, %v2936
  %v2945 = vadd.f32 %v2768, %v2939
  %v2946 = vadd.f32 %v2770, %v2941
  %v2947 = vld [vmem:[%s15] sm:$0x1]
  %v2949 = vperm.slane %v2947, 0
  %v2951 = vadd.f32 %v2943, %v2949
  %v2952 = vadd.f32 %v2944, %v2949
  %v2953 = vadd.f32 %v2945, %v2949
  %v2954 = vadd.f32 %v2946, %v2949
  %v2955 = vpack.c.bf16 %v2952, %v2951
  %v2956 = vpack.c.bf16 %v2954, %v2953
  %v2957 = vld [vmem:[%s16] sm:$0xf]
  %v2958 = vld [vmem:[%s16 + $0x4] sm:$0xf]
  %v2959 = vld [vmem:[%s16 + $0x8] sm:$0xf]
  %v2960 = vld [vmem:[%s16 + $0xc] sm:$0xf]
  %v2961 = vld [vmem:[%s16 + $0x10] sm:$0xf]
  %v2962 = vld [vmem:[%s16 + $0x14] sm:$0xf]
  %v2963 = vld [vmem:[%s16 + $0x18] sm:$0xf]
  %v2964 = vld [vmem:[%s16 + $0x1c] sm:$0xf]
  %v2965 = vld [vmem:[%s17] sm:$0x1]
  %v2967 = vperm.slane %v2965, 0
  %v2977 = vunpack.c.l.b16 %v2957
  %v2978 = vunpack.c.l.b16 %v2958
  %v2979 = vunpack.c.l.b16 %v2959
  %v2980 = vunpack.c.l.b16 %v2960
  %v2981 = vunpack.c.l.b16 %v2961
  %v2982 = vunpack.c.l.b16 %v2962
  %v2983 = vunpack.c.l.b16 %v2963
  %v2984 = vunpack.c.l.b16 %v2964
  %v2985 = vpack.c.b16 %v2978, %v2977
  %v2986 = vpack.c.b16 %v2980, %v2979
  %v2987 = vpack.c.b16 %v2982, %v2981
  %v2988 = vpack.c.b16 %v2984, %v2983
  %v2994 = vsel %vm294, %v2955, 0
  %v2997 = vsel %vm294, %v2956, 0
  %2999 = vmatpush.bf16.msra.mxu0 0
  %3000 = vmatpush.bf16.msra.mxu0 0
  %3001 = vmatpush.bf16.msra.mxu0 0
  %3002 = vmatpush.bf16.msra.mxu0 0
  %3003 = vmatpush.bf16.msra.mxu0 %v2988
  %3004 = vmatpush.bf16.msra.mxu0 %v2987
  %3005 = vmatpush.bf16.msra.mxu0 %v2986
  %3006 = vmatpush.bf16.msra.mxu0 %v2985
  %3007 = vmatmul.bf16.gmra.mxu0 %v2994
  %v3008 = vpop.f32.mrf.mxu0
  %v3009 = vadd.f32 %v2967, %v3008
  %v3010 = vpop.f32.mrf.mxu0
  %v3011 = vadd.f32 %v2967, %v3010
  %3012 = vmatmul.bf16.gmra.mxu0 %v2997
  %v3013 = vpop.f32.mrf.mxu0
  %v3014 = vadd.f32 %v2967, %v3013
  %v3015 = vpop.f32.mrf.mxu0
  %v3016 = vadd.f32 %v2967, %v3015
  %3017 = vdwg.mxu0
  %3018 = vst [vmem:[%s18] sm:$0xff] %v3009
  %3019 = vst [vmem:[%s18 + $0x8] sm:$0xff] %v3011
  %3020 = vst [vmem:[%s18 + $0x10] sm:$0xff] %v3014
  %3021 = vst [vmem:[%s18 + $0x18] sm:$0xff] %v3016
  // Predicated region
  $region74: #{patch_vae_forward.1} parent=0 // pred_check
    _
  $region75: #{patch_vae_forward.1} parent=0 // pred_check_branch
    %3023 = sbr.rel (0) target = $region77
  $region76: #{patch_vae_forward.1} parent=0 // pred_region
    _
  $region77: #{patch_vae_forward.1} parent=0 // pred_fallthru
    _
  // Predicated region
  $region78: #{patch_vae_forward.1} parent=0 // pred_check
    _
  $region79: #{patch_vae_forward.1} parent=0 // pred_check_branch
    %3025 = sbr.rel (0) target = $region81
  $region80: #{patch_vae_forward.1} parent=0 // pred_region
    _
  $region81: #{patch_vae_forward.1} parent=0 // pred_fallthru
    _
  // Predicated region
  $region82: #{patch_vae_forward.1} parent=0 // pred_check
    _
  $region83: #{patch_vae_forward.1} parent=0 // pred_check_branch
    %3027 = sbr.rel (0) target = $region85
  $region84: #{patch_vae_forward.1} parent=0 // pred_region
    _
  $region85: #{patch_vae_forward.1} parent=0 // pred_fallthru
    _
  // Predicated region
  $region86: #{patch_vae_forward.1} parent=0 // pred_check
    _
  $region87: #{patch_vae_forward.1} parent=0 // pred_check_branch
    %3029 = sbr.rel (0) target = $region89
  $region88: #{patch_vae_forward.1} parent=0 // pred_region
    _
  $region89: #{patch_vae_forward.1} parent=0 // pred_fallthru
    _

</llo_original>
